<compile_context>
chip_gen: v5e
topology: v5e:2x2
jax: 0.10.0
libtpu: 0.0.40
codegen_flags: <defaults>
</compile_context>

<pallas_src>
import functools

import jax
import jax.numpy as jnp
from jax.experimental import pallas as pl
from jax.experimental.pallas import tpu as pltpu


_LANE = 128
# Safe scoped-VMEM limit on v5e/v6e/v7x; the tiles below need far less.
_VMEM_LIMIT = 32 * 1024 * 1024


def _round_up(a, b):
    return (a + b - 1) // b * b


# --------------------------------------------------------------------------
# Pallas kernels
# --------------------------------------------------------------------------

def _matmul_affine_kernel(x_ref, w_ref, s_ref, b_ref, o_ref, *, relu):
    """y = act((X @ W) * scale + bias); one (TM, K) row tile per grid step."""
    y = jnp.dot(x_ref[...], w_ref[...], preferred_element_type=jnp.float32)
    y = y * s_ref[...] + b_ref[...]
    if relu:
        y = jnp.maximum(y, 0.0)
    o_ref[...] = y


def _ms_fusion_kernel(p_ref, w_ref, s_ref, b_ref, wf_ref, o_ref):
    """Fused multi-scale branches: shared 7x7 patches -> [3x3|5x5|7x7] convs
    with folded BN + ReLU -> 1x1 fusion conv.  One (TM, 49C) row tile/step."""
    y = jnp.dot(p_ref[...], w_ref[...], preferred_element_type=jnp.float32)
    y = jnp.maximum(y * s_ref[...] + b_ref[...], 0.0)          # per-branch BN+ReLU
    o_ref[...] = jnp.dot(y.astype(jnp.bfloat16), wf_ref[...],
                         preferred_element_type=jnp.float32)   # 1x1 fusion


def _deform_ca_kernel(samp_ref, edge_ref, wd_ref, bd_ref,
                      w1_ref, s1_ref, b1_ref,
                      wh_ref, bh_ref, ww_ref, bw_ref,
                      o_ref, *, H, W, Cout):
    """DeformConv2d matmul (bilinear patches pre-gathered) fused with
    CoordinateAttention (eval-mode BN, ReLU, sigmoid gates) and `+ edge`."""
    # Deformable conv: single fat matmul over the 9*C contraction dim + bias.
    feat = jnp.dot(samp_ref[0], wd_ref[...],
                   preferred_element_type=jnp.float32) + bd_ref[...]   # (HW, Cout)
    f3 = feat.reshape(H, W, Cout)

    # Coordinate attention.
    xh = jnp.mean(f3, axis=1)                 # (H, Cout)  pool over width
    xw = jnp.mean(f3, axis=0)                 # (W, Cout)  pool over height
    yh = jnp.maximum(
        jnp.dot(xh, w1_ref[...], preferred_element_type=jnp.float32)
        * s1_ref[...] + b1_ref[...], 0.0)
    yw = jnp.maximum(
        jnp.dot(xw, w1_ref[...], preferred_element_type=jnp.float32)
        * s1_ref[...] + b1_ref[...], 0.0)
    ah = jax.nn.sigmoid(
        jnp.dot(yh, wh_ref[...], preferred_element_type=jnp.float32) + bh_ref[...])
    aw = jax.nn.sigmoid(
        jnp.dot(yw, ww_ref[...], preferred_element_type=jnp.float32) + bw_ref[...])

    o_ref[0] = f3 * ah[:, None, :] * aw[None, :, :] + edge_ref[0]


# --------------------------------------------------------------------------
# Matmul / conv wrappers
# --------------------------------------------------------------------------

def matmul_affine(x, w, scale, bias, relu, tm=256):
    """Row-tiled bf16-MXU matmul with f32 folded-affine (+ReLU) epilogue.
    N is zero-padded to a multiple of 128 for lane-dense unmasked stores."""
    M, K = x.shape
    N = w.shape[1]
    tm = min(tm, _round_up(M, 16))            # bf16 sublane packing needs x16
    Mp = _round_up(M, tm)
    Np = _round_up(N, _LANE)

    xp = jnp.pad(x, ((0, Mp - M), (0, 0))).astype(jnp.bfloat16)
    wp = jnp.pad(w.astype(jnp.float32), ((0, 0), (0, Np - N))).astype(jnp.bfloat16)
    sp = jnp.pad(scale.reshape(1, N).astype(jnp.float32), ((0, 0), (0, Np - N)))
    bp = jnp.pad(bias.reshape(1, N).astype(jnp.float32), ((0, 0), (0, Np - N)))

    out = pl.pallas_call(
        functools.partial(_matmul_affine_kernel, relu=relu),
        out_shape=jax.ShapeDtypeStruct((Mp, Np), jnp.float32),
        grid=(Mp // tm,),
        in_specs=[
            pl.BlockSpec((tm, K), lambda i: (i, 0)),
            pl.BlockSpec((K, Np), lambda i: (0, 0)),
            pl.BlockSpec((1, Np), lambda i: (0, 0)),
            pl.BlockSpec((1, Np), lambda i: (0, 0)),
        ],
        out_specs=pl.BlockSpec((tm, Np), lambda i: (i, 0)),
        compiler_params=pltpu.CompilerParams(
            dimension_semantics=("parallel",),
            vmem_limit_bytes=_VMEM_LIMIT),
    )(xp, wp, sp, bp)
    return out[:M, :N]


def im2col(x_nhwc, k, pad):
    B, H, W, C = x_nhwc.shape
    xp = jnp.pad(x_nhwc, ((0, 0), (pad, pad), (pad, pad), (0, 0)))
    cols = []
    for kh in range(k):
        for kw in range(k):
            cols.append(xp[:, kh:kh + H, kw:kw + W, :])
    return jnp.concatenate(cols, axis=-1).reshape(B * H * W, k * k * C)
# TODO(synk): at large H,W replace the materialized im2col with in-kernel halo
# loads (pltpu.roll shifts) to avoid the k^2 HBM traffic blow-up.


def conv2d(x_nhwc, w_oihw, k, pad, scale, bias, relu):
    B, H, W, C = x_nhwc.shape
    Cout = w_oihw.shape[0]
    patches = im2col(x_nhwc, k, pad)
    wmat = jnp.transpose(w_oihw, (2, 3, 1, 0)).reshape(k * k * C, Cout)
    y = matmul_affine(patches, wmat, scale, bias, relu)
    return y.reshape(B, H, W, Cout)


def fold_bn(gamma, beta, mean, var, conv_bias=None, eps=1e-5):
    scale = gamma / jnp.sqrt(var + eps)
    if conv_bias is None:
        conv_bias = jnp.zeros_like(mean)
    bias = (conv_bias - mean) * scale + beta
    return scale, bias


# --------------------------------------------------------------------------
# Multi-scale branch fusion (shared 7x7 im2col, one kernel)
# --------------------------------------------------------------------------

def build_ms_branch_weights(params):
    """Zero-embed the 3x3/5x5 weights into a 7x7 frame and concatenate the
    three branch weight matrices along N, with folded per-branch BN affines."""
    w3, w5, w7 = params['conv3_w'], params['conv5_w'], params['conv7_w']
    C = w3.shape[1]

    def embed(w, k):
        p = (7 - k) // 2
        return jnp.pad(w, ((0, 0), (0, 0), (p, p), (p, p)))

    def tomat(w):
        return jnp.transpose(w, (2, 3, 1, 0)).reshape(49 * C, w.shape[0])

    wcat = jnp.concatenate(
        [tomat(embed(w3, 3)), tomat(embed(w5, 5)), tomat(w7)], axis=1)   # (49C, 3C)
    s3, b3 = fold_bn(*params['bn3'])
    s5, b5 = fold_bn(*params['bn5'])
    s7, b7 = fold_bn(*params['bn7'])
    scale = jnp.concatenate([s3, s5, s7])
    bias = jnp.concatenate([b3, b5, b7])
    wfusion = jnp.transpose(params['fusion_w'][:, :, 0, 0])              # (3C, outpl)
    return wcat, scale, bias, wfusion


def ms_fusion(x_nhwc, wcat, scale, bias, wfusion, tm=256):
    B, H, W, C = x_nhwc.shape
    M = B * H * W
    K = 49 * C
    Kc = wcat.shape[1]                     # 3C
    N = wfusion.shape[1]                   # outplanes
    patches = im2col(x_nhwc, 7, 3)         # (M, 49C), shared by all 3 branches

    tm = min(tm, _round_up(M, 16))
    Mp = _round_up(M, tm)
    Np = _round_up(N, _LANE)

    pp = jnp.pad(patches, ((0, Mp - M), (0, 0))).astype(jnp.bfloat16)
    wc = wcat.astype(jnp.bfloat16)
    wf = jnp.pad(wfusion.astype(jnp.float32),
                 ((0, 0), (0, Np - N))).astype(jnp.bfloat16)
    sp = scale.reshape(1, Kc).astype(jnp.float32)
    bp = bias.reshape(1, Kc).astype(jnp.float32)

    out = pl.pallas_call(
        _ms_fusion_kernel,
        out_shape=jax.ShapeDtypeStruct((Mp, Np), jnp.float32),
        grid=(Mp // tm,),
        in_specs=[
            pl.BlockSpec((tm, K), lambda i: (i, 0)),
            pl.BlockSpec((K, Kc), lambda i: (0, 0)),
            pl.BlockSpec((1, Kc), lambda i: (0, 0)),
            pl.BlockSpec((1, Kc), lambda i: (0, 0)),
            pl.BlockSpec((Kc, Np), lambda i: (0, 0)),
        ],
        out_specs=pl.BlockSpec((tm, Np), lambda i: (i, 0)),
        compiler_params=pltpu.CompilerParams(
            dimension_semantics=("parallel",),
            vmem_limit_bytes=_VMEM_LIMIT),
    )(pp, wc, sp, bp, wf)
    return out[:M, :N].reshape(B, H, W, N)


# --------------------------------------------------------------------------
# Deformable conv + coordinate attention + residual (one per-batch kernel)
# --------------------------------------------------------------------------

def deform_bilinear_patches(x_nhwc, off_nhwc):
    """Bilinear-sampled 3x3 deformable patches (torchvision DCNv1 semantics,
    zero padding, offset layout [dy0,dx0,dy1,dx1,...]).  Plain-JAX gather:
    data-dependent index plumbing analogous to im2col; the heavy matmul runs
    in the Pallas kernel."""
    B, H, W, C = x_nhwc.shape
    HW = H * W
    x_flat = x_nhwc.reshape(B, HW, C)
    ys = jnp.arange(H, dtype=jnp.float32).reshape(1, H, 1)
    xs = jnp.arange(W, dtype=jnp.float32).reshape(1, 1, W)
    taps = []
    for kh in range(3):
        for kw in range(3):
            k = kh * 3 + kw
            dy = off_nhwc[..., 2 * k]
            dx = off_nhwc[..., 2 * k + 1]
            py = ys + float(kh - 1) + dy                 # (B, H, W)
            px = xs + float(kw - 1) + dx
            y0 = jnp.floor(py)
            x0 = jnp.floor(px)
            ly = py - y0
            lx = px - x0
            y0i = y0.astype(jnp.int32)
            x0i = x0.astype(jnp.int32)
            val = jnp.zeros((B, HW, C), jnp.float32)
            for yy, xx, wt in ((y0i, x0i, (1.0 - ly) * (1.0 - lx)),
                               (y0i, x0i + 1, (1.0 - ly) * lx),
                               (y0i + 1, x0i, ly * (1.0 - lx)),
                               (y0i + 1, x0i + 1, ly * lx)):
                valid = (yy >= 0) & (yy < H) & (xx >= 0) & (xx < W)
                idx = (jnp.clip(yy, 0, H - 1) * W
                       + jnp.clip(xx, 0, W - 1)).reshape(B, HW, 1)
                g = jnp.take_along_axis(x_flat, idx, axis=1)        # (B, HW, C)
                wv = jnp.where(valid, wt, 0.0).reshape(B, HW, 1)
                val = val + g * wv
            taps.append(val)
    samp = jnp.stack(taps, axis=2)                                  # (B, HW, 9, C)
    return samp.reshape(B, HW, 9 * C)
# TODO(synk): an in-kernel DMA-gather variant would avoid materializing the
# (B, HW, 9C) patch tensor in HBM; XLA gather is used here for robustness.


def deform_ca_add(fused_nhwc, offset_nhwc, edge_nhwc, params):
    B, H, W, C = fused_nhwc.shape
    HW = H * W
    Cout = params['deform_w'].shape[0]
    mip = params['ca_conv1_w'].shape[0]

    samp = deform_bilinear_patches(fused_nhwc, offset_nhwc).astype(jnp.bfloat16)
    wd = jnp.transpose(params['deform_w'], (2, 3, 1, 0)).reshape(9 * C, Cout)
    wd = wd.astype(jnp.bfloat16)
    bd = params['deform_b'].reshape(1, Cout).astype(jnp.float32)

    s1, b1 = fold_bn(*params['ca_bn1'], conv_bias=params['ca_conv1_b'])
    w1 = jnp.transpose(params['ca_conv1_w'][:, :, 0, 0]).astype(jnp.float32)  # (Cout, mip)
    wh = jnp.transpose(params['ca_convh_w'][:, :, 0, 0]).astype(jnp.float32)  # (mip, Cout)
    ww = jnp.transpose(params['ca_convw_w'][:, :, 0, 0]).astype(jnp.float32)  # (mip, Cout)
    s1 = s1.reshape(1, mip).astype(jnp.float32)
    b1 = b1.reshape(1, mip).astype(jnp.float32)
    bh = params['ca_convh_b'].reshape(1, Cout).astype(jnp.float32)
    bw = params['ca_convw_b'].reshape(1, Cout).astype(jnp.float32)

    return pl.pallas_call(
        functools.partial(_deform_ca_kernel, H=H, W=W, Cout=Cout),
        out_shape=jax.ShapeDtypeStruct((B, H, W, Cout), jnp.float32),
        grid=(B,),
        in_specs=[
            pl.BlockSpec((1, HW, 9 * C), lambda b: (b, 0, 0)),
            pl.BlockSpec((1, H, W, Cout), lambda b: (b, 0, 0, 0)),
            pl.BlockSpec((9 * C, Cout), lambda b: (0, 0)),
            pl.BlockSpec((1, Cout), lambda b: (0, 0)),
            pl.BlockSpec((Cout, mip), lambda b: (0, 0)),
            pl.BlockSpec((1, mip), lambda b: (0, 0)),
            pl.BlockSpec((1, mip), lambda b: (0, 0)),
            pl.BlockSpec((mip, Cout), lambda b: (0, 0)),
            pl.BlockSpec((1, Cout), lambda b: (0, 0)),
            pl.BlockSpec((mip, Cout), lambda b: (0, 0)),
            pl.BlockSpec((1, Cout), lambda b: (0, 0)),
        ],
        out_specs=pl.BlockSpec((1, H, W, Cout), lambda b: (b, 0, 0, 0)),
        compiler_params=pltpu.CompilerParams(
            dimension_semantics=("parallel",),
            vmem_limit_bytes=_VMEM_LIMIT),
    )(samp, edge_nhwc, wd, bd, w1, s1, b1, wh, bh, ww, bw)


# --------------------------------------------------------------------------
# Parameters (deterministic, synthetic)
# --------------------------------------------------------------------------

def init_params(key, inplanes, outplanes):
    ks = iter(jax.random.split(key, 64))

    def nrm(shape, s=0.1):
        return s * jax.random.normal(next(ks), shape, jnp.float32)

    def bn(c):
        gamma = 1.0 + nrm((c,))
        beta = nrm((c,))
        mean = nrm((c,))
        var = 1.0 + 0.1 * jnp.abs(jax.random.normal(next(ks), (c,), jnp.float32))
        return (gamma, beta, mean, var)

    mip = max(8, outplanes // 32)
    return dict(
        con1x1_w=nrm((outplanes, inplanes, 1, 1)),
        conv3_w=nrm((inplanes, inplanes, 3, 3)), bn3=bn(inplanes),
        conv5_w=nrm((inplanes, inplanes, 5, 5)), bn5=bn(inplanes),
        conv7_w=nrm((inplanes, inplanes, 7, 7)), bn7=bn(inplanes),
        fusion_w=nrm((outplanes, inplanes * 3, 1, 1)),
        offset_w=nrm((18, outplanes, 3, 3)), offset_b=nrm((18,)),
        deform_w=nrm((outplanes, outplanes, 3, 3)), deform_b=nrm((outplanes,)),
        ca_conv1_w=nrm((mip, outplanes, 1, 1)), ca_conv1_b=nrm((mip,)), ca_bn1=bn(mip),
        ca_convh_w=nrm((outplanes, mip, 1, 1)), ca_convh_b=nrm((outplanes,)),
        ca_convw_w=nrm((outplanes, mip, 1, 1)), ca_convw_b=nrm((outplanes,)),
        conv_f_w=nrm((outplanes, outplanes, 3, 3)), conv_f_b=nrm((outplanes,)),
        bn_f=bn(outplanes),
    )


# --------------------------------------------------------------------------
# Full EdgeEnhance forward
# --------------------------------------------------------------------------

def edge_enhance_forward(x_nchw, params):
    B, C, H, W = x_nchw.shape
    outpl = params['con1x1_w'].shape[0]
    x = jnp.transpose(x_nchw, (0, 2, 3, 1)).astype(jnp.float32)   # NHWC

    # SobelModule high-boost: the 8 directional Sobel kernels cancel exactly
    # (4 bases + their negations), so x_high_frequency == 0 and the branch is
    # A*x with A=1.  Fold A into the bias-free 1x1 conv weight.
    A = 1.0
    edge = conv2d(x, A * params['con1x1_w'], 1, 0,
                  jnp.ones((outpl,), jnp.float32),
                  jnp.zeros((outpl,), jnp.float32), relu=False)

    # Multi-scale branches (3x3/5x5/7x7 conv + BN + ReLU) + 1x1 fusion: 1 kernel.
    wcat, ms_s, ms_b, wfusion = build_ms_branch_weights(params)
    fused = ms_fusion(x, wcat, ms_s, ms_b, wfusion)

    # Offsets (3x3 conv with bias), then deformable conv fused with
    # coordinate attention and the `+ edge` residual.
    offset = conv2d(fused, params['offset_w'], 3, 1,
                    jnp.ones((18,), jnp.float32), params['offset_b'], relu=False)
    out = deform_ca_add(fused, offset, edge, params)

    # Final conv (bias) + BN + ReLU.
    sf, bf = fold_bn(*params['bn_f'], conv_bias=params['conv_f_b'])
    out = conv2d(out, params['conv_f_w'], 3, 1, sf, bf, relu=True)

    return jnp.transpose(out, (0, 3, 1, 2))   # back to NCHW


# --------------------------------------------------------------------------

if __name__ == "__main__":
    key = jax.random.PRNGKey(0)
    k_x, k_p = jax.random.split(key)

    B, inplanes, H, W = 2, 4, 16, 16
    outplanes = 8

    x = jax.random.normal(k_x, (B, inplanes, H, W), jnp.float32)
    params = init_params(k_p, inplanes, outplanes)

    fwd = jax.jit(edge_enhance_forward)
    out = jax.block_until_ready(fwd(x, params))

    assert out.shape == (B, outplanes, H, W), out.shape
    assert bool(jnp.all(jnp.isfinite(out)))
    print("KERNEL_OK")
</pallas_src>

<mosaic_0001>
module attributes {stable_mosaic.version = 11 : i64} {
  func.func @_ms_fusion_kernel(%arg0: i32, %arg1: memref<256x196xbf16, #tpu.memory_space<vmem>>, %arg2: memref<196x12xbf16, #tpu.memory_space<vmem>>, %arg3: memref<1x12xf32, #tpu.memory_space<vmem>>, %arg4: memref<1x12xf32, #tpu.memory_space<vmem>>, %arg5: memref<12x128xbf16, #tpu.memory_space<vmem>>, %arg6: memref<256x128xf32, #tpu.memory_space<vmem>>) attributes {dimension_semantics = [#tpu.dimension_semantics<parallel>], iteration_bounds = array<i64: 2>, scalar_prefetch = 0 : i64, scratch_operands = 0 : i64, tpu.core_type = #tpu.core_type<tc>, window_params = [{transform_indices = @transform_0, window_bounds = array<i64: 256, 196>}, {pipeline_mode = #tpu.pipeline_mode<synchronous>, transform_indices = @transform_1, window_bounds = array<i64: 196, 12>}, {pipeline_mode = #tpu.pipeline_mode<synchronous>, transform_indices = @transform_2, window_bounds = array<i64: 1, 12>}, {pipeline_mode = #tpu.pipeline_mode<synchronous>, transform_indices = @transform_3, window_bounds = array<i64: 1, 12>}, {pipeline_mode = #tpu.pipeline_mode<synchronous>, transform_indices = @transform_4, window_bounds = array<i64: 12, 128>}, {transform_indices = @transform_5, window_bounds = array<i64: 256, 128>}]} {
    %c0 = arith.constant 0 : index
    %c0_0 = arith.constant 0 : index
    %0 = vector.load %arg1[%c0, %c0_0] : memref<256x196xbf16, #tpu.memory_space<vmem>>, vector<256x196xbf16>
    %c0_1 = arith.constant 0 : index
    %c0_2 = arith.constant 0 : index
    %1 = vector.load %arg2[%c0_1, %c0_2] : memref<196x12xbf16, #tpu.memory_space<vmem>>, vector<196x12xbf16>
    %cst = arith.constant dense<0.000000e+00> : vector<256x12xf32>
    %2 = tpu.matmul %0, %1, %cst {dimension_numbers = #tpu.dot_dimension_numbers<[1], [0], [0], [1], [0, 0, 1, 1], [], []>} : vector<256x196xbf16>, vector<196x12xbf16>, vector<256x12xf32> -> vector<256x12xf32>
    %c0_3 = arith.constant 0 : index
    %c0_4 = arith.constant 0 : index
    %3 = vector.load %arg3[%c0_3, %c0_4] : memref<1x12xf32, #tpu.memory_space<vmem>>, vector<1x12xf32>
    %4 = vector.broadcast %3 : vector<1x12xf32> to vector<256x12xf32>
    %5 = arith.mulf %2, %4 : vector<256x12xf32>
    %c0_5 = arith.constant 0 : index
    %c0_6 = arith.constant 0 : index
    %6 = vector.load %arg4[%c0_5, %c0_6] : memref<1x12xf32, #tpu.memory_space<vmem>>, vector<1x12xf32>
    %7 = vector.broadcast %6 : vector<1x12xf32> to vector<256x12xf32>
    %8 = arith.addf %5, %7 : vector<256x12xf32>
    %cst_7 = arith.constant 0.000000e+00 : f32
    %9 = vector.broadcast %cst_7 : f32 to vector<256x12xf32>
    %10 = arith.maximumf %8, %9 : vector<256x12xf32>
    %11 = arith.truncf %10 : vector<256x12xf32> to vector<256x12xbf16>
    %c0_8 = arith.constant 0 : index
    %c0_9 = arith.constant 0 : index
    %12 = vector.load %arg5[%c0_8, %c0_9] : memref<12x128xbf16, #tpu.memory_space<vmem>>, vector<12x128xbf16>
    %cst_10 = arith.constant dense<0.000000e+00> : vector<256x128xf32>
    %13 = tpu.matmul %11, %12, %cst_10 {dimension_numbers = #tpu.dot_dimension_numbers<[1], [0], [0], [1], [0, 0, 1, 1], [], []>} : vector<256x12xbf16>, vector<12x128xbf16>, vector<256x128xf32> -> vector<256x128xf32>
    %c0_11 = arith.constant 0 : index
    %c0_12 = arith.constant 0 : index
    %14 = vector.load %arg6[%c0_11, %c0_12] : memref<256x128xf32, #tpu.memory_space<vmem>>, vector<256x128xf32>
    tpu.vector_store %arg6[%c0_11, %c0_12], %13 {strides = array<i32>} : memref<256x128xf32, #tpu.memory_space<vmem>>, vector<256x128xf32>,
    return
  }
  func.func @transform_0(%arg0: i32) -> (i32, i32) {
    %c0_i32 = arith.constant 0 : i32
    %c0_i32_0 = arith.constant 0 : i32
    return %arg0, %c0_i32 : i32, i32
  }
  func.func @transform_1(%arg0: i32) -> (i32, i32) {
    %c0_i32 = arith.constant 0 : i32
    %c0_i32_0 = arith.constant 0 : i32
    %c0_i32_1 = arith.constant 0 : i32
    return %c0_i32, %c0_i32_0 : i32, i32
  }
  func.func @transform_2(%arg0: i32) -> (i32, i32) {
    %c0_i32 = arith.constant 0 : i32
    %c0_i32_0 = arith.constant 0 : i32
    %c0_i32_1 = arith.constant 0 : i32
    return %c0_i32, %c0_i32_0 : i32, i32
  }
  func.func @transform_3(%arg0: i32) -> (i32, i32) {
    %c0_i32 = arith.constant 0 : i32
    %c0_i32_0 = arith.constant 0 : i32
    %c0_i32_1 = arith.constant 0 : i32
    return %c0_i32, %c0_i32_0 : i32, i32
  }
  func.func @transform_4(%arg0: i32) -> (i32, i32) {
    %c0_i32 = arith.constant 0 : i32
    %c0_i32_0 = arith.constant 0 : i32
    %c0_i32_1 = arith.constant 0 : i32
    return %c0_i32, %c0_i32_0 : i32, i32
  }
  func.func @transform_5(%arg0: i32) -> (i32, i32) {
    %c0_i32 = arith.constant 0 : i32
    %c0_i32_0 = arith.constant 0 : i32
    return %arg0, %c0_i32 : i32, i32
  }
}

module attributes {stable_mosaic.version = 11 : i64} {
  func.func @_matmul_affine_kernel(%arg0: i32, %arg1: memref<256x72xbf16, #tpu.memory_space<vmem>>, %arg2: memref<72x128xbf16, #tpu.memory_space<vmem>>, %arg3: memref<1x128xf32, #tpu.memory_space<vmem>>, %arg4: memref<1x128xf32, #tpu.memory_space<vmem>>, %arg5: memref<256x128xf32, #tpu.memory_space<vmem>>) attributes {dimension_semantics = [#tpu.dimension_semantics<parallel>], iteration_bounds = array<i64: 2>, scalar_prefetch = 0 : i64, scratch_operands = 0 : i64, tpu.core_type = #tpu.core_type<tc>, window_params = [{transform_indices = @transform_0, window_bounds = array<i64: 256, 72>}, {pipeline_mode = #tpu.pipeline_mode<synchronous>, transform_indices = @transform_1, window_bounds = array<i64: 72, 128>}, {pipeline_mode = #tpu.pipeline_mode<synchronous>, transform_indices = @transform_2, window_bounds = array<i64: 1, 128>}, {pipeline_mode = #tpu.pipeline_mode<synchronous>, transform_indices = @transform_3, window_bounds = array<i64: 1, 128>}, {transform_indices = @transform_4, window_bounds = array<i64: 256, 128>}]} {
    %c0 = arith.constant 0 : index
    %c0_0 = arith.constant 0 : index
    %0 = vector.load %arg1[%c0, %c0_0] : memref<256x72xbf16, #tpu.memory_space<vmem>>, vector<256x72xbf16>
    %c0_1 = arith.constant 0 : index
    %c0_2 = arith.constant 0 : index
    %1 = vector.load %arg2[%c0_1, %c0_2] : memref<72x128xbf16, #tpu.memory_space<vmem>>, vector<72x128xbf16>
    %cst = arith.constant dense<0.000000e+00> : vector<256x128xf32>
    %2 = tpu.matmul %0, %1, %cst {dimension_numbers = #tpu.dot_dimension_numbers<[1], [0], [0], [1], [0, 0, 1, 1], [], []>} : vector<256x72xbf16>, vector<72x128xbf16>, vector<256x128xf32> -> vector<256x128xf32>
    %c0_3 = arith.constant 0 : index
    %c0_4 = arith.constant 0 : index
    %3 = vector.load %arg3[%c0_3, %c0_4] : memref<1x128xf32, #tpu.memory_space<vmem>>, vector<1x128xf32>
    %4 = vector.broadcast %3 : vector<1x128xf32> to vector<256x128xf32>
    %5 = arith.mulf %2, %4 : vector<256x128xf32>
    %c0_5 = arith.constant 0 : index
    %c0_6 = arith.constant 0 : index
    %6 = vector.load %arg4[%c0_5, %c0_6] : memref<1x128xf32, #tpu.memory_space<vmem>>, vector<1x128xf32>
    %7 = vector.broadcast %6 : vector<1x128xf32> to vector<256x128xf32>
    %8 = arith.addf %5, %7 : vector<256x128xf32>
    %c0_7 = arith.constant 0 : index
    %c0_8 = arith.constant 0 : index
    %9 = vector.load %arg5[%c0_7, %c0_8] : memref<256x128xf32, #tpu.memory_space<vmem>>, vector<256x128xf32>
    tpu.vector_store %arg5[%c0_7, %c0_8], %8 {strides = array<i32>} : memref<256x128xf32, #tpu.memory_space<vmem>>, vector<256x128xf32>,
    return
  }
  func.func @transform_0(%arg0: i32) -> (i32, i32) {
    %c0_i32 = arith.constant 0 : i32
    %c0_i32_0 = arith.constant 0 : i32
    return %arg0, %c0_i32 : i32, i32
  }
  func.func @transform_1(%arg0: i32) -> (i32, i32) {
    %c0_i32 = arith.constant 0 : i32
    %c0_i32_0 = arith.constant 0 : i32
    %c0_i32_1 = arith.constant 0 : i32
    return %c0_i32, %c0_i32_0 : i32, i32
  }
  func.func @transform_2(%arg0: i32) -> (i32, i32) {
    %c0_i32 = arith.constant 0 : i32
    %c0_i32_0 = arith.constant 0 : i32
    %c0_i32_1 = arith.constant 0 : i32
    return %c0_i32, %c0_i32_0 : i32, i32
  }
  func.func @transform_3(%arg0: i32) -> (i32, i32) {
    %c0_i32 = arith.constant 0 : i32
    %c0_i32_0 = arith.constant 0 : i32
    %c0_i32_1 = arith.constant 0 : i32
    return %c0_i32, %c0_i32_0 : i32, i32
  }
  func.func @transform_4(%arg0: i32) -> (i32, i32) {
    %c0_i32 = arith.constant 0 : i32
    %c0_i32_0 = arith.constant 0 : i32
    return %arg0, %c0_i32 : i32, i32
  }
}

module attributes {stable_mosaic.version = 11 : i64} {
  func.func @_deform_ca_kernel(%arg0: i32, %arg1: memref<1x256x72xbf16, #tpu.memory_space<vmem>>, %arg2: memref<1x16x16x8xf32, #tpu.memory_space<vmem>>, %arg3: memref<72x8xbf16, #tpu.memory_space<vmem>>, %arg4: memref<1x8xf32, #tpu.memory_space<vmem>>, %arg5: memref<8x8xf32, #tpu.memory_space<vmem>>, %arg6: memref<1x8xf32, #tpu.memory_space<vmem>>, %arg7: memref<1x8xf32, #tpu.memory_space<vmem>>, %arg8: memref<8x8xf32, #tpu.memory_space<vmem>>, %arg9: memref<1x8xf32, #tpu.memory_space<vmem>>, %arg10: memref<8x8xf32, #tpu.memory_space<vmem>>, %arg11: memref<1x8xf32, #tpu.memory_space<vmem>>, %arg12: memref<1x16x16x8xf32, #tpu.memory_space<vmem>>) attributes {dimension_semantics = [#tpu.dimension_semantics<parallel>], iteration_bounds = array<i64: 2>, scalar_prefetch = 0 : i64, scratch_operands = 0 : i64, tpu.core_type = #tpu.core_type<tc>, window_params = [{transform_indices = @transform_0, window_bounds = array<i64: 1, 256, 72>}, {transform_indices = @transform_1, window_bounds = array<i64: 1, 16, 16, 8>}, {pipeline_mode = #tpu.pipeline_mode<synchronous>, transform_indices = @transform_2, window_bounds = array<i64: 72, 8>}, {pipeline_mode = #tpu.pipeline_mode<synchronous>, transform_indices = @transform_3, window_bounds = array<i64: 1, 8>}, {pipeline_mode = #tpu.pipeline_mode<synchronous>, transform_indices = @transform_4, window_bounds = array<i64: 8, 8>}, {pipeline_mode = #tpu.pipeline_mode<synchronous>, transform_indices = @transform_5, window_bounds = array<i64: 1, 8>}, {pipeline_mode = #tpu.pipeline_mode<synchronous>, transform_indices = @transform_6, window_bounds = array<i64: 1, 8>}, {pipeline_mode = #tpu.pipeline_mode<synchronous>, transform_indices = @transform_7, window_bounds = array<i64: 8, 8>}, {pipeline_mode = #tpu.pipeline_mode<synchronous>, transform_indices = @transform_8, window_bounds = array<i64: 1, 8>}, {pipeline_mode = #tpu.pipeline_mode<synchronous>, transform_indices = @transform_9, window_bounds = array<i64: 8, 8>}, {pipeline_mode = #tpu.pipeline_mode<synchronous>, transform_indices = @transform_10, window_bounds = array<i64: 1, 8>}, {transform_indices = @transform_11, window_bounds = array<i64: 1, 16, 16, 8>}]} {
    %c0 = arith.constant 0 : index
    %c0_0 = arith.constant 0 : index
    %c0_1 = arith.constant 0 : index
    %0 = vector.load %arg1[%c0, %c0_0, %c0_1] : memref<1x256x72xbf16, #tpu.memory_space<vmem>>, vector<1x256x72xbf16>
    %1 = vector.shape_cast %0 : vector<1x256x72xbf16> to vector<256x72xbf16>
    %c0_2 = arith.constant 0 : index
    %c0_3 = arith.constant 0 : index
    %2 = vector.load %arg3[%c0_2, %c0_3] : memref<72x8xbf16, #tpu.memory_space<vmem>>, vector<72x8xbf16>
    %cst = arith.constant dense<0.000000e+00> : vector<256x8xf32>
    %3 = tpu.matmul %1, %2, %cst {dimension_numbers = #tpu.dot_dimension_numbers<[1], [0], [0], [1], [0, 0, 1, 1], [], []>} : vector<256x72xbf16>, vector<72x8xbf16>, vector<256x8xf32> -> vector<256x8xf32>
    %c0_4 = arith.constant 0 : index
    %c0_5 = arith.constant 0 : index
    %4 = vector.load %arg4[%c0_4, %c0_5] : memref<1x8xf32, #tpu.memory_space<vmem>>, vector<1x8xf32>
    %5 = vector.broadcast %4 : vector<1x8xf32> to vector<256x8xf32>
    %6 = arith.addf %3, %5 : vector<256x8xf32>
    %7 = vector.shape_cast %6 : vector<256x8xf32> to vector<16x16x8xf32>
    %cst_6 = arith.constant dense<0.000000e+00> : vector<16x8xf32>
    %8 = vector.multi_reduction <add>, %7, %cst_6 [1] : vector<16x16x8xf32> to vector<16x8xf32>
    %cst_7 = arith.constant 1.600000e+01 : f32
    %9 = vector.broadcast %cst_7 : f32 to vector<16x8xf32>
    %10 = arith.divf %8, %9 : vector<16x8xf32>
    %cst_8 = arith.constant dense<0.000000e+00> : vector<16x8xf32>
    %11 = vector.multi_reduction <add>, %7, %cst_8 [0] : vector<16x16x8xf32> to vector<16x8xf32>
    %cst_9 = arith.constant 1.600000e+01 : f32
    %12 = vector.broadcast %cst_9 : f32 to vector<16x8xf32>
    %13 = arith.divf %11, %12 : vector<16x8xf32>
    %c0_10 = arith.constant 0 : index
    %c0_11 = arith.constant 0 : index
    %14 = vector.load %arg5[%c0_10, %c0_11] : memref<8x8xf32, #tpu.memory_space<vmem>>, vector<8x8xf32>
    %cst_12 = arith.constant dense<0.000000e+00> : vector<16x8xf32>
    %15 = tpu.matmul %10, %14, %cst_12 {dimension_numbers = #tpu.dot_dimension_numbers<[1], [0], [0], [1], [0, 0, 1, 1], [], []>} : vector<16x8xf32>, vector<8x8xf32>, vector<16x8xf32> -> vector<16x8xf32>
    %c0_13 = arith.constant 0 : index
    %c0_14 = arith.constant 0 : index
    %16 = vector.load %arg6[%c0_13, %c0_14] : memref<1x8xf32, #tpu.memory_space<vmem>>, vector<1x8xf32>
    %17 = vector.broadcast %16 : vector<1x8xf32> to vector<16x8xf32>
    %18 = arith.mulf %15, %17 : vector<16x8xf32>
    %c0_15 = arith.constant 0 : index
    %c0_16 = arith.constant 0 : index
    %19 = vector.load %arg7[%c0_15, %c0_16] : memref<1x8xf32, #tpu.memory_space<vmem>>, vector<1x8xf32>
    %20 = vector.broadcast %19 : vector<1x8xf32> to vector<16x8xf32>
    %21 = arith.addf %18, %20 : vector<16x8xf32>
    %cst_17 = arith.constant 0.000000e+00 : f32
    %22 = vector.broadcast %cst_17 : f32 to vector<16x8xf32>
    %23 = arith.maximumf %21, %22 : vector<16x8xf32>
    %c0_18 = arith.constant 0 : index
    %c0_19 = arith.constant 0 : index
    %24 = vector.load %arg5[%c0_18, %c0_19] : memref<8x8xf32, #tpu.memory_space<vmem>>, vector<8x8xf32>
    %cst_20 = arith.constant dense<0.000000e+00> : vector<16x8xf32>
    %25 = tpu.matmul %13, %24, %cst_20 {dimension_numbers = #tpu.dot_dimension_numbers<[1], [0], [0], [1], [0, 0, 1, 1], [], []>} : vector<16x8xf32>, vector<8x8xf32>, vector<16x8xf32> -> vector<16x8xf32>
    %c0_21 = arith.constant 0 : index
    %c0_22 = arith.constant 0 : index
    %26 = vector.load %arg6[%c0_21, %c0_22] : memref<1x8xf32, #tpu.memory_space<vmem>>, vector<1x8xf32>
    %27 = vector.broadcast %26 : vector<1x8xf32> to vector<16x8xf32>
    %28 = arith.mulf %25, %27 : vector<16x8xf32>
    %c0_23 = arith.constant 0 : index
    %c0_24 = arith.constant 0 : index
    %29 = vector.load %arg7[%c0_23, %c0_24] : memref<1x8xf32, #tpu.memory_space<vmem>>, vector<1x8xf32>
    %30 = vector.broadcast %29 : vector<1x8xf32> to vector<16x8xf32>
    %31 = arith.addf %28, %30 : vector<16x8xf32>
    %cst_25 = arith.constant 0.000000e+00 : f32
    %32 = vector.broadcast %cst_25 : f32 to vector<16x8xf32>
    %33 = arith.maximumf %31, %32 : vector<16x8xf32>
    %c0_26 = arith.constant 0 : index
    %c0_27 = arith.constant 0 : index
    %34 = vector.load %arg8[%c0_26, %c0_27] : memref<8x8xf32, #tpu.memory_space<vmem>>, vector<8x8xf32>
    %cst_28 = arith.constant dense<0.000000e+00> : vector<16x8xf32>
    %35 = tpu.matmul %23, %34, %cst_28 {dimension_numbers = #tpu.dot_dimension_numbers<[1], [0], [0], [1], [0, 0, 1, 1], [], []>} : vector<16x8xf32>, vector<8x8xf32>, vector<16x8xf32> -> vector<16x8xf32>
    %c0_29 = arith.constant 0 : index
    %c0_30 = arith.constant 0 : index
    %36 = vector.load %arg9[%c0_29, %c0_30] : memref<1x8xf32, #tpu.memory_space<vmem>>, vector<1x8xf32>
    %37 = vector.broadcast %36 : vector<1x8xf32> to vector<16x8xf32>
    %38 = arith.addf %35, %37 : vector<16x8xf32>
    %39 = arith.negf %38 : vector<16x8xf32>
    %40 = math.exp %39 : vector<16x8xf32>
    %cst_31 = arith.constant 1.000000e+00 : f32
    %41 = vector.broadcast %cst_31 : f32 to vector<16x8xf32>
    %42 = arith.addf %41, %40 : vector<16x8xf32>
    %43 = arith.divf %41, %42 : vector<16x8xf32>
    %c0_32 = arith.constant 0 : index
    %c0_33 = arith.constant 0 : index
    %44 = vector.load %arg10[%c0_32, %c0_33] : memref<8x8xf32, #tpu.memory_space<vmem>>, vector<8x8xf32>
    %cst_34 = arith.constant dense<0.000000e+00> : vector<16x8xf32>
    %45 = tpu.matmul %33, %44, %cst_34 {dimension_numbers = #tpu.dot_dimension_numbers<[1], [0], [0], [1], [0, 0, 1, 1], [], []>} : vector<16x8xf32>, vector<8x8xf32>, vector<16x8xf32> -> vector<16x8xf32>
    %c0_35 = arith.constant 0 : index
    %c0_36 = arith.constant 0 : index
    %46 = vector.load %arg11[%c0_35, %c0_36] : memref<1x8xf32, #tpu.memory_space<vmem>>, vector<1x8xf32>
    %47 = vector.broadcast %46 : vector<1x8xf32> to vector<16x8xf32>
    %48 = arith.addf %45, %47 : vector<16x8xf32>
    %49 = arith.negf %48 : vector<16x8xf32>
    %50 = math.exp %49 : vector<16x8xf32>
    %cst_37 = arith.constant 1.000000e+00 : f32
    %51 = vector.broadcast %cst_37 : f32 to vector<16x8xf32>
    %52 = arith.addf %51, %50 : vector<16x8xf32>
    %53 = arith.divf %51, %52 : vector<16x8xf32>
    %54 = vector.shape_cast %43 : vector<16x8xf32> to vector<16x1x8xf32>
    %55 = vector.broadcast %54 : vector<16x1x8xf32> to vector<16x16x8xf32>
    %56 = arith.mulf %7, %55 : vector<16x16x8xf32>
    %57 = vector.shape_cast %53 : vector<16x8xf32> to vector<1x16x8xf32>
    %58 = vector.broadcast %57 : vector<1x16x8xf32> to vector<16x16x8xf32>
    %59 = arith.mulf %56, %58 : vector<16x16x8xf32>
    %c0_38 = arith.constant 0 : index
    %c0_39 = arith.constant 0 : index
    %c0_40 = arith.constant 0 : index
    %c0_41 = arith.constant 0 : index
    %60 = vector.load %arg2[%c0_38, %c0_39, %c0_40, %c0_41] : memref<1x16x16x8xf32, #tpu.memory_space<vmem>>, vector<1x16x16x8xf32>
    %61 = vector.shape_cast %60 : vector<1x16x16x8xf32> to vector<16x16x8xf32>
    %62 = arith.addf %59, %61 : vector<16x16x8xf32>
    %c0_42 = arith.constant 0 : index
    %c0_43 = arith.constant 0 : index
    %c0_44 = arith.constant 0 : index
    %c0_45 = arith.constant 0 : index
    %63 = vector.load %arg12[%c0_42, %c0_43, %c0_44, %c0_45] : memref<1x16x16x8xf32, #tpu.memory_space<vmem>>, vector<1x16x16x8xf32>
    %64 = vector.shape_cast %63 : vector<1x16x16x8xf32> to vector<16x16x8xf32>
    %65 = vector.shape_cast %62 : vector<16x16x8xf32> to vector<1x16x16x8xf32>
    tpu.vector_store %arg12[%c0_42, %c0_43, %c0_44, %c0_45], %65 {strides = array<i32>} : memref<1x16x16x8xf32, #tpu.memory_space<vmem>>, vector<1x16x16x8xf32>,
    return
  }
  func.func @transform_0(%arg0: i32) -> (i32, i32, i32) {
    %c0_i32 = arith.constant 0 : i32
    %c0_i32_0 = arith.constant 0 : i32
    %c0_i32_1 = arith.constant 0 : i32
    return %arg0, %c0_i32, %c0_i32_0 : i32, i32, i32
  }
  func.func @transform_1(%arg0: i32) -> (i32, i32, i32, i32) {
    %c0_i32 = arith.constant 0 : i32
    %c0_i32_0 = arith.constant 0 : i32
    %c0_i32_1 = arith.constant 0 : i32
    %c0_i32_2 = arith.constant 0 : i32
    return %arg0, %c0_i32, %c0_i32_0, %c0_i32_1 : i32, i32, i32, i32
  }
  func.func @transform_2(%arg0: i32) -> (i32, i32) {
    %c0_i32 = arith.constant 0 : i32
    %c0_i32_0 = arith.constant 0 : i32
    %c0_i32_1 = arith.constant 0 : i32
    return %c0_i32, %c0_i32_0 : i32, i32
  }
  func.func @transform_3(%arg0: i32) -> (i32, i32) {
    %c0_i32 = arith.constant 0 : i32
    %c0_i32_0 = arith.constant 0 : i32
    %c0_i32_1 = arith.constant 0 : i32
    return %c0_i32, %c0_i32_0 : i32, i32
  }
  func.func @transform_4(%arg0: i32) -> (i32, i32) {
    %c0_i32 = arith.constant 0 : i32
    %c0_i32_0 = arith.constant 0 : i32
    %c0_i32_1 = arith.constant 0 : i32
    return %c0_i32, %c0_i32_0 : i32, i32
  }
  func.func @transform_5(%arg0: i32) -> (i32, i32) {
    %c0_i32 = arith.constant 0 : i32
    %c0_i32_0 = arith.constant 0 : i32
    %c0_i32_1 = arith.constant 0 : i32
    return %c0_i32, %c0_i32_0 : i32, i32
  }
  func.func @transform_6(%arg0: i32) -> (i32, i32) {
    %c0_i32 = arith.constant 0 : i32
    %c0_i32_0 = arith.constant 0 : i32
    %c0_i32_1 = arith.constant 0 : i32
    return %c0_i32, %c0_i32_0 : i32, i32
  }
  func.func @transform_7(%arg0: i32) -> (i32, i32) {
    %c0_i32 = arith.constant 0 : i32
    %c0_i32_0 = arith.constant 0 : i32
    %c0_i32_1 = arith.constant 0 : i32
    return %c0_i32, %c0_i32_0 : i32, i32
  }
  func.func @transform_8(%arg0: i32) -> (i32, i32) {
    %c0_i32 = arith.constant 0 : i32
    %c0_i32_0 = arith.constant 0 : i32
    %c0_i32_1 = arith.constant 0 : i32
    return %c0_i32, %c0_i32_0 : i32, i32
  }
  func.func @transform_9(%arg0: i32) -> (i32, i32) {
    %c0_i32 = arith.constant 0 : i32
    %c0_i32_0 = arith.constant 0 : i32
    %c0_i32_1 = arith.constant 0 : i32
    return %c0_i32, %c0_i32_0 : i32, i32
  }
  func.func @transform_10(%arg0: i32) -> (i32, i32) {
    %c0_i32 = arith.constant 0 : i32
    %c0_i32_0 = arith.constant 0 : i32
    %c0_i32_1 = arith.constant 0 : i32
    return %c0_i32, %c0_i32_0 : i32, i32
  }
  func.func @transform_11(%arg0: i32) -> (i32, i32, i32, i32) {
    %c0_i32 = arith.constant 0 : i32
    %c0_i32_0 = arith.constant 0 : i32
    %c0_i32_1 = arith.constant 0 : i32
    %c0_i32_2 = arith.constant 0 : i32
    return %arg0, %c0_i32, %c0_i32_0, %c0_i32_1 : i32, i32, i32, i32
  }
}

module attributes {stable_mosaic.version = 11 : i64} {
  func.func @_matmul_affine_kernel(%arg0: i32, %arg1: memref<256x4xbf16, #tpu.memory_space<vmem>>, %arg2: memref<4x128xbf16, #tpu.memory_space<vmem>>, %arg3: memref<1x128xf32, #tpu.memory_space<vmem>>, %arg4: memref<1x128xf32, #tpu.memory_space<vmem>>, %arg5: memref<256x128xf32, #tpu.memory_space<vmem>>) attributes {dimension_semantics = [#tpu.dimension_semantics<parallel>], iteration_bounds = array<i64: 2>, scalar_prefetch = 0 : i64, scratch_operands = 0 : i64, tpu.core_type = #tpu.core_type<tc>, window_params = [{transform_indices = @transform_0, window_bounds = array<i64: 256, 4>}, {pipeline_mode = #tpu.pipeline_mode<synchronous>, transform_indices = @transform_1, window_bounds = array<i64: 4, 128>}, {pipeline_mode = #tpu.pipeline_mode<synchronous>, transform_indices = @transform_2, window_bounds = array<i64: 1, 128>}, {pipeline_mode = #tpu.pipeline_mode<synchronous>, transform_indices = @transform_3, window_bounds = array<i64: 1, 128>}, {transform_indices = @transform_4, window_bounds = array<i64: 256, 128>}]} {
    %c0 = arith.constant 0 : index
    %c0_0 = arith.constant 0 : index
    %0 = vector.load %arg1[%c0, %c0_0] : memref<256x4xbf16, #tpu.memory_space<vmem>>, vector<256x4xbf16>
    %c0_1 = arith.constant 0 : index
    %c0_2 = arith.constant 0 : index
    %1 = vector.load %arg2[%c0_1, %c0_2] : memref<4x128xbf16, #tpu.memory_space<vmem>>, vector<4x128xbf16>
    %cst = arith.constant dense<0.000000e+00> : vector<256x128xf32>
    %2 = tpu.matmul %0, %1, %cst {dimension_numbers = #tpu.dot_dimension_numbers<[1], [0], [0], [1], [0, 0, 1, 1], [], []>} : vector<256x4xbf16>, vector<4x128xbf16>, vector<256x128xf32> -> vector<256x128xf32>
    %c0_3 = arith.constant 0 : index
    %c0_4 = arith.constant 0 : index
    %3 = vector.load %arg3[%c0_3, %c0_4] : memref<1x128xf32, #tpu.memory_space<vmem>>, vector<1x128xf32>
    %4 = vector.broadcast %3 : vector<1x128xf32> to vector<256x128xf32>
    %5 = arith.mulf %2, %4 : vector<256x128xf32>
    %c0_5 = arith.constant 0 : index
    %c0_6 = arith.constant 0 : index
    %6 = vector.load %arg4[%c0_5, %c0_6] : memref<1x128xf32, #tpu.memory_space<vmem>>, vector<1x128xf32>
    %7 = vector.broadcast %6 : vector<1x128xf32> to vector<256x128xf32>
    %8 = arith.addf %5, %7 : vector<256x128xf32>
    %c0_7 = arith.constant 0 : index
    %c0_8 = arith.constant 0 : index
    %9 = vector.load %arg5[%c0_7, %c0_8] : memref<256x128xf32, #tpu.memory_space<vmem>>, vector<256x128xf32>
    tpu.vector_store %arg5[%c0_7, %c0_8], %8 {strides = array<i32>} : memref<256x128xf32, #tpu.memory_space<vmem>>, vector<256x128xf32>,
    return
  }
  func.func @transform_0(%arg0: i32) -> (i32, i32) {
    %c0_i32 = arith.constant 0 : i32
    %c0_i32_0 = arith.constant 0 : i32
    return %arg0, %c0_i32 : i32, i32
  }
  func.func @transform_1(%arg0: i32) -> (i32, i32) {
    %c0_i32 = arith.constant 0 : i32
    %c0_i32_0 = arith.constant 0 : i32
    %c0_i32_1 = arith.constant 0 : i32
    return %c0_i32, %c0_i32_0 : i32, i32
  }
  func.func @transform_2(%arg0: i32) -> (i32, i32) {
    %c0_i32 = arith.constant 0 : i32
    %c0_i32_0 = arith.constant 0 : i32
    %c0_i32_1 = arith.constant 0 : i32
    return %c0_i32, %c0_i32_0 : i32, i32
  }
  func.func @transform_3(%arg0: i32) -> (i32, i32) {
    %c0_i32 = arith.constant 0 : i32
    %c0_i32_0 = arith.constant 0 : i32
    %c0_i32_1 = arith.constant 0 : i32
    return %c0_i32, %c0_i32_0 : i32, i32
  }
  func.func @transform_4(%arg0: i32) -> (i32, i32) {
    %c0_i32 = arith.constant 0 : i32
    %c0_i32_0 = arith.constant 0 : i32
    return %arg0, %c0_i32 : i32, i32
  }
}

module attributes {stable_mosaic.version = 11 : i64} {
  func.func @_matmul_affine_kernel(%arg0: i32, %arg1: memref<256x72xbf16, #tpu.memory_space<vmem>>, %arg2: memref<72x128xbf16, #tpu.memory_space<vmem>>, %arg3: memref<1x128xf32, #tpu.memory_space<vmem>>, %arg4: memref<1x128xf32, #tpu.memory_space<vmem>>, %arg5: memref<256x128xf32, #tpu.memory_space<vmem>>) attributes {dimension_semantics = [#tpu.dimension_semantics<parallel>], iteration_bounds = array<i64: 2>, scalar_prefetch = 0 : i64, scratch_operands = 0 : i64, tpu.core_type = #tpu.core_type<tc>, window_params = [{transform_indices = @transform_0, window_bounds = array<i64: 256, 72>}, {pipeline_mode = #tpu.pipeline_mode<synchronous>, transform_indices = @transform_1, window_bounds = array<i64: 72, 128>}, {pipeline_mode = #tpu.pipeline_mode<synchronous>, transform_indices = @transform_2, window_bounds = array<i64: 1, 128>}, {pipeline_mode = #tpu.pipeline_mode<synchronous>, transform_indices = @transform_3, window_bounds = array<i64: 1, 128>}, {transform_indices = @transform_4, window_bounds = array<i64: 256, 128>}]} {
    %c0 = arith.constant 0 : index
    %c0_0 = arith.constant 0 : index
    %0 = vector.load %arg1[%c0, %c0_0] : memref<256x72xbf16, #tpu.memory_space<vmem>>, vector<256x72xbf16>
    %c0_1 = arith.constant 0 : index
    %c0_2 = arith.constant 0 : index
    %1 = vector.load %arg2[%c0_1, %c0_2] : memref<72x128xbf16, #tpu.memory_space<vmem>>, vector<72x128xbf16>
    %cst = arith.constant dense<0.000000e+00> : vector<256x128xf32>
    %2 = tpu.matmul %0, %1, %cst {dimension_numbers = #tpu.dot_dimension_numbers<[1], [0], [0], [1], [0, 0, 1, 1], [], []>} : vector<256x72xbf16>, vector<72x128xbf16>, vector<256x128xf32> -> vector<256x128xf32>
    %c0_3 = arith.constant 0 : index
    %c0_4 = arith.constant 0 : index
    %3 = vector.load %arg3[%c0_3, %c0_4] : memref<1x128xf32, #tpu.memory_space<vmem>>, vector<1x128xf32>
    %4 = vector.broadcast %3 : vector<1x128xf32> to vector<256x128xf32>
    %5 = arith.mulf %2, %4 : vector<256x128xf32>
    %c0_5 = arith.constant 0 : index
    %c0_6 = arith.constant 0 : index
    %6 = vector.load %arg4[%c0_5, %c0_6] : memref<1x128xf32, #tpu.memory_space<vmem>>, vector<1x128xf32>
    %7 = vector.broadcast %6 : vector<1x128xf32> to vector<256x128xf32>
    %8 = arith.addf %5, %7 : vector<256x128xf32>
    %cst_7 = arith.constant 0.000000e+00 : f32
    %9 = vector.broadcast %cst_7 : f32 to vector<256x128xf32>
    %10 = arith.maximumf %8, %9 : vector<256x128xf32>
    %c0_8 = arith.constant 0 : index
    %c0_9 = arith.constant 0 : index
    %11 = vector.load %arg5[%c0_8, %c0_9] : memref<256x128xf32, #tpu.memory_space<vmem>>, vector<256x128xf32>
    tpu.vector_store %arg5[%c0_8, %c0_9], %10 {strides = array<i32>} : memref<256x128xf32, #tpu.memory_space<vmem>>, vector<256x128xf32>,
    return
  }
  func.func @transform_0(%arg0: i32) -> (i32, i32) {
    %c0_i32 = arith.constant 0 : i32
    %c0_i32_0 = arith.constant 0 : i32
    return %arg0, %c0_i32 : i32, i32
  }
  func.func @transform_1(%arg0: i32) -> (i32, i32) {
    %c0_i32 = arith.constant 0 : i32
    %c0_i32_0 = arith.constant 0 : i32
    %c0_i32_1 = arith.constant 0 : i32
    return %c0_i32, %c0_i32_0 : i32, i32
  }
  func.func @transform_2(%arg0: i32) -> (i32, i32) {
    %c0_i32 = arith.constant 0 : i32
    %c0_i32_0 = arith.constant 0 : i32
    %c0_i32_1 = arith.constant 0 : i32
    return %c0_i32, %c0_i32_0 : i32, i32
  }
  func.func @transform_3(%arg0: i32) -> (i32, i32) {
    %c0_i32 = arith.constant 0 : i32
    %c0_i32_0 = arith.constant 0 : i32
    %c0_i32_1 = arith.constant 0 : i32
    return %c0_i32, %c0_i32_0 : i32, i32
  }
  func.func @transform_4(%arg0: i32) -> (i32, i32) {
    %c0_i32 = arith.constant 0 : i32
    %c0_i32_0 = arith.constant 0 : i32
    return %arg0, %c0_i32 : i32, i32
  }
}

</mosaic_0001>

<llo_original>
// kernel: edge_enhance_forward.6
$region0: #{edge_enhance_forward.6}
  #allocation0 [shape = 'u32[]', space=smem, size = 0x4, offset = 0x4, fixed_abs, tag = 'smem constant byte address 0x4 - core index']
  #allocation1 [shape = 'u32[72,128]{1,0:T(1,128)}', space=vmem, size = 0x9000, scoped, tag = 'internal scratch']
  %s0 = inlined_call_operand.vmem [shape: bf16[512,196], index: 0, kind: input, shape index: {}]
  %s1 = inlined_call_operand.vmem [shape: bf16[196,12], index: 1, kind: input, shape index: {}]
  %s2 = inlined_call_operand.vmem [shape: f32[1,12], index: 2, kind: input, shape index: {}]
  %s3 = inlined_call_operand.vmem [shape: f32[1,12], index: 3, kind: input, shape index: {}]
  %s4 = inlined_call_operand.vmem [shape: bf16[12,128], index: 4, kind: input, shape index: {}]
  %s5 = inlined_call_operand.vmem [shape: f32[512,128], index: 5, kind: output, shape index: {}]
  %s6 = sld [smem:[#allocation0]]
  $region53: #{edge_enhance_forward.6} parent=0
    _
  %s8 = ssub.s32 1, %s6
  %s9 = scalar_select 0, %s8, %s6
  loop: start=0, step=1, limit=4
  $region2: #{edge_enhance_forward.6} parent=0 // loop_pre_header
    _
  $region3: #{edge_enhance_forward.6} parent=0 // loop_header
    %s11 = sphi 0, %s15
    %p12 = scmp.ge.s32.totalorder %s11, 4
    %s21 = sphi 0, %s23
    %s24 = sphi 0, %s21
    %s25 = sphi 0, %s24
    %s41 = sphi 0, %s25
    %s45 = sphi 0, %s45
    %s47 = sphi 0, %s45
    %s48 = sphi 0, %s47
    %s62 = sphi 0, %s48
    %s66 = sphi 0, %s66
    %s68 = sphi 0, %s66
    %s69 = sphi 0, %s68
    %s83 = sphi 0, %s69
    %s87 = sphi 0, %s87
    %s89 = sphi 0, %s87
    %s90 = sphi 0, %s89
    %s104 = sphi 0, %s90
    %s108 = sphi 0, %s108
    %s110 = sphi 0, %s108
    %s111 = sphi 0, %s110
    %s125 = sphi 0, %s111
    %s131 = sphi 0, %s133
    %s134 = sphi 0, %s131
    %s135 = sphi 0, %s134
    %s151 = sphi 0, %s135
  $region4: #{edge_enhance_forward.6} parent=0 // loop_header_branch
    %14 = sbr.rel (%p12) target = $region8
  $region5: #{edge_enhance_forward.6} parent=0 // loop_body
    %s16 = ssub.s32 %s11, 1
    %s17 = ssub.s32 %s11, 2
    %s18 = sadd.s32 %s11, 1
    %s19 = ssub.s32 %s11, %s18
    %p20 = scmp.eq.s32.totalorder %s19, 0
    %s22 = sadd.s32 %s21, 1
    %s23 = scalar_select %p20, %s21, %s22
    %p26 = pneg %p20
    %p27 = scmp.eq.s32.totalorder %s11, 1
    %p28 = por %p26, %p27
    %p29 = scmp.ne.s32.totalorder %s21, %s24
    %p30 = scmp.eq.s32.totalorder %s11, 0
    %p31 = por %p29, %p30
    %p32 = scmp.ne.s32.totalorder %s21, %s24
    %p33 = scmp.eq.s32.totalorder %s16, 1
    %p34 = por %p32, %p33
    %p35 = scmp.ne.s32.totalorder %s24, %s25
    %p36 = scmp.eq.s32.totalorder %s16, 0
    %p37 = por %p35, %p36
    %p38 = scmp.ne.s32.totalorder %s24, %s25
    %p39 = scmp.eq.s32.totalorder %s17, 1
    %p40 = por %p38, %p39
    %p42 = scmp.ne.s32.totalorder %s25, %s41
    %p43 = scmp.eq.s32.totalorder %s17, 0
    %p44 = por %p42, %p43
    %s46 = sadd.s32 %s45, 1
    %p49 = scmp.eq.s32.totalorder %s11, 1
    %p50 = scmp.ne.s32.totalorder %s45, %s47
    %p51 = scmp.eq.s32.totalorder %s11, 0
    %p52 = por %p50, %p51
    %p53 = scmp.ne.s32.totalorder %s45, %s47
    %p54 = scmp.eq.s32.totalorder %s16, 1
    %p55 = por %p53, %p54
    %p56 = scmp.ne.s32.totalorder %s47, %s48
    %p57 = scmp.eq.s32.totalorder %s16, 0
    %p58 = por %p56, %p57
    %p59 = scmp.ne.s32.totalorder %s47, %s48
    %p60 = scmp.eq.s32.totalorder %s17, 1
    %p61 = por %p59, %p60
    %p63 = scmp.ne.s32.totalorder %s48, %s62
    %p64 = scmp.eq.s32.totalorder %s17, 0
    %p65 = por %p63, %p64
    %s67 = sadd.s32 %s66, 1
    %p70 = scmp.eq.s32.totalorder %s11, 1
    %p71 = scmp.ne.s32.totalorder %s66, %s68
    %p72 = scmp.eq.s32.totalorder %s11, 0
    %p73 = por %p71, %p72
    %p74 = scmp.ne.s32.totalorder %s66, %s68
    %p75 = scmp.eq.s32.totalorder %s16, 1
    %p76 = por %p74, %p75
    %p77 = scmp.ne.s32.totalorder %s68, %s69
    %p78 = scmp.eq.s32.totalorder %s16, 0
    %p79 = por %p77, %p78
    %p80 = scmp.ne.s32.totalorder %s68, %s69
    %p81 = scmp.eq.s32.totalorder %s17, 1
    %p82 = por %p80, %p81
    %p84 = scmp.ne.s32.totalorder %s69, %s83
    %p85 = scmp.eq.s32.totalorder %s17, 0
    %p86 = por %p84, %p85
    %s88 = sadd.s32 %s87, 1
    %p91 = scmp.eq.s32.totalorder %s11, 1
    %p92 = scmp.ne.s32.totalorder %s87, %s89
    %p93 = scmp.eq.s32.totalorder %s11, 0
    %p94 = por %p92, %p93
    %p95 = scmp.ne.s32.totalorder %s87, %s89
    %p96 = scmp.eq.s32.totalorder %s16, 1
    %p97 = por %p95, %p96
    %p98 = scmp.ne.s32.totalorder %s89, %s90
    %p99 = scmp.eq.s32.totalorder %s16, 0
    %p100 = por %p98, %p99
    %p101 = scmp.ne.s32.totalorder %s89, %s90
    %p102 = scmp.eq.s32.totalorder %s17, 1
    %p103 = por %p101, %p102
    %p105 = scmp.ne.s32.totalorder %s90, %s104
    %p106 = scmp.eq.s32.totalorder %s17, 0
    %p107 = por %p105, %p106
    %s109 = sadd.s32 %s108, 1
    %p112 = scmp.eq.s32.totalorder %s11, 1
    %p113 = scmp.ne.s32.totalorder %s108, %s110
    %p114 = scmp.eq.s32.totalorder %s11, 0
    %p115 = por %p113, %p114
    %p116 = scmp.ne.s32.totalorder %s108, %s110
    %p117 = scmp.eq.s32.totalorder %s16, 1
    %p118 = por %p116, %p117
    %p119 = scmp.ne.s32.totalorder %s110, %s111
    %p120 = scmp.eq.s32.totalorder %s16, 0
    %p121 = por %p119, %p120
    %p122 = scmp.ne.s32.totalorder %s110, %s111
    %p123 = scmp.eq.s32.totalorder %s17, 1
    %p124 = por %p122, %p123
    %p126 = scmp.ne.s32.totalorder %s111, %s125
    %p127 = scmp.eq.s32.totalorder %s17, 0
    %p128 = por %p126, %p127
    %s129 = ssub.s32 %s11, %s18
    %p130 = scmp.eq.s32.totalorder %s129, 0
    %s132 = sadd.s32 %s131, 1
    %s133 = scalar_select %p130, %s131, %s132
    %p136 = pneg %p130
    %p137 = scmp.eq.s32.totalorder %s11, 1
    %p138 = por %p136, %p137
    %p139 = scmp.ne.s32.totalorder %s131, %s134
    %p140 = scmp.eq.s32.totalorder %s11, 0
    %p141 = por %p139, %p140
    %p142 = scmp.ne.s32.totalorder %s131, %s134
    %p143 = scmp.eq.s32.totalorder %s16, 1
    %p144 = por %p142, %p143
    %p145 = scmp.ne.s32.totalorder %s134, %s135
    %p146 = scmp.eq.s32.totalorder %s16, 0
    %p147 = por %p145, %p146
    %p148 = scmp.ne.s32.totalorder %s134, %s135
    %p149 = scmp.eq.s32.totalorder %s17, 1
    %p150 = por %p148, %p149
    %p152 = scmp.ne.s32.totalorder %s135, %s151
    %p153 = scmp.eq.s32.totalorder %s17, 0
    %p154 = por %p152, %p153
    %p155 = scmp.le.s32.totalorder 1, %s11
    %p156 = scmp.lt.s32.totalorder %s11, 3
    %p157 = pnand %p155, %p156
    %p158 = pneg %p157
    // Predicated region
    $region9: #{edge_enhance_forward.6} parent=5 // pred_check
      _
    $region10: #{edge_enhance_forward.6} parent=5 // pred_check_branch
      %160 = sbr.rel (%p157) target = $region12
    $region11: #{edge_enhance_forward.6} parent=5 // pred_region
      %s161 = ssub.s32 %s11, 1
      // Predicated region
      $region13: #{edge_enhance_forward.6} parent=11 // pred_check
        %p162 = pneg %p58
      $region14: #{edge_enhance_forward.6} parent=11 // pred_check_branch
        %164 = sbr.rel (%p162) target = $region16
      $region15: #{edge_enhance_forward.6} parent=11 // pred_region
        _
      $region16: #{edge_enhance_forward.6} parent=11 // pred_fallthru
        _
      // Predicated region
      $region17: #{edge_enhance_forward.6} parent=11 // pred_check
        %p165 = pneg %p79
      $region18: #{edge_enhance_forward.6} parent=11 // pred_check_branch
        %167 = sbr.rel (%p165) target = $region20
      $region19: #{edge_enhance_forward.6} parent=11 // pred_region
        _
      $region20: #{edge_enhance_forward.6} parent=11 // pred_fallthru
        _
      // Predicated region
      $region21: #{edge_enhance_forward.6} parent=11 // pred_check
        %p168 = pneg %p100
      $region22: #{edge_enhance_forward.6} parent=11 // pred_check_branch
        %170 = sbr.rel (%p168) target = $region24
      $region23: #{edge_enhance_forward.6} parent=11 // pred_region
        _
      $region24: #{edge_enhance_forward.6} parent=11 // pred_fallthru
        _
      // Predicated region
      $region25: #{edge_enhance_forward.6} parent=11 // pred_check
        %p171 = pneg %p121
      $region26: #{edge_enhance_forward.6} parent=11 // pred_check_branch
        %173 = sbr.rel (%p171) target = $region28
      $region27: #{edge_enhance_forward.6} parent=11 // pred_region
        _
      $region28: #{edge_enhance_forward.6} parent=11 // pred_fallthru
        _
    $region12: #{edge_enhance_forward.6} parent=5 // pred_fallthru
      _
    %p174 = scmp.lt.s32.totalorder %s11, 2
    // Predicated region
    $region29: #{edge_enhance_forward.6} parent=5 // pred_check
      %p175 = pneg %p174
    $region30: #{edge_enhance_forward.6} parent=5 // pred_check_branch
      %177 = sbr.rel (%p175) target = $region32
    $region31: #{edge_enhance_forward.6} parent=5 // pred_region
      // Predicated region
      $region33: #{edge_enhance_forward.6} parent=31 // pred_check
        %p178 = pneg %p31
      $region34: #{edge_enhance_forward.6} parent=31 // pred_check_branch
        %180 = sbr.rel (%p178) target = $region36
      $region35: #{edge_enhance_forward.6} parent=31 // pred_region
        %s181 = smul.u32 32, %s11
        %p182 = scmp.lt.s32.totalorder %s181, 63
        %s183 = scalar_select %p182, %s181, 63
        %s184 = smul.addr %s183, 2
        %s185 = smul.addr %s184, 4
        %s186 = scalar_lea.vmem %s0, %s185
        %s187 = smul.u32 32, %s11
      $region36: #{edge_enhance_forward.6} parent=31 // pred_fallthru
        _
    $region32: #{edge_enhance_forward.6} parent=5 // pred_fallthru
      _
    %p188 = scmp.le.s32.totalorder 1, %s11
    %p189 = scmp.lt.s32.totalorder %s11, 3
    %p190 = pnand %p188, %p189
    %p191 = pneg %p190
    // Predicated region
    $region37: #{edge_enhance_forward.6} parent=5 // pred_check
      _
    $region38: #{edge_enhance_forward.6} parent=5 // pred_check_branch
      %193 = sbr.rel (%p190) target = $region40
    $region39: #{edge_enhance_forward.6} parent=5 // pred_region
      %s194 = ssub.s32 %s11, 1
      %s195 = smul.u32 32, %s16
      %p196 = scmp.lt.s32.totalorder %s195, 63
      %s197 = scalar_select %p196, %s195, 63
      %s198 = smul.addr %s197, 2
      %s199 = smul.addr %s198, 4
      %s200 = scalar_lea.vmem %s0, %s199
      %p201 = pneg %p37
      %p202 = pneg %p34
      %p203 = pneg %p58
      %p204 = pneg %p55
      %p205 = pneg %p79
      %p206 = pneg %p76
      %p207 = pneg %p100
      %p208 = pneg %p97
      %p209 = pneg %p121
      %p210 = pneg %p118
      %p211 = pneg %p147
      %p212 = pneg %p144
      %s213 = smul.u32 32, %s16
      %p214 = scmp.lt.s32.totalorder %s213, 63
      %s215 = scalar_select %p214, %s213, 63
      %s216 = smul.addr %s215, 8
      %s217 = scalar_lea.vmem %s5, %s216
      %s218 = smul.u32 32, %s16
      %p219 = scmp.lt.s32.totalorder %s218, 63
      %s220 = scalar_select %p219, %s218, 63
      %s221 = smul.addr %s220, 2
      %s222 = smul.addr %s221, 4
      %s223 = scalar_lea.vmem %s0, %s222
      %s224 = smul.u32 32, %s16
      %s225 = smul.u32 32, %s16
      %p226 = scmp.lt.s32.totalorder %s225, 63
      %s227 = scalar_select %p226, %s225, 63
      %s228 = smul.addr %s227, 8
      %s229 = scalar_lea.vmem %s5, %s228
      %s230 = smul.u32 32, %s16
      %v232 = vld [vmem:[%s223] sm:$0xff]
      %v233 = vld [vmem:[%s223 + $0x8] sm:$0xff]
      %v234 = vld [vmem:[%s223 + $0x10] sm:$0xff]
      %v235 = vld [vmem:[%s223 + $0x18] sm:$0xff]
      %v236 = vld [vmem:[%s223 + $0x20] sm:$0xff]
      %v237 = vld [vmem:[%s223 + $0x28] sm:$0xff]
      %v238 = vld [vmem:[%s223 + $0x30] sm:$0xff]
      %v239 = vld [vmem:[%s223 + $0x38] sm:$0xff]
      %v240 = vld [vmem:[%s223 + $0x40] sm:$0xff]
      %v241 = vld [vmem:[%s223 + $0x48] sm:$0xff]
      %v242 = vld [vmem:[%s223 + $0x50] sm:$0xff]
      %v243 = vld [vmem:[%s223 + $0x58] sm:$0xff]
      %v244 = vld [vmem:[%s223 + $0x60] sm:$0xff]
      %v245 = vld [vmem:[%s223 + $0x68] sm:$0xff]
      %v246 = vld [vmem:[%s223 + $0x70] sm:$0xff]
      %v247 = vld [vmem:[%s223 + $0x78] sm:$0xff]
      %v248 = vld [vmem:[%s223 + $0x80] sm:$0xff]
      %v249 = vld [vmem:[%s223 + $0x88] sm:$0xff]
      %v250 = vld [vmem:[%s223 + $0x90] sm:$0xff]
      %v251 = vld [vmem:[%s223 + $0x98] sm:$0xff]
      %v252 = vld [vmem:[%s223 + $0xa0] sm:$0xff]
      %v253 = vld [vmem:[%s223 + $0xa8] sm:$0xff]
      %v254 = vld [vmem:[%s223 + $0xb0] sm:$0xff]
      %v255 = vld [vmem:[%s223 + $0xb8] sm:$0xff]
      %v256 = vld [vmem:[%s223 + $0xc0] sm:$0xff]
      %v257 = vld [vmem:[%s223 + $0xc8] sm:$0xff]
      %v258 = vld [vmem:[%s223 + $0xd0] sm:$0xff]
      %v259 = vld [vmem:[%s223 + $0xd8] sm:$0xff]
      %v260 = vld [vmem:[%s223 + $0xe0] sm:$0xff]
      %v261 = vld [vmem:[%s223 + $0xe8] sm:$0xff]
      %v262 = vld [vmem:[%s223 + $0xf0] sm:$0xff]
      %v263 = vld [vmem:[%s223 + $0xf8] sm:$0xff]
      %v264 = vld [vmem:[%s1] sm:$0xf]
      %v265 = vld [vmem:[%s1 + $0x4] sm:$0xf]
      %v266 = vld [vmem:[%s1 + $0x8] sm:$0xf]
      %v267 = vld [vmem:[%s1 + $0xc] sm:$0xf]
      %v268 = vld [vmem:[%s1 + $0x10] sm:$0xf]
      %v269 = vld [vmem:[%s1 + $0x14] sm:$0xf]
      %v270 = vld [vmem:[%s1 + $0x18] sm:$0xf]
      %v271 = vld [vmem:[%s1 + $0x1c] sm:$0xf]
      %v272 = vld [vmem:[%s1 + $0x20] sm:$0xf]
      %v273 = vld [vmem:[%s1 + $0x24] sm:$0xf]
      %v274 = vld [vmem:[%s1 + $0x28] sm:$0xf]
      %v275 = vld [vmem:[%s1 + $0x2c] sm:$0xf]
      %v276 = vld [vmem:[%s1 + $0x30] sm:$0xf]
      %v277 = vld [vmem:[%s1 + $0x34] sm:$0xf]
      %v278 = vld [vmem:[%s1 + $0x38] sm:$0xf]
      %v279 = vld [vmem:[%s1 + $0x3c] sm:$0xf]
      %v280 = vld [vmem:[%s1 + $0x40] sm:$0xf]
      %v281 = vld [vmem:[%s1 + $0x44] sm:$0xf]
      %v282 = vld [vmem:[%s1 + $0x48] sm:$0xf]
      %v283 = vld [vmem:[%s1 + $0x4c] sm:$0xf]
      %v284 = vld [vmem:[%s1 + $0x50] sm:$0xf]
      %v285 = vld [vmem:[%s1 + $0x54] sm:$0xf]
      %v286 = vld [vmem:[%s1 + $0x58] sm:$0xf]
      %v287 = vld [vmem:[%s1 + $0x5c] sm:$0xf]
      %v288 = vld [vmem:[%s1 + $0x60] sm:$0x3]
      %v321 = vunpack.c.l.b16 %v232
      %v322 = vunpack.c.h.b16 %v232
      %v323 = vunpack.c.l.b16 %v233
      %v324 = vunpack.c.h.b16 %v233
      %v325 = vunpack.c.l.b16 %v234
      %v326 = vunpack.c.h.b16 %v234
      %v327 = vunpack.c.l.b16 %v235
      %v328 = vunpack.c.h.b16 %v235
      %v329 = vunpack.c.l.b16 %v236
      %v330 = vunpack.c.h.b16 %v236
      %v331 = vunpack.c.l.b16 %v237
      %v332 = vunpack.c.h.b16 %v237
      %v333 = vunpack.c.l.b16 %v238
      %v334 = vunpack.c.h.b16 %v238
      %v335 = vunpack.c.l.b16 %v239
      %v336 = vunpack.c.h.b16 %v239
      %v337 = vunpack.c.l.b16 %v240
      %v338 = vunpack.c.h.b16 %v240
      %v339 = vunpack.c.l.b16 %v241
      %v340 = vunpack.c.h.b16 %v241
      %v341 = vunpack.c.l.b16 %v242
      %v342 = vunpack.c.h.b16 %v242
      %v343 = vunpack.c.l.b16 %v243
      %v344 = vunpack.c.h.b16 %v243
      %v345 = vunpack.c.l.b16 %v244
      %v346 = vunpack.c.h.b16 %v244
      %v347 = vunpack.c.l.b16 %v245
      %v348 = vunpack.c.h.b16 %v245
      %v349 = vunpack.c.l.b16 %v246
      %v350 = vunpack.c.h.b16 %v246
      %v351 = vunpack.c.l.b16 %v247
      %v352 = vunpack.c.h.b16 %v247
      %v353 = vunpack.c.l.b16 %v248
      %v354 = vunpack.c.h.b16 %v248
      %v355 = vunpack.c.l.b16 %v249
      %v356 = vunpack.c.h.b16 %v249
      %v357 = vunpack.c.l.b16 %v250
      %v358 = vunpack.c.h.b16 %v250
      %v359 = vunpack.c.l.b16 %v251
      %v360 = vunpack.c.h.b16 %v251
      %v361 = vunpack.c.l.b16 %v252
      %v362 = vunpack.c.h.b16 %v252
      %v363 = vunpack.c.l.b16 %v253
      %v364 = vunpack.c.h.b16 %v253
      %v365 = vunpack.c.l.b16 %v254
      %v366 = vunpack.c.h.b16 %v254
      %v367 = vunpack.c.l.b16 %v255
      %v368 = vunpack.c.h.b16 %v255
      %v369 = vunpack.c.l.b16 %v256
      %v370 = vunpack.c.h.b16 %v256
      %v371 = vunpack.c.l.b16 %v257
      %v372 = vunpack.c.h.b16 %v257
      %v373 = vunpack.c.l.b16 %v258
      %v374 = vunpack.c.h.b16 %v258
      %v375 = vunpack.c.l.b16 %v259
      %v376 = vunpack.c.h.b16 %v259
      %v377 = vunpack.c.l.b16 %v260
      %v378 = vunpack.c.h.b16 %v260
      %v379 = vunpack.c.l.b16 %v261
      %v380 = vunpack.c.h.b16 %v261
      %v381 = vunpack.c.l.b16 %v262
      %v382 = vunpack.c.h.b16 %v262
      %v383 = vunpack.c.l.b16 %v263
      %v384 = vunpack.c.h.b16 %v263
      %v385 = vpack.c.b16 %v323, %v321
      %v386 = vpack.c.b16 %v324, %v322
      %v387 = vpack.c.b16 %v327, %v325
      %v388 = vpack.c.b16 %v328, %v326
      %v389 = vpack.c.b16 %v331, %v329
      %v390 = vpack.c.b16 %v332, %v330
      %v391 = vpack.c.b16 %v335, %v333
      %v392 = vpack.c.b16 %v336, %v334
      %v393 = vpack.c.b16 %v339, %v337
      %v394 = vpack.c.b16 %v340, %v338
      %v395 = vpack.c.b16 %v343, %v341
      %v396 = vpack.c.b16 %v344, %v342
      %v397 = vpack.c.b16 %v347, %v345
      %v398 = vpack.c.b16 %v348, %v346
      %v399 = vpack.c.b16 %v351, %v349
      %v400 = vpack.c.b16 %v352, %v350
      %v401 = vpack.c.b16 %v355, %v353
      %v402 = vpack.c.b16 %v356, %v354
      %v403 = vpack.c.b16 %v359, %v357
      %v404 = vpack.c.b16 %v360, %v358
      %v405 = vpack.c.b16 %v363, %v361
      %v406 = vpack.c.b16 %v364, %v362
      %v407 = vpack.c.b16 %v367, %v365
      %v408 = vpack.c.b16 %v368, %v366
      %v409 = vpack.c.b16 %v371, %v369
      %v410 = vpack.c.b16 %v372, %v370
      %v411 = vpack.c.b16 %v375, %v373
      %v412 = vpack.c.b16 %v376, %v374
      %v413 = vpack.c.b16 %v379, %v377
      %v414 = vpack.c.b16 %v380, %v378
      %v415 = vpack.c.b16 %v383, %v381
      %v416 = vpack.c.b16 %v384, %v382
      %v458 = vunpack.c.l.b16 %v264
      %v459 = vunpack.c.l.b16 %v265
      %v460 = vunpack.c.l.b16 %v266
      %v461 = vunpack.c.l.b16 %v267
      %v462 = vunpack.c.l.b16 %v268
      %v463 = vunpack.c.l.b16 %v269
      %v464 = vunpack.c.l.b16 %v270
      %v465 = vunpack.c.l.b16 %v271
      %v466 = vunpack.c.l.b16 %v272
      %v467 = vunpack.c.l.b16 %v273
      %v468 = vunpack.c.l.b16 %v274
      %v469 = vunpack.c.l.b16 %v275
      %v470 = vunpack.c.l.b16 %v276
      %v471 = vunpack.c.l.b16 %v277
      %v472 = vunpack.c.l.b16 %v278
      %v473 = vunpack.c.l.b16 %v279
      %v474 = vunpack.c.l.b16 %v280
      %v475 = vunpack.c.l.b16 %v281
      %v476 = vunpack.c.l.b16 %v282
      %v477 = vunpack.c.l.b16 %v283
      %v478 = vunpack.c.l.b16 %v284
      %v479 = vunpack.c.l.b16 %v285
      %v480 = vunpack.c.l.b16 %v286
      %v481 = vunpack.c.l.b16 %v287
      %v482 = vunpack.c.l.b16 %v288
      %v483 = vpack.c.b16 %v459, %v458
      %v484 = vpack.c.b16 %v461, %v460
      %v485 = vpack.c.b16 %v463, %v462
      %v486 = vpack.c.b16 %v465, %v464
      %v487 = vpack.c.b16 %v467, %v466
      %v488 = vpack.c.b16 %v469, %v468
      %v489 = vpack.c.b16 %v471, %v470
      %v490 = vpack.c.b16 %v473, %v472
      %v491 = vpack.c.b16 %v475, %v474
      %v492 = vpack.c.b16 %v477, %v476
      %v493 = vpack.c.b16 %v479, %v478
      %v494 = vpack.c.b16 %v481, %v480
      %v495 = vpack.c.b16 %v482, %v482
      %vm508 = vcmask 556032
      %v510 = vsel %vm508, %v386, 0
      %v513 = vsel %vm508, %v388, 0
      %v516 = vsel %vm508, %v390, 0
      %v519 = vsel %vm508, %v392, 0
      %v522 = vsel %vm508, %v394, 0
      %v525 = vsel %vm508, %v396, 0
      %v528 = vsel %vm508, %v398, 0
      %v531 = vsel %vm508, %v400, 0
      %v534 = vsel %vm508, %v402, 0
      %v537 = vsel %vm508, %v404, 0
      %v540 = vsel %vm508, %v406, 0
      %v543 = vsel %vm508, %v408, 0
      %v546 = vsel %vm508, %v410, 0
      %v549 = vsel %vm508, %v412, 0
      %v552 = vsel %vm508, %v414, 0
      %v555 = vsel %vm508, %v416, 0
      %vm557 = vcmask 1041408
      %v559 = vsel %vm557, %v495, 0
      %561 = vmatpush.bf16.msra.mxu0 %v490
      %562 = vmatpush.bf16.msra.mxu0 %v489
      %563 = vmatpush.bf16.msra.mxu0 %v488
      %564 = vmatpush.bf16.msra.mxu0 %v487
      %565 = vmatpush.bf16.msra.mxu0 %v486
      %566 = vmatpush.bf16.msra.mxu0 %v485
      %567 = vmatpush.bf16.msra.mxu0 %v484
      %568 = vmatpush.bf16.msra.mxu0 %v483
      %569 = vmatmul.bf16.gmra.mxu0 %v385
      %v570 = vpop.f32.mrf.mxu0
      %v571 = vadd.f32 0.0, %v570
      %v572 = vpop.f32.mrf.mxu0
      %v573 = vadd.f32 0.0, %v572
      %574 = vmatmul.bf16.gmra.mxu0 %v387
      %v575 = vpop.f32.mrf.mxu0
      %v576 = vadd.f32 0.0, %v575
      %v577 = vpop.f32.mrf.mxu0
      %v578 = vadd.f32 0.0, %v577
      %579 = vmatmul.bf16.gmra.mxu0 %v389
      %v580 = vpop.f32.mrf.mxu0
      %v581 = vadd.f32 0.0, %v580
      %v582 = vpop.f32.mrf.mxu0
      %v583 = vadd.f32 0.0, %v582
      %584 = vmatmul.bf16.gmra.mxu0 %v391
      %v585 = vpop.f32.mrf.mxu0
      %v586 = vadd.f32 0.0, %v585
      %v587 = vpop.f32.mrf.mxu0
      %v588 = vadd.f32 0.0, %v587
      %589 = vmatmul.bf16.gmra.mxu0 %v393
      %v590 = vpop.f32.mrf.mxu0
      %v591 = vadd.f32 0.0, %v590
      %v592 = vpop.f32.mrf.mxu0
      %v593 = vadd.f32 0.0, %v592
      %594 = vmatmul.bf16.gmra.mxu0 %v395
      %v595 = vpop.f32.mrf.mxu0
      %v596 = vadd.f32 0.0, %v595
      %v597 = vpop.f32.mrf.mxu0
      %v598 = vadd.f32 0.0, %v597
      %599 = vmatmul.bf16.gmra.mxu0 %v397
      %v600 = vpop.f32.mrf.mxu0
      %v601 = vadd.f32 0.0, %v600
      %v602 = vpop.f32.mrf.mxu0
      %v603 = vadd.f32 0.0, %v602
      %604 = vmatmul.bf16.gmra.mxu0 %v399
      %v605 = vpop.f32.mrf.mxu0
      %v606 = vadd.f32 0.0, %v605
      %v607 = vpop.f32.mrf.mxu0
      %v608 = vadd.f32 0.0, %v607
      %609 = vmatmul.bf16.gmra.mxu0 %v401
      %v610 = vpop.f32.mrf.mxu0
      %v611 = vadd.f32 0.0, %v610
      %v612 = vpop.f32.mrf.mxu0
      %v613 = vadd.f32 0.0, %v612
      %614 = vmatmul.bf16.gmra.mxu0 %v403
      %v615 = vpop.f32.mrf.mxu0
      %v616 = vadd.f32 0.0, %v615
      %v617 = vpop.f32.mrf.mxu0
      %v618 = vadd.f32 0.0, %v617
      %619 = vmatmul.bf16.gmra.mxu0 %v405
      %v620 = vpop.f32.mrf.mxu0
      %v621 = vadd.f32 0.0, %v620
      %v622 = vpop.f32.mrf.mxu0
      %v623 = vadd.f32 0.0, %v622
      %624 = vmatmul.bf16.gmra.mxu0 %v407
      %v625 = vpop.f32.mrf.mxu0
      %v626 = vadd.f32 0.0, %v625
      %v627 = vpop.f32.mrf.mxu0
      %v628 = vadd.f32 0.0, %v627
      %629 = vmatmul.bf16.gmra.mxu0 %v409
      %v630 = vpop.f32.mrf.mxu0
      %v631 = vadd.f32 0.0, %v630
      %v632 = vpop.f32.mrf.mxu0
      %v633 = vadd.f32 0.0, %v632
      %634 = vmatmul.bf16.gmra.mxu0 %v411
      %v635 = vpop.f32.mrf.mxu0
      %v636 = vadd.f32 0.0, %v635
      %v637 = vpop.f32.mrf.mxu0
      %v638 = vadd.f32 0.0, %v637
      %639 = vmatmul.bf16.gmra.mxu0 %v413
      %v640 = vpop.f32.mrf.mxu0
      %v641 = vadd.f32 0.0, %v640
      %v642 = vpop.f32.mrf.mxu0
      %v643 = vadd.f32 0.0, %v642
      %644 = vmatmul.bf16.gmra.mxu0 %v415
      %v645 = vpop.f32.mrf.mxu0
      %v646 = vadd.f32 0.0, %v645
      %v647 = vpop.f32.mrf.mxu0
      %v648 = vadd.f32 0.0, %v647
      %649 = vdwg.mxu0
      %650 = vmatpush.bf16.msra.mxu0 0
      %651 = vmatpush.bf16.msra.mxu0 0
      %652 = vmatpush.bf16.msra.mxu0 0
      %653 = vmatpush.bf16.msra.mxu0 %v559
      %654 = vmatpush.bf16.msra.mxu0 %v494
      %655 = vmatpush.bf16.msra.mxu0 %v493
      %656 = vmatpush.bf16.msra.mxu0 %v492
      %657 = vmatpush.bf16.msra.mxu0 %v491
      %658 = vmatmul.bf16.gmra.mxu0 %v510
      %v659 = vpop.f32.mrf.mxu0
      %v660 = vadd.f32 %v571, %v659
      %v661 = vpop.f32.mrf.mxu0
      %v662 = vadd.f32 %v573, %v661
      %663 = vmatmul.bf16.gmra.mxu0 %v513
      %v664 = vpop.f32.mrf.mxu0
      %v665 = vadd.f32 %v576, %v664
      %v666 = vpop.f32.mrf.mxu0
      %v667 = vadd.f32 %v578, %v666
      %668 = vmatmul.bf16.gmra.mxu0 %v516
      %v669 = vpop.f32.mrf.mxu0
      %v670 = vadd.f32 %v581, %v669
      %v671 = vpop.f32.mrf.mxu0
      %v672 = vadd.f32 %v583, %v671
      %673 = vmatmul.bf16.gmra.mxu0 %v519
      %v674 = vpop.f32.mrf.mxu0
      %v675 = vadd.f32 %v586, %v674
      %v676 = vpop.f32.mrf.mxu0
      %v677 = vadd.f32 %v588, %v676
      %678 = vmatmul.bf16.gmra.mxu0 %v522
      %v679 = vpop.f32.mrf.mxu0
      %v680 = vadd.f32 %v591, %v679
      %v681 = vpop.f32.mrf.mxu0
      %v682 = vadd.f32 %v593, %v681
      %683 = vmatmul.bf16.gmra.mxu0 %v525
      %v684 = vpop.f32.mrf.mxu0
      %v685 = vadd.f32 %v596, %v684
      %v686 = vpop.f32.mrf.mxu0
      %v687 = vadd.f32 %v598, %v686
      %688 = vmatmul.bf16.gmra.mxu0 %v528
      %v689 = vpop.f32.mrf.mxu0
      %v690 = vadd.f32 %v601, %v689
      %v691 = vpop.f32.mrf.mxu0
      %v692 = vadd.f32 %v603, %v691
      %693 = vmatmul.bf16.gmra.mxu0 %v531
      %v694 = vpop.f32.mrf.mxu0
      %v695 = vadd.f32 %v606, %v694
      %v696 = vpop.f32.mrf.mxu0
      %v697 = vadd.f32 %v608, %v696
      %698 = vmatmul.bf16.gmra.mxu0 %v534
      %v699 = vpop.f32.mrf.mxu0
      %v700 = vadd.f32 %v611, %v699
      %v701 = vpop.f32.mrf.mxu0
      %v702 = vadd.f32 %v613, %v701
      %703 = vmatmul.bf16.gmra.mxu0 %v537
      %v704 = vpop.f32.mrf.mxu0
      %v705 = vadd.f32 %v616, %v704
      %v706 = vpop.f32.mrf.mxu0
      %v707 = vadd.f32 %v618, %v706
      %708 = vmatmul.bf16.gmra.mxu0 %v540
      %v709 = vpop.f32.mrf.mxu0
      %v710 = vadd.f32 %v621, %v709
      %v711 = vpop.f32.mrf.mxu0
      %v712 = vadd.f32 %v623, %v711
      %713 = vmatmul.bf16.gmra.mxu0 %v543
      %v714 = vpop.f32.mrf.mxu0
      %v715 = vadd.f32 %v626, %v714
      %v716 = vpop.f32.mrf.mxu0
      %v717 = vadd.f32 %v628, %v716
      %718 = vmatmul.bf16.gmra.mxu0 %v546
      %v719 = vpop.f32.mrf.mxu0
      %v720 = vadd.f32 %v631, %v719
      %v721 = vpop.f32.mrf.mxu0
      %v722 = vadd.f32 %v633, %v721
      %723 = vmatmul.bf16.gmra.mxu0 %v549
      %v724 = vpop.f32.mrf.mxu0
      %v725 = vadd.f32 %v636, %v724
      %v726 = vpop.f32.mrf.mxu0
      %v727 = vadd.f32 %v638, %v726
      %728 = vmatmul.bf16.gmra.mxu0 %v552
      %v729 = vpop.f32.mrf.mxu0
      %v730 = vadd.f32 %v641, %v729
      %v731 = vpop.f32.mrf.mxu0
      %v732 = vadd.f32 %v643, %v731
      %733 = vmatmul.bf16.gmra.mxu0 %v555
      %v734 = vpop.f32.mrf.mxu0
      %v735 = vadd.f32 %v646, %v734
      %v736 = vpop.f32.mrf.mxu0
      %v737 = vadd.f32 %v648, %v736
      %738 = vdwg.mxu0
      %v739 = vld [vmem:[%s2] sm:$0x1]
      %v741 = vperm.slane %v739, 0
      %v743 = vmul.f32 %v660, %v741
      %v744 = vmul.f32 %v662, %v741
      %v745 = vmul.f32 %v665, %v741
      %v746 = vmul.f32 %v667, %v741
      %v747 = vmul.f32 %v670, %v741
      %v748 = vmul.f32 %v672, %v741
      %v749 = vmul.f32 %v675, %v741
      %v750 = vmul.f32 %v677, %v741
      %v751 = vmul.f32 %v680, %v741
      %v752 = vmul.f32 %v682, %v741
      %v753 = vmul.f32 %v685, %v741
      %v754 = vmul.f32 %v687, %v741
      %v755 = vmul.f32 %v690, %v741
      %v756 = vmul.f32 %v692, %v741
      %v757 = vmul.f32 %v695, %v741
      %v758 = vmul.f32 %v697, %v741
      %v759 = vmul.f32 %v700, %v741
      %v760 = vmul.f32 %v702, %v741
      %v761 = vmul.f32 %v705, %v741
      %v762 = vmul.f32 %v707, %v741
      %v763 = vmul.f32 %v710, %v741
      %v764 = vmul.f32 %v712, %v741
      %v765 = vmul.f32 %v715, %v741
      %v766 = vmul.f32 %v717, %v741
      %v767 = vmul.f32 %v720, %v741
      %v768 = vmul.f32 %v722, %v741
      %v769 = vmul.f32 %v725, %v741
      %v770 = vmul.f32 %v727, %v741
      %v771 = vmul.f32 %v730, %v741
      %v772 = vmul.f32 %v732, %v741
      %v773 = vmul.f32 %v735, %v741
      %v774 = vmul.f32 %v737, %v741
      %v775 = vld [vmem:[%s3] sm:$0x1]
      %v777 = vperm.slane %v775, 0
      %v779 = vadd.f32 %v743, %v777
      %v780 = vadd.f32 %v744, %v777
      %v781 = vadd.f32 %v745, %v777
      %v782 = vadd.f32 %v746, %v777
      %v783 = vadd.f32 %v747, %v777
      %v784 = vadd.f32 %v748, %v777
      %v785 = vadd.f32 %v749, %v777
      %v786 = vadd.f32 %v750, %v777
      %v787 = vadd.f32 %v751, %v777
      %v788 = vadd.f32 %v752, %v777
      %v789 = vadd.f32 %v753, %v777
      %v790 = vadd.f32 %v754, %v777
      %v791 = vadd.f32 %v755, %v777
      %v792 = vadd.f32 %v756, %v777
      %v793 = vadd.f32 %v757, %v777
      %v794 = vadd.f32 %v758, %v777
      %v795 = vadd.f32 %v759, %v777
      %v796 = vadd.f32 %v760, %v777
      %v797 = vadd.f32 %v761, %v777
      %v798 = vadd.f32 %v762, %v777
      %v799 = vadd.f32 %v763, %v777
      %v800 = vadd.f32 %v764, %v777
      %v801 = vadd.f32 %v765, %v777
      %v802 = vadd.f32 %v766, %v777
      %v803 = vadd.f32 %v767, %v777
      %v804 = vadd.f32 %v768, %v777
      %v805 = vadd.f32 %v769, %v777
      %v806 = vadd.f32 %v770, %v777
      %v807 = vadd.f32 %v771, %v777
      %v808 = vadd.f32 %v772, %v777
      %v809 = vadd.f32 %v773, %v777
      %v810 = vadd.f32 %v774, %v777
      %v811 = vmax.f32 %v779, 0.0
      %v812 = vmax.f32 %v780, 0.0
      %v813 = vmax.f32 %v781, 0.0
      %v814 = vmax.f32 %v782, 0.0
      %v815 = vmax.f32 %v783, 0.0
      %v816 = vmax.f32 %v784, 0.0
      %v817 = vmax.f32 %v785, 0.0
      %v818 = vmax.f32 %v786, 0.0
      %v819 = vmax.f32 %v787, 0.0
      %v820 = vmax.f32 %v788, 0.0
      %v821 = vmax.f32 %v789, 0.0
      %v822 = vmax.f32 %v790, 0.0
      %v823 = vmax.f32 %v791, 0.0
      %v824 = vmax.f32 %v792, 0.0
      %v825 = vmax.f32 %v793, 0.0
      %v826 = vmax.f32 %v794, 0.0
      %v827 = vmax.f32 %v795, 0.0
      %v828 = vmax.f32 %v796, 0.0
      %v829 = vmax.f32 %v797, 0.0
      %v830 = vmax.f32 %v798, 0.0
      %v831 = vmax.f32 %v799, 0.0
      %v832 = vmax.f32 %v800, 0.0
      %v833 = vmax.f32 %v801, 0.0
      %v834 = vmax.f32 %v802, 0.0
      %v835 = vmax.f32 %v803, 0.0
      %v836 = vmax.f32 %v804, 0.0
      %v837 = vmax.f32 %v805, 0.0
      %v838 = vmax.f32 %v806, 0.0
      %v839 = vmax.f32 %v807, 0.0
      %v840 = vmax.f32 %v808, 0.0
      %v841 = vmax.f32 %v809, 0.0
      %v842 = vmax.f32 %v810, 0.0
      %v843 = vpack.c.bf16 %v812, %v811
      %v844 = vpack.c.bf16 %v814, %v813
      %v845 = vpack.c.bf16 %v816, %v815
      %v846 = vpack.c.bf16 %v818, %v817
      %v847 = vpack.c.bf16 %v820, %v819
      %v848 = vpack.c.bf16 %v822, %v821
      %v849 = vpack.c.bf16 %v824, %v823
      %v850 = vpack.c.bf16 %v826, %v825
      %v851 = vpack.c.bf16 %v828, %v827
      %v852 = vpack.c.bf16 %v830, %v829
      %v853 = vpack.c.bf16 %v832, %v831
      %v854 = vpack.c.bf16 %v834, %v833
      %v855 = vpack.c.bf16 %v836, %v835
      %v856 = vpack.c.bf16 %v838, %v837
      %v857 = vpack.c.bf16 %v840, %v839
      %v858 = vpack.c.bf16 %v842, %v841
      %v859 = vld [vmem:[%s4] sm:$0xf]
      %v860 = vld [vmem:[%s4 + $0x4] sm:$0x3]
      %v863 = vunpack.c.l.b16 %v859
      %v864 = vunpack.c.l.b16 %v860
      %v865 = vpack.c.b16 %v864, %v863
      %vm866 = vcmask 97280
      %v868 = vsel %vm866, %v843, 0
      %v871 = vsel %vm866, %v844, 0
      %v874 = vsel %vm866, %v845, 0
      %v877 = vsel %vm866, %v846, 0
      %v880 = vsel %vm866, %v847, 0
      %v883 = vsel %vm866, %v848, 0
      %v886 = vsel %vm866, %v849, 0
      %v889 = vsel %vm866, %v850, 0
      %v892 = vsel %vm866, %v851, 0
      %v895 = vsel %vm866, %v852, 0
      %v898 = vsel %vm866, %v853, 0
      %v901 = vsel %vm866, %v854, 0
      %v904 = vsel %vm866, %v855, 0
      %v907 = vsel %vm866, %v856, 0
      %v910 = vsel %vm866, %v857, 0
      %v913 = vsel %vm866, %v858, 0
      %vm915 = vcmask 1045504
      %v917 = vsel %vm915, %v865, 0
      %919 = vmatpush.bf16.msra.mxu0 0
      %920 = vmatpush.bf16.msra.mxu0 0
      %921 = vmatpush.bf16.msra.mxu0 0
      %922 = vmatpush.bf16.msra.mxu0 0
      %923 = vmatpush.bf16.msra.mxu0 0
      %924 = vmatpush.bf16.msra.mxu0 0
      %925 = vmatpush.bf16.msra.mxu0 0
      %926 = vmatpush.bf16.msra.mxu0 %v917
      %927 = vmatmul.bf16.gmra.mxu0 %v868
      %v928 = vpop.f32.mrf.mxu0
      %v929 = vadd.f32 0.0, %v928
      %v930 = vpop.f32.mrf.mxu0
      %v931 = vadd.f32 0.0, %v930
      %932 = vmatmul.bf16.gmra.mxu0 %v871
      %v933 = vpop.f32.mrf.mxu0
      %v934 = vadd.f32 0.0, %v933
      %v935 = vpop.f32.mrf.mxu0
      %v936 = vadd.f32 0.0, %v935
      %937 = vmatmul.bf16.gmra.mxu0 %v874
      %v938 = vpop.f32.mrf.mxu0
      %v939 = vadd.f32 0.0, %v938
      %v940 = vpop.f32.mrf.mxu0
      %v941 = vadd.f32 0.0, %v940
      %942 = vmatmul.bf16.gmra.mxu0 %v877
      %v943 = vpop.f32.mrf.mxu0
      %v944 = vadd.f32 0.0, %v943
      %v945 = vpop.f32.mrf.mxu0
      %v946 = vadd.f32 0.0, %v945
      %947 = vmatmul.bf16.gmra.mxu0 %v880
      %v948 = vpop.f32.mrf.mxu0
      %v949 = vadd.f32 0.0, %v948
      %v950 = vpop.f32.mrf.mxu0
      %v951 = vadd.f32 0.0, %v950
      %952 = vmatmul.bf16.gmra.mxu0 %v883
      %v953 = vpop.f32.mrf.mxu0
      %v954 = vadd.f32 0.0, %v953
      %v955 = vpop.f32.mrf.mxu0
      %v956 = vadd.f32 0.0, %v955
      %957 = vmatmul.bf16.gmra.mxu0 %v886
      %v958 = vpop.f32.mrf.mxu0
      %v959 = vadd.f32 0.0, %v958
      %v960 = vpop.f32.mrf.mxu0
      %v961 = vadd.f32 0.0, %v960
      %962 = vmatmul.bf16.gmra.mxu0 %v889
      %v963 = vpop.f32.mrf.mxu0
      %v964 = vadd.f32 0.0, %v963
      %v965 = vpop.f32.mrf.mxu0
      %v966 = vadd.f32 0.0, %v965
      %967 = vmatmul.bf16.gmra.mxu0 %v892
      %v968 = vpop.f32.mrf.mxu0
      %v969 = vadd.f32 0.0, %v968
      %v970 = vpop.f32.mrf.mxu0
      %v971 = vadd.f32 0.0, %v970
      %972 = vmatmul.bf16.gmra.mxu0 %v895
      %v973 = vpop.f32.mrf.mxu0
      %v974 = vadd.f32 0.0, %v973
      %v975 = vpop.f32.mrf.mxu0
      %v976 = vadd.f32 0.0, %v975
      %977 = vmatmul.bf16.gmra.mxu0 %v898
      %v978 = vpop.f32.mrf.mxu0
      %v979 = vadd.f32 0.0, %v978
      %v980 = vpop.f32.mrf.mxu0
      %v981 = vadd.f32 0.0, %v980
      %982 = vmatmul.bf16.gmra.mxu0 %v901
      %v983 = vpop.f32.mrf.mxu0
      %v984 = vadd.f32 0.0, %v983
      %v985 = vpop.f32.mrf.mxu0
      %v986 = vadd.f32 0.0, %v985
      %987 = vmatmul.bf16.gmra.mxu0 %v904
      %v988 = vpop.f32.mrf.mxu0
      %v989 = vadd.f32 0.0, %v988
      %v990 = vpop.f32.mrf.mxu0
      %v991 = vadd.f32 0.0, %v990
      %992 = vmatmul.bf16.gmra.mxu0 %v907
      %v993 = vpop.f32.mrf.mxu0
      %v994 = vadd.f32 0.0, %v993
      %v995 = vpop.f32.mrf.mxu0
      %v996 = vadd.f32 0.0, %v995
      %997 = vmatmul.bf16.gmra.mxu0 %v910
      %v998 = vpop.f32.mrf.mxu0
      %v999 = vadd.f32 0.0, %v998
      %v1000 = vpop.f32.mrf.mxu0
      %v1001 = vadd.f32 0.0, %v1000
      %1002 = vmatmul.bf16.gmra.mxu0 %v913
      %v1003 = vpop.f32.mrf.mxu0
      %v1004 = vadd.f32 0.0, %v1003
      %v1005 = vpop.f32.mrf.mxu0
      %v1006 = vadd.f32 0.0, %v1005
      %1007 = vdwg.mxu0
      %1008 = vst [vmem:[%s229] sm:$0xff] %v929
      %1009 = vst [vmem:[%s229 + $0x8] sm:$0xff] %v931
      %1010 = vst [vmem:[%s229 + $0x10] sm:$0xff] %v934
      %1011 = vst [vmem:[%s229 + $0x18] sm:$0xff] %v936
      %1012 = vst [vmem:[%s229 + $0x20] sm:$0xff] %v939
      %1013 = vst [vmem:[%s229 + $0x28] sm:$0xff] %v941
      %1014 = vst [vmem:[%s229 + $0x30] sm:$0xff] %v944
      %1015 = vst [vmem:[%s229 + $0x38] sm:$0xff] %v946
      %1016 = vst [vmem:[%s229 + $0x40] sm:$0xff] %v949
      %1017 = vst [vmem:[%s229 + $0x48] sm:$0xff] %v951
      %1018 = vst [vmem:[%s229 + $0x50] sm:$0xff] %v954
      %1019 = vst [vmem:[%s229 + $0x58] sm:$0xff] %v956
      %1020 = vst [vmem:[%s229 + $0x60] sm:$0xff] %v959
      %1021 = vst [vmem:[%s229 + $0x68] sm:$0xff] %v961
      %1022 = vst [vmem:[%s229 + $0x70] sm:$0xff] %v964
      %1023 = vst [vmem:[%s229 + $0x78] sm:$0xff] %v966
      %1024 = vst [vmem:[%s229 + $0x80] sm:$0xff] %v969
      %1025 = vst [vmem:[%s229 + $0x88] sm:$0xff] %v971
      %1026 = vst [vmem:[%s229 + $0x90] sm:$0xff] %v974
      %1027 = vst [vmem:[%s229 + $0x98] sm:$0xff] %v976
      %1028 = vst [vmem:[%s229 + $0xa0] sm:$0xff] %v979
      %1029 = vst [vmem:[%s229 + $0xa8] sm:$0xff] %v981
      %1030 = vst [vmem:[%s229 + $0xb0] sm:$0xff] %v984
      %1031 = vst [vmem:[%s229 + $0xb8] sm:$0xff] %v986
      %1032 = vst [vmem:[%s229 + $0xc0] sm:$0xff] %v989
      %1033 = vst [vmem:[%s229 + $0xc8] sm:$0xff] %v991
      %1034 = vst [vmem:[%s229 + $0xd0] sm:$0xff] %v994
      %1035 = vst [vmem:[%s229 + $0xd8] sm:$0xff] %v996
      %1036 = vst [vmem:[%s229 + $0xe0] sm:$0xff] %v999
      %1037 = vst [vmem:[%s229 + $0xe8] sm:$0xff] %v1001
      %1038 = vst [vmem:[%s229 + $0xf0] sm:$0xff] %v1004
      %1039 = vst [vmem:[%s229 + $0xf8] sm:$0xff] %v1006
      %s1040 = smul.u32 32, %s16
      %p1041 = scmp.lt.s32.totalorder %s1040, 63
      %s1042 = scalar_select %p1041, %s1040, 63
      %s1043 = smul.addr %s1042, 8
      %s1044 = scalar_lea.vmem %s5, %s1043
      // Predicated region
      $region41: #{edge_enhance_forward.6} parent=39 // pred_check
        %p1045 = pneg %p144
      $region42: #{edge_enhance_forward.6} parent=39 // pred_check_branch
        %1047 = sbr.rel (%p1045) target = $region44
      $region43: #{edge_enhance_forward.6} parent=39 // pred_region
        %s1048 = smul.u32 32, %s16
      $region44: #{edge_enhance_forward.6} parent=39 // pred_fallthru
        _
    $region40: #{edge_enhance_forward.6} parent=5 // pred_fallthru
      _
    %p1049 = scmp.le.s32.totalorder 2, %s11
    // Predicated region
    $region45: #{edge_enhance_forward.6} parent=5 // pred_check
      %p1050 = pneg %p1049
    $region46: #{edge_enhance_forward.6} parent=5 // pred_check_branch
      %1052 = sbr.rel (%p1050) target = $region48
    $region47: #{edge_enhance_forward.6} parent=5 // pred_region
      %s1053 = ssub.s32 %s11, 2
      // Predicated region
      $region49: #{edge_enhance_forward.6} parent=47 // pred_check
        %p1054 = pneg %p150
      $region50: #{edge_enhance_forward.6} parent=47 // pred_check_branch
        %1056 = sbr.rel (%p1054) target = $region52
      $region51: #{edge_enhance_forward.6} parent=47 // pred_region
        %s1057 = smul.u32 32, %s17
        %p1058 = scmp.lt.s32.totalorder %s1057, 63
        %s1059 = scalar_select %p1058, %s1057, 63
        %s1060 = smul.addr %s1059, 8
        %s1061 = scalar_lea.vmem %s5, %s1060
      $region52: #{edge_enhance_forward.6} parent=47 // pred_fallthru
        _
    $region48: #{edge_enhance_forward.6} parent=5 // pred_fallthru
      _
  $region6: #{edge_enhance_forward.6} parent=0 // loop_footer
    %s15 = sadd.s32 1, %s11
  $region7: #{edge_enhance_forward.6} parent=0 // loop_footer_branch
    %10 = sbr.rel target = $region3
  $region8: #{edge_enhance_forward.6} parent=0 // loop_exit
    _

// kernel: edge_enhance_forward.7
$region0: #{edge_enhance_forward.7}
  #allocation0 [shape = 'u32[]', space=smem, size = 0x4, offset = 0x4, fixed_abs, tag = 'smem constant byte address 0x4 - core index']
  #allocation1 [shape = 'u32[72,128]{1,0:T(1,128)}', space=vmem, size = 0x9000, scoped, tag = 'internal scratch']
  %s0 = inlined_call_operand.vmem [shape: bf16[512,72], index: 0, kind: input, shape index: {}]
  %s1 = inlined_call_operand.vmem [shape: bf16[72,128], index: 1, kind: input, shape index: {}]
  %s2 = inlined_call_operand.vmem [shape: f32[1,128], index: 2, kind: input, shape index: {}]
  %s3 = inlined_call_operand.vmem [shape: f32[1,128], index: 3, kind: input, shape index: {}]
  %s4 = inlined_call_operand.vmem [shape: f32[512,128], index: 4, kind: output, shape index: {}]
  %s5 = sld [smem:[#allocation0]]
  $region49: #{edge_enhance_forward.7} parent=0
    _
  %s7 = ssub.s32 1, %s5
  %s8 = scalar_select 0, %s7, %s5
  loop: start=0, step=1, limit=4
  $region2: #{edge_enhance_forward.7} parent=0 // loop_pre_header
    _
  $region3: #{edge_enhance_forward.7} parent=0 // loop_header
    %s10 = sphi 0, %s14
    %p11 = scmp.ge.s32.totalorder %s10, 4
    %s20 = sphi 0, %s22
    %s23 = sphi 0, %s20
    %s24 = sphi 0, %s23
    %s40 = sphi 0, %s24
    %s44 = sphi 0, %s44
    %s46 = sphi 0, %s44
    %s47 = sphi 0, %s46
    %s61 = sphi 0, %s47
    %s65 = sphi 0, %s65
    %s67 = sphi 0, %s65
    %s68 = sphi 0, %s67
    %s82 = sphi 0, %s68
    %s86 = sphi 0, %s86
    %s88 = sphi 0, %s86
    %s89 = sphi 0, %s88
    %s103 = sphi 0, %s89
    %s109 = sphi 0, %s111
    %s112 = sphi 0, %s109
    %s113 = sphi 0, %s112
    %s129 = sphi 0, %s113
  $region4: #{edge_enhance_forward.7} parent=0 // loop_header_branch
    %13 = sbr.rel (%p11) target = $region8
  $region5: #{edge_enhance_forward.7} parent=0 // loop_body
    %s15 = ssub.s32 %s10, 1
    %s16 = ssub.s32 %s10, 2
    %s17 = sadd.s32 %s10, 1
    %s18 = ssub.s32 %s10, %s17
    %p19 = scmp.eq.s32.totalorder %s18, 0
    %s21 = sadd.s32 %s20, 1
    %s22 = scalar_select %p19, %s20, %s21
    %p25 = pneg %p19
    %p26 = scmp.eq.s32.totalorder %s10, 1
    %p27 = por %p25, %p26
    %p28 = scmp.ne.s32.totalorder %s20, %s23
    %p29 = scmp.eq.s32.totalorder %s10, 0
    %p30 = por %p28, %p29
    %p31 = scmp.ne.s32.totalorder %s20, %s23
    %p32 = scmp.eq.s32.totalorder %s15, 1
    %p33 = por %p31, %p32
    %p34 = scmp.ne.s32.totalorder %s23, %s24
    %p35 = scmp.eq.s32.totalorder %s15, 0
    %p36 = por %p34, %p35
    %p37 = scmp.ne.s32.totalorder %s23, %s24
    %p38 = scmp.eq.s32.totalorder %s16, 1
    %p39 = por %p37, %p38
    %p41 = scmp.ne.s32.totalorder %s24, %s40
    %p42 = scmp.eq.s32.totalorder %s16, 0
    %p43 = por %p41, %p42
    %s45 = sadd.s32 %s44, 1
    %p48 = scmp.eq.s32.totalorder %s10, 1
    %p49 = scmp.ne.s32.totalorder %s44, %s46
    %p50 = scmp.eq.s32.totalorder %s10, 0
    %p51 = por %p49, %p50
    %p52 = scmp.ne.s32.totalorder %s44, %s46
    %p53 = scmp.eq.s32.totalorder %s15, 1
    %p54 = por %p52, %p53
    %p55 = scmp.ne.s32.totalorder %s46, %s47
    %p56 = scmp.eq.s32.totalorder %s15, 0
    %p57 = por %p55, %p56
    %p58 = scmp.ne.s32.totalorder %s46, %s47
    %p59 = scmp.eq.s32.totalorder %s16, 1
    %p60 = por %p58, %p59
    %p62 = scmp.ne.s32.totalorder %s47, %s61
    %p63 = scmp.eq.s32.totalorder %s16, 0
    %p64 = por %p62, %p63
    %s66 = sadd.s32 %s65, 1
    %p69 = scmp.eq.s32.totalorder %s10, 1
    %p70 = scmp.ne.s32.totalorder %s65, %s67
    %p71 = scmp.eq.s32.totalorder %s10, 0
    %p72 = por %p70, %p71
    %p73 = scmp.ne.s32.totalorder %s65, %s67
    %p74 = scmp.eq.s32.totalorder %s15, 1
    %p75 = por %p73, %p74
    %p76 = scmp.ne.s32.totalorder %s67, %s68
    %p77 = scmp.eq.s32.totalorder %s15, 0
    %p78 = por %p76, %p77
    %p79 = scmp.ne.s32.totalorder %s67, %s68
    %p80 = scmp.eq.s32.totalorder %s16, 1
    %p81 = por %p79, %p80
    %p83 = scmp.ne.s32.totalorder %s68, %s82
    %p84 = scmp.eq.s32.totalorder %s16, 0
    %p85 = por %p83, %p84
    %s87 = sadd.s32 %s86, 1
    %p90 = scmp.eq.s32.totalorder %s10, 1
    %p91 = scmp.ne.s32.totalorder %s86, %s88
    %p92 = scmp.eq.s32.totalorder %s10, 0
    %p93 = por %p91, %p92
    %p94 = scmp.ne.s32.totalorder %s86, %s88
    %p95 = scmp.eq.s32.totalorder %s15, 1
    %p96 = por %p94, %p95
    %p97 = scmp.ne.s32.totalorder %s88, %s89
    %p98 = scmp.eq.s32.totalorder %s15, 0
    %p99 = por %p97, %p98
    %p100 = scmp.ne.s32.totalorder %s88, %s89
    %p101 = scmp.eq.s32.totalorder %s16, 1
    %p102 = por %p100, %p101
    %p104 = scmp.ne.s32.totalorder %s89, %s103
    %p105 = scmp.eq.s32.totalorder %s16, 0
    %p106 = por %p104, %p105
    %s107 = ssub.s32 %s10, %s17
    %p108 = scmp.eq.s32.totalorder %s107, 0
    %s110 = sadd.s32 %s109, 1
    %s111 = scalar_select %p108, %s109, %s110
    %p114 = pneg %p108
    %p115 = scmp.eq.s32.totalorder %s10, 1
    %p116 = por %p114, %p115
    %p117 = scmp.ne.s32.totalorder %s109, %s112
    %p118 = scmp.eq.s32.totalorder %s10, 0
    %p119 = por %p117, %p118
    %p120 = scmp.ne.s32.totalorder %s109, %s112
    %p121 = scmp.eq.s32.totalorder %s15, 1
    %p122 = por %p120, %p121
    %p123 = scmp.ne.s32.totalorder %s112, %s113
    %p124 = scmp.eq.s32.totalorder %s15, 0
    %p125 = por %p123, %p124
    %p126 = scmp.ne.s32.totalorder %s112, %s113
    %p127 = scmp.eq.s32.totalorder %s16, 1
    %p128 = por %p126, %p127
    %p130 = scmp.ne.s32.totalorder %s113, %s129
    %p131 = scmp.eq.s32.totalorder %s16, 0
    %p132 = por %p130, %p131
    %p133 = scmp.le.s32.totalorder 1, %s10
    %p134 = scmp.lt.s32.totalorder %s10, 3
    %p135 = pnand %p133, %p134
    %p136 = pneg %p135
    // Predicated region
    $region9: #{edge_enhance_forward.7} parent=5 // pred_check
      _
    $region10: #{edge_enhance_forward.7} parent=5 // pred_check_branch
      %138 = sbr.rel (%p135) target = $region12
    $region11: #{edge_enhance_forward.7} parent=5 // pred_region
      %s139 = ssub.s32 %s10, 1
      // Predicated region
      $region13: #{edge_enhance_forward.7} parent=11 // pred_check
        %p140 = pneg %p57
      $region14: #{edge_enhance_forward.7} parent=11 // pred_check_branch
        %142 = sbr.rel (%p140) target = $region16
      $region15: #{edge_enhance_forward.7} parent=11 // pred_region
        _
      $region16: #{edge_enhance_forward.7} parent=11 // pred_fallthru
        _
      // Predicated region
      $region17: #{edge_enhance_forward.7} parent=11 // pred_check
        %p143 = pneg %p78
      $region18: #{edge_enhance_forward.7} parent=11 // pred_check_branch
        %145 = sbr.rel (%p143) target = $region20
      $region19: #{edge_enhance_forward.7} parent=11 // pred_region
        _
      $region20: #{edge_enhance_forward.7} parent=11 // pred_fallthru
        _
      // Predicated region
      $region21: #{edge_enhance_forward.7} parent=11 // pred_check
        %p146 = pneg %p99
      $region22: #{edge_enhance_forward.7} parent=11 // pred_check_branch
        %148 = sbr.rel (%p146) target = $region24
      $region23: #{edge_enhance_forward.7} parent=11 // pred_region
        _
      $region24: #{edge_enhance_forward.7} parent=11 // pred_fallthru
        _
    $region12: #{edge_enhance_forward.7} parent=5 // pred_fallthru
      _
    %p149 = scmp.lt.s32.totalorder %s10, 2
    // Predicated region
    $region25: #{edge_enhance_forward.7} parent=5 // pred_check
      %p150 = pneg %p149
    $region26: #{edge_enhance_forward.7} parent=5 // pred_check_branch
      %152 = sbr.rel (%p150) target = $region28
    $region27: #{edge_enhance_forward.7} parent=5 // pred_region
      // Predicated region
      $region29: #{edge_enhance_forward.7} parent=27 // pred_check
        %p153 = pneg %p30
      $region30: #{edge_enhance_forward.7} parent=27 // pred_check_branch
        %155 = sbr.rel (%p153) target = $region32
      $region31: #{edge_enhance_forward.7} parent=27 // pred_region
        %s156 = smul.u32 32, %s10
        %p157 = scmp.lt.s32.totalorder %s156, 63
        %s158 = scalar_select %p157, %s156, 63
        %s159 = smul.addr %s158, 4
        %s160 = scalar_lea.vmem %s0, %s159
        %s161 = smul.u32 32, %s10
      $region32: #{edge_enhance_forward.7} parent=27 // pred_fallthru
        _
    $region28: #{edge_enhance_forward.7} parent=5 // pred_fallthru
      _
    %p162 = scmp.le.s32.totalorder 1, %s10
    %p163 = scmp.lt.s32.totalorder %s10, 3
    %p164 = pnand %p162, %p163
    %p165 = pneg %p164
    // Predicated region
    $region33: #{edge_enhance_forward.7} parent=5 // pred_check
      _
    $region34: #{edge_enhance_forward.7} parent=5 // pred_check_branch
      %167 = sbr.rel (%p164) target = $region36
    $region35: #{edge_enhance_forward.7} parent=5 // pred_region
      %s168 = ssub.s32 %s10, 1
      %s169 = smul.u32 32, %s15
      %p170 = scmp.lt.s32.totalorder %s169, 63
      %s171 = scalar_select %p170, %s169, 63
      %s172 = smul.addr %s171, 4
      %s173 = scalar_lea.vmem %s0, %s172
      %p174 = pneg %p36
      %p175 = pneg %p33
      %p176 = pneg %p57
      %p177 = pneg %p54
      %p178 = pneg %p78
      %p179 = pneg %p75
      %p180 = pneg %p99
      %p181 = pneg %p96
      %p182 = pneg %p125
      %p183 = pneg %p122
      %s184 = smul.u32 32, %s15
      %p185 = scmp.lt.s32.totalorder %s184, 63
      %s186 = scalar_select %p185, %s184, 63
      %s187 = smul.addr %s186, 8
      %s188 = scalar_lea.vmem %s4, %s187
      %s189 = smul.u32 32, %s15
      %p190 = scmp.lt.s32.totalorder %s189, 63
      %s191 = scalar_select %p190, %s189, 63
      %s192 = smul.addr %s191, 4
      %s193 = scalar_lea.vmem %s0, %s192
      %s194 = smul.u32 32, %s15
      %s195 = smul.u32 32, %s15
      %p196 = scmp.lt.s32.totalorder %s195, 63
      %s197 = scalar_select %p196, %s195, 63
      %s198 = smul.addr %s197, 8
      %s199 = scalar_lea.vmem %s4, %s198
      %s200 = smul.u32 32, %s15
      %v202 = vld [vmem:[%s193] sm:$0xf]
      %v203 = vld [vmem:[%s193 + $0x4] sm:$0xf]
      %v204 = vld [vmem:[%s193 + $0x8] sm:$0xf]
      %v205 = vld [vmem:[%s193 + $0xc] sm:$0xf]
      %v206 = vld [vmem:[%s193 + $0x10] sm:$0xf]
      %v207 = vld [vmem:[%s193 + $0x14] sm:$0xf]
      %v208 = vld [vmem:[%s193 + $0x18] sm:$0xf]
      %v209 = vld [vmem:[%s193 + $0x1c] sm:$0xf]
      %v210 = vld [vmem:[%s193 + $0x20] sm:$0xf]
      %v211 = vld [vmem:[%s193 + $0x24] sm:$0xf]
      %v212 = vld [vmem:[%s193 + $0x28] sm:$0xf]
      %v213 = vld [vmem:[%s193 + $0x2c] sm:$0xf]
      %v214 = vld [vmem:[%s193 + $0x30] sm:$0xf]
      %v215 = vld [vmem:[%s193 + $0x34] sm:$0xf]
      %v216 = vld [vmem:[%s193 + $0x38] sm:$0xf]
      %v217 = vld [vmem:[%s193 + $0x3c] sm:$0xf]
      %v218 = vld [vmem:[%s193 + $0x40] sm:$0xf]
      %v219 = vld [vmem:[%s193 + $0x44] sm:$0xf]
      %v220 = vld [vmem:[%s193 + $0x48] sm:$0xf]
      %v221 = vld [vmem:[%s193 + $0x4c] sm:$0xf]
      %v222 = vld [vmem:[%s193 + $0x50] sm:$0xf]
      %v223 = vld [vmem:[%s193 + $0x54] sm:$0xf]
      %v224 = vld [vmem:[%s193 + $0x58] sm:$0xf]
      %v225 = vld [vmem:[%s193 + $0x5c] sm:$0xf]
      %v226 = vld [vmem:[%s193 + $0x60] sm:$0xf]
      %v227 = vld [vmem:[%s193 + $0x64] sm:$0xf]
      %v228 = vld [vmem:[%s193 + $0x68] sm:$0xf]
      %v229 = vld [vmem:[%s193 + $0x6c] sm:$0xf]
      %v230 = vld [vmem:[%s193 + $0x70] sm:$0xf]
      %v231 = vld [vmem:[%s193 + $0x74] sm:$0xf]
      %v232 = vld [vmem:[%s193 + $0x78] sm:$0xf]
      %v233 = vld [vmem:[%s193 + $0x7c] sm:$0xf]
      %v234 = vld [vmem:[%s1] sm:$0xf]
      %v235 = vld [vmem:[%s1 + $0x4] sm:$0xf]
      %v236 = vld [vmem:[%s1 + $0x8] sm:$0xf]
      %v237 = vld [vmem:[%s1 + $0xc] sm:$0xf]
      %v238 = vld [vmem:[%s1 + $0x10] sm:$0xf]
      %v239 = vld [vmem:[%s1 + $0x14] sm:$0xf]
      %v240 = vld [vmem:[%s1 + $0x18] sm:$0xf]
      %v241 = vld [vmem:[%s1 + $0x1c] sm:$0xf]
      %v242 = vld [vmem:[%s1 + $0x20] sm:$0xf]
      %v275 = vunpack.c.l.b16 %v202
      %v276 = vunpack.c.l.b16 %v203
      %v277 = vunpack.c.l.b16 %v204
      %v278 = vunpack.c.l.b16 %v205
      %v279 = vunpack.c.l.b16 %v206
      %v280 = vunpack.c.l.b16 %v207
      %v281 = vunpack.c.l.b16 %v208
      %v282 = vunpack.c.l.b16 %v209
      %v283 = vunpack.c.l.b16 %v210
      %v284 = vunpack.c.l.b16 %v211
      %v285 = vunpack.c.l.b16 %v212
      %v286 = vunpack.c.l.b16 %v213
      %v287 = vunpack.c.l.b16 %v214
      %v288 = vunpack.c.l.b16 %v215
      %v289 = vunpack.c.l.b16 %v216
      %v290 = vunpack.c.l.b16 %v217
      %v291 = vunpack.c.l.b16 %v218
      %v292 = vunpack.c.l.b16 %v219
      %v293 = vunpack.c.l.b16 %v220
      %v294 = vunpack.c.l.b16 %v221
      %v295 = vunpack.c.l.b16 %v222
      %v296 = vunpack.c.l.b16 %v223
      %v297 = vunpack.c.l.b16 %v224
      %v298 = vunpack.c.l.b16 %v225
      %v299 = vunpack.c.l.b16 %v226
      %v300 = vunpack.c.l.b16 %v227
      %v301 = vunpack.c.l.b16 %v228
      %v302 = vunpack.c.l.b16 %v229
      %v303 = vunpack.c.l.b16 %v230
      %v304 = vunpack.c.l.b16 %v231
      %v305 = vunpack.c.l.b16 %v232
      %v306 = vunpack.c.l.b16 %v233
      %v307 = vpack.c.b16 %v276, %v275
      %v308 = vpack.c.b16 %v278, %v277
      %v309 = vpack.c.b16 %v280, %v279
      %v310 = vpack.c.b16 %v282, %v281
      %v311 = vpack.c.b16 %v284, %v283
      %v312 = vpack.c.b16 %v286, %v285
      %v313 = vpack.c.b16 %v288, %v287
      %v314 = vpack.c.b16 %v290, %v289
      %v315 = vpack.c.b16 %v292, %v291
      %v316 = vpack.c.b16 %v294, %v293
      %v317 = vpack.c.b16 %v296, %v295
      %v318 = vpack.c.b16 %v298, %v297
      %v319 = vpack.c.b16 %v300, %v299
      %v320 = vpack.c.b16 %v302, %v301
      %v321 = vpack.c.b16 %v304, %v303
      %v322 = vpack.c.b16 %v306, %v305
      %v332 = vunpack.c.l.b16 %v234
      %v333 = vunpack.c.l.b16 %v235
      %v334 = vunpack.c.l.b16 %v236
      %v335 = vunpack.c.l.b16 %v237
      %v336 = vunpack.c.l.b16 %v238
      %v337 = vunpack.c.l.b16 %v239
      %v338 = vunpack.c.l.b16 %v240
      %v339 = vunpack.c.l.b16 %v241
      %v340 = vunpack.c.l.b16 %v242
      %v341 = vpack.c.b16 %v333, %v332
      %v342 = vpack.c.b16 %v335, %v334
      %v343 = vpack.c.b16 %v337, %v336
      %v344 = vpack.c.b16 %v339, %v338
      %v345 = vpack.c.b16 %v340, %v340
      %vm350 = vcmask 588800
      %v352 = vsel %vm350, %v307, 0
      %v355 = vsel %vm350, %v308, 0
      %v358 = vsel %vm350, %v309, 0
      %v361 = vsel %vm350, %v310, 0
      %v364 = vsel %vm350, %v311, 0
      %v367 = vsel %vm350, %v312, 0
      %v370 = vsel %vm350, %v313, 0
      %v373 = vsel %vm350, %v314, 0
      %v376 = vsel %vm350, %v315, 0
      %v379 = vsel %vm350, %v316, 0
      %v382 = vsel %vm350, %v317, 0
      %v385 = vsel %vm350, %v318, 0
      %v388 = vsel %vm350, %v319, 0
      %v391 = vsel %vm350, %v320, 0
      %v394 = vsel %vm350, %v321, 0
      %v397 = vsel %vm350, %v322, 0
      %vm399 = vcmask 1043456
      %v401 = vsel %vm399, %v345, 0
      %403 = vmatpush.bf16.msra.mxu0 0
      %404 = vmatpush.bf16.msra.mxu0 0
      %405 = vmatpush.bf16.msra.mxu0 0
      %406 = vmatpush.bf16.msra.mxu0 %v401
      %407 = vmatpush.bf16.msra.mxu0 %v344
      %408 = vmatpush.bf16.msra.mxu0 %v343
      %409 = vmatpush.bf16.msra.mxu0 %v342
      %410 = vmatpush.bf16.msra.mxu0 %v341
      %411 = vmatmul.bf16.gmra.mxu0 %v352
      %v412 = vpop.f32.mrf.mxu0
      %v413 = vadd.f32 0.0, %v412
      %v414 = vpop.f32.mrf.mxu0
      %v415 = vadd.f32 0.0, %v414
      %416 = vmatmul.bf16.gmra.mxu0 %v355
      %v417 = vpop.f32.mrf.mxu0
      %v418 = vadd.f32 0.0, %v417
      %v419 = vpop.f32.mrf.mxu0
      %v420 = vadd.f32 0.0, %v419
      %421 = vmatmul.bf16.gmra.mxu0 %v358
      %v422 = vpop.f32.mrf.mxu0
      %v423 = vadd.f32 0.0, %v422
      %v424 = vpop.f32.mrf.mxu0
      %v425 = vadd.f32 0.0, %v424
      %426 = vmatmul.bf16.gmra.mxu0 %v361
      %v427 = vpop.f32.mrf.mxu0
      %v428 = vadd.f32 0.0, %v427
      %v429 = vpop.f32.mrf.mxu0
      %v430 = vadd.f32 0.0, %v429
      %431 = vmatmul.bf16.gmra.mxu0 %v364
      %v432 = vpop.f32.mrf.mxu0
      %v433 = vadd.f32 0.0, %v432
      %v434 = vpop.f32.mrf.mxu0
      %v435 = vadd.f32 0.0, %v434
      %436 = vmatmul.bf16.gmra.mxu0 %v367
      %v437 = vpop.f32.mrf.mxu0
      %v438 = vadd.f32 0.0, %v437
      %v439 = vpop.f32.mrf.mxu0
      %v440 = vadd.f32 0.0, %v439
      %441 = vmatmul.bf16.gmra.mxu0 %v370
      %v442 = vpop.f32.mrf.mxu0
      %v443 = vadd.f32 0.0, %v442
      %v444 = vpop.f32.mrf.mxu0
      %v445 = vadd.f32 0.0, %v444
      %446 = vmatmul.bf16.gmra.mxu0 %v373
      %v447 = vpop.f32.mrf.mxu0
      %v448 = vadd.f32 0.0, %v447
      %v449 = vpop.f32.mrf.mxu0
      %v450 = vadd.f32 0.0, %v449
      %451 = vmatmul.bf16.gmra.mxu0 %v376
      %v452 = vpop.f32.mrf.mxu0
      %v453 = vadd.f32 0.0, %v452
      %v454 = vpop.f32.mrf.mxu0
      %v455 = vadd.f32 0.0, %v454
      %456 = vmatmul.bf16.gmra.mxu0 %v379
      %v457 = vpop.f32.mrf.mxu0
      %v458 = vadd.f32 0.0, %v457
      %v459 = vpop.f32.mrf.mxu0
      %v460 = vadd.f32 0.0, %v459
      %461 = vmatmul.bf16.gmra.mxu0 %v382
      %v462 = vpop.f32.mrf.mxu0
      %v463 = vadd.f32 0.0, %v462
      %v464 = vpop.f32.mrf.mxu0
      %v465 = vadd.f32 0.0, %v464
      %466 = vmatmul.bf16.gmra.mxu0 %v385
      %v467 = vpop.f32.mrf.mxu0
      %v468 = vadd.f32 0.0, %v467
      %v469 = vpop.f32.mrf.mxu0
      %v470 = vadd.f32 0.0, %v469
      %471 = vmatmul.bf16.gmra.mxu0 %v388
      %v472 = vpop.f32.mrf.mxu0
      %v473 = vadd.f32 0.0, %v472
      %v474 = vpop.f32.mrf.mxu0
      %v475 = vadd.f32 0.0, %v474
      %476 = vmatmul.bf16.gmra.mxu0 %v391
      %v477 = vpop.f32.mrf.mxu0
      %v478 = vadd.f32 0.0, %v477
      %v479 = vpop.f32.mrf.mxu0
      %v480 = vadd.f32 0.0, %v479
      %481 = vmatmul.bf16.gmra.mxu0 %v394
      %v482 = vpop.f32.mrf.mxu0
      %v483 = vadd.f32 0.0, %v482
      %v484 = vpop.f32.mrf.mxu0
      %v485 = vadd.f32 0.0, %v484
      %486 = vmatmul.bf16.gmra.mxu0 %v397
      %v487 = vpop.f32.mrf.mxu0
      %v488 = vadd.f32 0.0, %v487
      %v489 = vpop.f32.mrf.mxu0
      %v490 = vadd.f32 0.0, %v489
      %491 = vdwg.mxu0
      %v492 = vld [vmem:[%s2] sm:$0x1]
      %v494 = vperm.slane %v492, 0
      %v496 = vmul.f32 %v413, %v494
      %v497 = vmul.f32 %v415, %v494
      %v498 = vmul.f32 %v418, %v494
      %v499 = vmul.f32 %v420, %v494
      %v500 = vmul.f32 %v423, %v494
      %v501 = vmul.f32 %v425, %v494
      %v502 = vmul.f32 %v428, %v494
      %v503 = vmul.f32 %v430, %v494
      %v504 = vmul.f32 %v433, %v494
      %v505 = vmul.f32 %v435, %v494
      %v506 = vmul.f32 %v438, %v494
      %v507 = vmul.f32 %v440, %v494
      %v508 = vmul.f32 %v443, %v494
      %v509 = vmul.f32 %v445, %v494
      %v510 = vmul.f32 %v448, %v494
      %v511 = vmul.f32 %v450, %v494
      %v512 = vmul.f32 %v453, %v494
      %v513 = vmul.f32 %v455, %v494
      %v514 = vmul.f32 %v458, %v494
      %v515 = vmul.f32 %v460, %v494
      %v516 = vmul.f32 %v463, %v494
      %v517 = vmul.f32 %v465, %v494
      %v518 = vmul.f32 %v468, %v494
      %v519 = vmul.f32 %v470, %v494
      %v520 = vmul.f32 %v473, %v494
      %v521 = vmul.f32 %v475, %v494
      %v522 = vmul.f32 %v478, %v494
      %v523 = vmul.f32 %v480, %v494
      %v524 = vmul.f32 %v483, %v494
      %v525 = vmul.f32 %v485, %v494
      %v526 = vmul.f32 %v488, %v494
      %v527 = vmul.f32 %v490, %v494
      %v528 = vld [vmem:[%s3] sm:$0x1]
      %v530 = vperm.slane %v528, 0
      %v532 = vadd.f32 %v496, %v530
      %v533 = vadd.f32 %v497, %v530
      %v534 = vadd.f32 %v498, %v530
      %v535 = vadd.f32 %v499, %v530
      %v536 = vadd.f32 %v500, %v530
      %v537 = vadd.f32 %v501, %v530
      %v538 = vadd.f32 %v502, %v530
      %v539 = vadd.f32 %v503, %v530
      %v540 = vadd.f32 %v504, %v530
      %v541 = vadd.f32 %v505, %v530
      %v542 = vadd.f32 %v506, %v530
      %v543 = vadd.f32 %v507, %v530
      %v544 = vadd.f32 %v508, %v530
      %v545 = vadd.f32 %v509, %v530
      %v546 = vadd.f32 %v510, %v530
      %v547 = vadd.f32 %v511, %v530
      %v548 = vadd.f32 %v512, %v530
      %v549 = vadd.f32 %v513, %v530
      %v550 = vadd.f32 %v514, %v530
      %v551 = vadd.f32 %v515, %v530
      %v552 = vadd.f32 %v516, %v530
      %v553 = vadd.f32 %v517, %v530
      %v554 = vadd.f32 %v518, %v530
      %v555 = vadd.f32 %v519, %v530
      %v556 = vadd.f32 %v520, %v530
      %v557 = vadd.f32 %v521, %v530
      %v558 = vadd.f32 %v522, %v530
      %v559 = vadd.f32 %v523, %v530
      %v560 = vadd.f32 %v524, %v530
      %v561 = vadd.f32 %v525, %v530
      %v562 = vadd.f32 %v526, %v530
      %v563 = vadd.f32 %v527, %v530
      %564 = vst [vmem:[%s199] sm:$0xff] %v532
      %565 = vst [vmem:[%s199 + $0x8] sm:$0xff] %v533
      %566 = vst [vmem:[%s199 + $0x10] sm:$0xff] %v534
      %567 = vst [vmem:[%s199 + $0x18] sm:$0xff] %v535
      %568 = vst [vmem:[%s199 + $0x20] sm:$0xff] %v536
      %569 = vst [vmem:[%s199 + $0x28] sm:$0xff] %v537
      %570 = vst [vmem:[%s199 + $0x30] sm:$0xff] %v538
      %571 = vst [vmem:[%s199 + $0x38] sm:$0xff] %v539
      %572 = vst [vmem:[%s199 + $0x40] sm:$0xff] %v540
      %573 = vst [vmem:[%s199 + $0x48] sm:$0xff] %v541
      %574 = vst [vmem:[%s199 + $0x50] sm:$0xff] %v542
      %575 = vst [vmem:[%s199 + $0x58] sm:$0xff] %v543
      %576 = vst [vmem:[%s199 + $0x60] sm:$0xff] %v544
      %577 = vst [vmem:[%s199 + $0x68] sm:$0xff] %v545
      %578 = vst [vmem:[%s199 + $0x70] sm:$0xff] %v546
      %579 = vst [vmem:[%s199 + $0x78] sm:$0xff] %v547
      %580 = vst [vmem:[%s199 + $0x80] sm:$0xff] %v548
      %581 = vst [vmem:[%s199 + $0x88] sm:$0xff] %v549
      %582 = vst [vmem:[%s199 + $0x90] sm:$0xff] %v550
      %583 = vst [vmem:[%s199 + $0x98] sm:$0xff] %v551
      %584 = vst [vmem:[%s199 + $0xa0] sm:$0xff] %v552
      %585 = vst [vmem:[%s199 + $0xa8] sm:$0xff] %v553
      %586 = vst [vmem:[%s199 + $0xb0] sm:$0xff] %v554
      %587 = vst [vmem:[%s199 + $0xb8] sm:$0xff] %v555
      %588 = vst [vmem:[%s199 + $0xc0] sm:$0xff] %v556
      %589 = vst [vmem:[%s199 + $0xc8] sm:$0xff] %v557
      %590 = vst [vmem:[%s199 + $0xd0] sm:$0xff] %v558
      %591 = vst [vmem:[%s199 + $0xd8] sm:$0xff] %v559
      %592 = vst [vmem:[%s199 + $0xe0] sm:$0xff] %v560
      %593 = vst [vmem:[%s199 + $0xe8] sm:$0xff] %v561
      %594 = vst [vmem:[%s199 + $0xf0] sm:$0xff] %v562
      %595 = vst [vmem:[%s199 + $0xf8] sm:$0xff] %v563
      %s596 = smul.u32 32, %s15
      %p597 = scmp.lt.s32.totalorder %s596, 63
      %s598 = scalar_select %p597, %s596, 63
      %s599 = smul.addr %s598, 8
      %s600 = scalar_lea.vmem %s4, %s599
      // Predicated region
      $region37: #{edge_enhance_forward.7} parent=35 // pred_check
        %p601 = pneg %p122
      $region38: #{edge_enhance_forward.7} parent=35 // pred_check_branch
        %603 = sbr.rel (%p601) target = $region40
      $region39: #{edge_enhance_forward.7} parent=35 // pred_region
        %s604 = smul.u32 32, %s15
      $region40: #{edge_enhance_forward.7} parent=35 // pred_fallthru
        _
    $region36: #{edge_enhance_forward.7} parent=5 // pred_fallthru
      _
    %p605 = scmp.le.s32.totalorder 2, %s10
    // Predicated region
    $region41: #{edge_enhance_forward.7} parent=5 // pred_check
      %p606 = pneg %p605
    $region42: #{edge_enhance_forward.7} parent=5 // pred_check_branch
      %608 = sbr.rel (%p606) target = $region44
    $region43: #{edge_enhance_forward.7} parent=5 // pred_region
      %s609 = ssub.s32 %s10, 2
      // Predicated region
      $region45: #{edge_enhance_forward.7} parent=43 // pred_check
        %p610 = pneg %p128
      $region46: #{edge_enhance_forward.7} parent=43 // pred_check_branch
        %612 = sbr.rel (%p610) target = $region48
      $region47: #{edge_enhance_forward.7} parent=43 // pred_region
        %s613 = smul.u32 32, %s16
        %p614 = scmp.lt.s32.totalorder %s613, 63
        %s615 = scalar_select %p614, %s613, 63
        %s616 = smul.addr %s615, 8
        %s617 = scalar_lea.vmem %s4, %s616
      $region48: #{edge_enhance_forward.7} parent=43 // pred_fallthru
        _
    $region44: #{edge_enhance_forward.7} parent=5 // pred_fallthru
      _
  $region6: #{edge_enhance_forward.7} parent=0 // loop_footer
    %s14 = sadd.s32 1, %s10
  $region7: #{edge_enhance_forward.7} parent=0 // loop_footer_branch
    %9 = sbr.rel target = $region3
  $region8: #{edge_enhance_forward.7} parent=0 // loop_exit
    _

// kernel: edge_enhance_forward.5
$region0: #{edge_enhance_forward.5}
  #allocation0 [shape = 'u32[]', space=smem, size = 0x4, offset = 0x4, fixed_abs, tag = 'smem constant byte address 0x4 - core index']
  #allocation1 [shape = 'u32[72,128]{1,0:T(1,128)}', space=vmem, size = 0x9000, scoped, tag = 'internal scratch']
  %s0 = inlined_call_operand.vmem [shape: bf16[512,4], index: 0, kind: input, shape index: {}]
  %s1 = inlined_call_operand.vmem [shape: bf16[4,128], index: 1, kind: input, shape index: {}]
  %s2 = inlined_call_operand.vmem [shape: f32[1,128], index: 2, kind: input, shape index: {}]
  %s3 = inlined_call_operand.vmem [shape: f32[1,128], index: 3, kind: input, shape index: {}]
  %s4 = inlined_call_operand.vmem [shape: f32[512,128], index: 4, kind: output, shape index: {}]
  %s5 = sld [smem:[#allocation0]]
  $region49: #{edge_enhance_forward.5} parent=0
    _
  %s7 = ssub.s32 1, %s5
  %s8 = scalar_select 0, %s7, %s5
  loop: start=0, step=1, limit=4
  $region2: #{edge_enhance_forward.5} parent=0 // loop_pre_header
    _
  $region3: #{edge_enhance_forward.5} parent=0 // loop_header
    %s10 = sphi 0, %s14
    %p11 = scmp.ge.s32.totalorder %s10, 4
    %s20 = sphi 0, %s22
    %s23 = sphi 0, %s20
    %s24 = sphi 0, %s23
    %s40 = sphi 0, %s24
    %s44 = sphi 0, %s44
    %s46 = sphi 0, %s44
    %s47 = sphi 0, %s46
    %s61 = sphi 0, %s47
    %s65 = sphi 0, %s65
    %s67 = sphi 0, %s65
    %s68 = sphi 0, %s67
    %s82 = sphi 0, %s68
    %s86 = sphi 0, %s86
    %s88 = sphi 0, %s86
    %s89 = sphi 0, %s88
    %s103 = sphi 0, %s89
    %s109 = sphi 0, %s111
    %s112 = sphi 0, %s109
    %s113 = sphi 0, %s112
    %s129 = sphi 0, %s113
  $region4: #{edge_enhance_forward.5} parent=0 // loop_header_branch
    %13 = sbr.rel (%p11) target = $region8
  $region5: #{edge_enhance_forward.5} parent=0 // loop_body
    %s15 = ssub.s32 %s10, 1
    %s16 = ssub.s32 %s10, 2
    %s17 = sadd.s32 %s10, 1
    %s18 = ssub.s32 %s10, %s17
    %p19 = scmp.eq.s32.totalorder %s18, 0
    %s21 = sadd.s32 %s20, 1
    %s22 = scalar_select %p19, %s20, %s21
    %p25 = pneg %p19
    %p26 = scmp.eq.s32.totalorder %s10, 1
    %p27 = por %p25, %p26
    %p28 = scmp.ne.s32.totalorder %s20, %s23
    %p29 = scmp.eq.s32.totalorder %s10, 0
    %p30 = por %p28, %p29
    %p31 = scmp.ne.s32.totalorder %s20, %s23
    %p32 = scmp.eq.s32.totalorder %s15, 1
    %p33 = por %p31, %p32
    %p34 = scmp.ne.s32.totalorder %s23, %s24
    %p35 = scmp.eq.s32.totalorder %s15, 0
    %p36 = por %p34, %p35
    %p37 = scmp.ne.s32.totalorder %s23, %s24
    %p38 = scmp.eq.s32.totalorder %s16, 1
    %p39 = por %p37, %p38
    %p41 = scmp.ne.s32.totalorder %s24, %s40
    %p42 = scmp.eq.s32.totalorder %s16, 0
    %p43 = por %p41, %p42
    %s45 = sadd.s32 %s44, 1
    %p48 = scmp.eq.s32.totalorder %s10, 1
    %p49 = scmp.ne.s32.totalorder %s44, %s46
    %p50 = scmp.eq.s32.totalorder %s10, 0
    %p51 = por %p49, %p50
    %p52 = scmp.ne.s32.totalorder %s44, %s46
    %p53 = scmp.eq.s32.totalorder %s15, 1
    %p54 = por %p52, %p53
    %p55 = scmp.ne.s32.totalorder %s46, %s47
    %p56 = scmp.eq.s32.totalorder %s15, 0
    %p57 = por %p55, %p56
    %p58 = scmp.ne.s32.totalorder %s46, %s47
    %p59 = scmp.eq.s32.totalorder %s16, 1
    %p60 = por %p58, %p59
    %p62 = scmp.ne.s32.totalorder %s47, %s61
    %p63 = scmp.eq.s32.totalorder %s16, 0
    %p64 = por %p62, %p63
    %s66 = sadd.s32 %s65, 1
    %p69 = scmp.eq.s32.totalorder %s10, 1
    %p70 = scmp.ne.s32.totalorder %s65, %s67
    %p71 = scmp.eq.s32.totalorder %s10, 0
    %p72 = por %p70, %p71
    %p73 = scmp.ne.s32.totalorder %s65, %s67
    %p74 = scmp.eq.s32.totalorder %s15, 1
    %p75 = por %p73, %p74
    %p76 = scmp.ne.s32.totalorder %s67, %s68
    %p77 = scmp.eq.s32.totalorder %s15, 0
    %p78 = por %p76, %p77
    %p79 = scmp.ne.s32.totalorder %s67, %s68
    %p80 = scmp.eq.s32.totalorder %s16, 1
    %p81 = por %p79, %p80
    %p83 = scmp.ne.s32.totalorder %s68, %s82
    %p84 = scmp.eq.s32.totalorder %s16, 0
    %p85 = por %p83, %p84
    %s87 = sadd.s32 %s86, 1
    %p90 = scmp.eq.s32.totalorder %s10, 1
    %p91 = scmp.ne.s32.totalorder %s86, %s88
    %p92 = scmp.eq.s32.totalorder %s10, 0
    %p93 = por %p91, %p92
    %p94 = scmp.ne.s32.totalorder %s86, %s88
    %p95 = scmp.eq.s32.totalorder %s15, 1
    %p96 = por %p94, %p95
    %p97 = scmp.ne.s32.totalorder %s88, %s89
    %p98 = scmp.eq.s32.totalorder %s15, 0
    %p99 = por %p97, %p98
    %p100 = scmp.ne.s32.totalorder %s88, %s89
    %p101 = scmp.eq.s32.totalorder %s16, 1
    %p102 = por %p100, %p101
    %p104 = scmp.ne.s32.totalorder %s89, %s103
    %p105 = scmp.eq.s32.totalorder %s16, 0
    %p106 = por %p104, %p105
    %s107 = ssub.s32 %s10, %s17
    %p108 = scmp.eq.s32.totalorder %s107, 0
    %s110 = sadd.s32 %s109, 1
    %s111 = scalar_select %p108, %s109, %s110
    %p114 = pneg %p108
    %p115 = scmp.eq.s32.totalorder %s10, 1
    %p116 = por %p114, %p115
    %p117 = scmp.ne.s32.totalorder %s109, %s112
    %p118 = scmp.eq.s32.totalorder %s10, 0
    %p119 = por %p117, %p118
    %p120 = scmp.ne.s32.totalorder %s109, %s112
    %p121 = scmp.eq.s32.totalorder %s15, 1
    %p122 = por %p120, %p121
    %p123 = scmp.ne.s32.totalorder %s112, %s113
    %p124 = scmp.eq.s32.totalorder %s15, 0
    %p125 = por %p123, %p124
    %p126 = scmp.ne.s32.totalorder %s112, %s113
    %p127 = scmp.eq.s32.totalorder %s16, 1
    %p128 = por %p126, %p127
    %p130 = scmp.ne.s32.totalorder %s113, %s129
    %p131 = scmp.eq.s32.totalorder %s16, 0
    %p132 = por %p130, %p131
    %p133 = scmp.le.s32.totalorder 1, %s10
    %p134 = scmp.lt.s32.totalorder %s10, 3
    %p135 = pnand %p133, %p134
    %p136 = pneg %p135
    // Predicated region
    $region9: #{edge_enhance_forward.5} parent=5 // pred_check
      _
    $region10: #{edge_enhance_forward.5} parent=5 // pred_check_branch
      %138 = sbr.rel (%p135) target = $region12
    $region11: #{edge_enhance_forward.5} parent=5 // pred_region
      %s139 = ssub.s32 %s10, 1
      // Predicated region
      $region13: #{edge_enhance_forward.5} parent=11 // pred_check
        %p140 = pneg %p57
      $region14: #{edge_enhance_forward.5} parent=11 // pred_check_branch
        %142 = sbr.rel (%p140) target = $region16
      $region15: #{edge_enhance_forward.5} parent=11 // pred_region
        _
      $region16: #{edge_enhance_forward.5} parent=11 // pred_fallthru
        _
      // Predicated region
      $region17: #{edge_enhance_forward.5} parent=11 // pred_check
        %p143 = pneg %p78
      $region18: #{edge_enhance_forward.5} parent=11 // pred_check_branch
        %145 = sbr.rel (%p143) target = $region20
      $region19: #{edge_enhance_forward.5} parent=11 // pred_region
        _
      $region20: #{edge_enhance_forward.5} parent=11 // pred_fallthru
        _
      // Predicated region
      $region21: #{edge_enhance_forward.5} parent=11 // pred_check
        %p146 = pneg %p99
      $region22: #{edge_enhance_forward.5} parent=11 // pred_check_branch
        %148 = sbr.rel (%p146) target = $region24
      $region23: #{edge_enhance_forward.5} parent=11 // pred_region
        _
      $region24: #{edge_enhance_forward.5} parent=11 // pred_fallthru
        _
    $region12: #{edge_enhance_forward.5} parent=5 // pred_fallthru
      _
    %p149 = scmp.lt.s32.totalorder %s10, 2
    // Predicated region
    $region25: #{edge_enhance_forward.5} parent=5 // pred_check
      %p150 = pneg %p149
    $region26: #{edge_enhance_forward.5} parent=5 // pred_check_branch
      %152 = sbr.rel (%p150) target = $region28
    $region27: #{edge_enhance_forward.5} parent=5 // pred_region
      // Predicated region
      $region29: #{edge_enhance_forward.5} parent=27 // pred_check
        %p153 = pneg %p30
      $region30: #{edge_enhance_forward.5} parent=27 // pred_check_branch
        %155 = sbr.rel (%p153) target = $region32
      $region31: #{edge_enhance_forward.5} parent=27 // pred_region
        %s156 = smul.u32 32, %s10
        %p157 = scmp.lt.s32.totalorder %s156, 63
        %s158 = scalar_select %p157, %s156, 63
        %s159 = smul.addr %s158, 4
        %s160 = scalar_lea.vmem %s0, %s159
        %s161 = smul.u32 32, %s10
      $region32: #{edge_enhance_forward.5} parent=27 // pred_fallthru
        _
    $region28: #{edge_enhance_forward.5} parent=5 // pred_fallthru
      _
    %p162 = scmp.le.s32.totalorder 1, %s10
    %p163 = scmp.lt.s32.totalorder %s10, 3
    %p164 = pnand %p162, %p163
    %p165 = pneg %p164
    // Predicated region
    $region33: #{edge_enhance_forward.5} parent=5 // pred_check
      _
    $region34: #{edge_enhance_forward.5} parent=5 // pred_check_branch
      %167 = sbr.rel (%p164) target = $region36
    $region35: #{edge_enhance_forward.5} parent=5 // pred_region
      %s168 = ssub.s32 %s10, 1
      %s169 = smul.u32 32, %s15
      %p170 = scmp.lt.s32.totalorder %s169, 63
      %s171 = scalar_select %p170, %s169, 63
      %s172 = smul.addr %s171, 4
      %s173 = scalar_lea.vmem %s0, %s172
      %p174 = pneg %p36
      %p175 = pneg %p33
      %p176 = pneg %p57
      %p177 = pneg %p54
      %p178 = pneg %p78
      %p179 = pneg %p75
      %p180 = pneg %p99
      %p181 = pneg %p96
      %p182 = pneg %p125
      %p183 = pneg %p122
      %s184 = smul.u32 32, %s15
      %p185 = scmp.lt.s32.totalorder %s184, 63
      %s186 = scalar_select %p185, %s184, 63
      %s187 = smul.addr %s186, 8
      %s188 = scalar_lea.vmem %s4, %s187
      %s189 = smul.u32 32, %s15
      %p190 = scmp.lt.s32.totalorder %s189, 63
      %s191 = scalar_select %p190, %s189, 63
      %s192 = smul.addr %s191, 4
      %s193 = scalar_lea.vmem %s0, %s192
      %s194 = smul.u32 32, %s15
      %s195 = smul.u32 32, %s15
      %p196 = scmp.lt.s32.totalorder %s195, 63
      %s197 = scalar_select %p196, %s195, 63
      %s198 = smul.addr %s197, 8
      %s199 = scalar_lea.vmem %s4, %s198
      %s200 = smul.u32 32, %s15
      %v202 = vld [vmem:[%s193] sm:$0xf]
      %v203 = vld [vmem:[%s193 + $0x4] sm:$0xf]
      %v204 = vld [vmem:[%s193 + $0x8] sm:$0xf]
      %v205 = vld [vmem:[%s193 + $0xc] sm:$0xf]
      %v206 = vld [vmem:[%s193 + $0x10] sm:$0xf]
      %v207 = vld [vmem:[%s193 + $0x14] sm:$0xf]
      %v208 = vld [vmem:[%s193 + $0x18] sm:$0xf]
      %v209 = vld [vmem:[%s193 + $0x1c] sm:$0xf]
      %v210 = vld [vmem:[%s193 + $0x20] sm:$0xf]
      %v211 = vld [vmem:[%s193 + $0x24] sm:$0xf]
      %v212 = vld [vmem:[%s193 + $0x28] sm:$0xf]
      %v213 = vld [vmem:[%s193 + $0x2c] sm:$0xf]
      %v214 = vld [vmem:[%s193 + $0x30] sm:$0xf]
      %v215 = vld [vmem:[%s193 + $0x34] sm:$0xf]
      %v216 = vld [vmem:[%s193 + $0x38] sm:$0xf]
      %v217 = vld [vmem:[%s193 + $0x3c] sm:$0xf]
      %v218 = vld [vmem:[%s193 + $0x40] sm:$0xf]
      %v219 = vld [vmem:[%s193 + $0x44] sm:$0xf]
      %v220 = vld [vmem:[%s193 + $0x48] sm:$0xf]
      %v221 = vld [vmem:[%s193 + $0x4c] sm:$0xf]
      %v222 = vld [vmem:[%s193 + $0x50] sm:$0xf]
      %v223 = vld [vmem:[%s193 + $0x54] sm:$0xf]
      %v224 = vld [vmem:[%s193 + $0x58] sm:$0xf]
      %v225 = vld [vmem:[%s193 + $0x5c] sm:$0xf]
      %v226 = vld [vmem:[%s193 + $0x60] sm:$0xf]
      %v227 = vld [vmem:[%s193 + $0x64] sm:$0xf]
      %v228 = vld [vmem:[%s193 + $0x68] sm:$0xf]
      %v229 = vld [vmem:[%s193 + $0x6c] sm:$0xf]
      %v230 = vld [vmem:[%s193 + $0x70] sm:$0xf]
      %v231 = vld [vmem:[%s193 + $0x74] sm:$0xf]
      %v232 = vld [vmem:[%s193 + $0x78] sm:$0xf]
      %v233 = vld [vmem:[%s193 + $0x7c] sm:$0xf]
      %v234 = vld [vmem:[%s1] sm:$0x3]
      %v267 = vunpack.c.l.b16 %v202
      %v268 = vunpack.c.l.b16 %v203
      %v269 = vunpack.c.l.b16 %v204
      %v270 = vunpack.c.l.b16 %v205
      %v271 = vunpack.c.l.b16 %v206
      %v272 = vunpack.c.l.b16 %v207
      %v273 = vunpack.c.l.b16 %v208
      %v274 = vunpack.c.l.b16 %v209
      %v275 = vunpack.c.l.b16 %v210
      %v276 = vunpack.c.l.b16 %v211
      %v277 = vunpack.c.l.b16 %v212
      %v278 = vunpack.c.l.b16 %v213
      %v279 = vunpack.c.l.b16 %v214
      %v280 = vunpack.c.l.b16 %v215
      %v281 = vunpack.c.l.b16 %v216
      %v282 = vunpack.c.l.b16 %v217
      %v283 = vunpack.c.l.b16 %v218
      %v284 = vunpack.c.l.b16 %v219
      %v285 = vunpack.c.l.b16 %v220
      %v286 = vunpack.c.l.b16 %v221
      %v287 = vunpack.c.l.b16 %v222
      %v288 = vunpack.c.l.b16 %v223
      %v289 = vunpack.c.l.b16 %v224
      %v290 = vunpack.c.l.b16 %v225
      %v291 = vunpack.c.l.b16 %v226
      %v292 = vunpack.c.l.b16 %v227
      %v293 = vunpack.c.l.b16 %v228
      %v294 = vunpack.c.l.b16 %v229
      %v295 = vunpack.c.l.b16 %v230
      %v296 = vunpack.c.l.b16 %v231
      %v297 = vunpack.c.l.b16 %v232
      %v298 = vunpack.c.l.b16 %v233
      %v299 = vpack.c.b16 %v268, %v267
      %v300 = vpack.c.b16 %v270, %v269
      %v301 = vpack.c.b16 %v272, %v271
      %v302 = vpack.c.b16 %v274, %v273
      %v303 = vpack.c.b16 %v276, %v275
      %v304 = vpack.c.b16 %v278, %v277
      %v305 = vpack.c.b16 %v280, %v279
      %v306 = vpack.c.b16 %v282, %v281
      %v307 = vpack.c.b16 %v284, %v283
      %v308 = vpack.c.b16 %v286, %v285
      %v309 = vpack.c.b16 %v288, %v287
      %v310 = vpack.c.b16 %v290, %v289
      %v311 = vpack.c.b16 %v292, %v291
      %v312 = vpack.c.b16 %v294, %v293
      %v313 = vpack.c.b16 %v296, %v295
      %v314 = vpack.c.b16 %v298, %v297
      %vm315 = vcmask 31744
      %v317 = vsel %vm315, %v299, 0
      %v320 = vsel %vm315, %v300, 0
      %v323 = vsel %vm315, %v301, 0
      %v326 = vsel %vm315, %v302, 0
      %v329 = vsel %vm315, %v303, 0
      %v332 = vsel %vm315, %v304, 0
      %v335 = vsel %vm315, %v305, 0
      %v338 = vsel %vm315, %v306, 0
      %v341 = vsel %vm315, %v307, 0
      %v344 = vsel %vm315, %v308, 0
      %v347 = vsel %vm315, %v309, 0
      %v350 = vsel %vm315, %v310, 0
      %v353 = vsel %vm315, %v311, 0
      %v356 = vsel %vm315, %v312, 0
      %v359 = vsel %vm315, %v313, 0
      %v362 = vsel %vm315, %v314, 0
      %vm364 = vcmask 1041408
      %v366 = vsel %vm364, %v234, 0
      %368 = vmatpush.bf16.msra.mxu0 0
      %369 = vmatpush.bf16.msra.mxu0 0
      %370 = vmatpush.bf16.msra.mxu0 0
      %371 = vmatpush.bf16.msra.mxu0 0
      %372 = vmatpush.bf16.msra.mxu0 0
      %373 = vmatpush.bf16.msra.mxu0 0
      %374 = vmatpush.bf16.msra.mxu0 0
      %375 = vmatpush.bf16.msra.mxu0 %v366
      %376 = vmatmul.bf16.gmra.mxu0 %v317
      %v377 = vpop.f32.mrf.mxu0
      %v378 = vadd.f32 0.0, %v377
      %v379 = vpop.f32.mrf.mxu0
      %v380 = vadd.f32 0.0, %v379
      %381 = vmatmul.bf16.gmra.mxu0 %v320
      %v382 = vpop.f32.mrf.mxu0
      %v383 = vadd.f32 0.0, %v382
      %v384 = vpop.f32.mrf.mxu0
      %v385 = vadd.f32 0.0, %v384
      %386 = vmatmul.bf16.gmra.mxu0 %v323
      %v387 = vpop.f32.mrf.mxu0
      %v388 = vadd.f32 0.0, %v387
      %v389 = vpop.f32.mrf.mxu0
      %v390 = vadd.f32 0.0, %v389
      %391 = vmatmul.bf16.gmra.mxu0 %v326
      %v392 = vpop.f32.mrf.mxu0
      %v393 = vadd.f32 0.0, %v392
      %v394 = vpop.f32.mrf.mxu0
      %v395 = vadd.f32 0.0, %v394
      %396 = vmatmul.bf16.gmra.mxu0 %v329
      %v397 = vpop.f32.mrf.mxu0
      %v398 = vadd.f32 0.0, %v397
      %v399 = vpop.f32.mrf.mxu0
      %v400 = vadd.f32 0.0, %v399
      %401 = vmatmul.bf16.gmra.mxu0 %v332
      %v402 = vpop.f32.mrf.mxu0
      %v403 = vadd.f32 0.0, %v402
      %v404 = vpop.f32.mrf.mxu0
      %v405 = vadd.f32 0.0, %v404
      %406 = vmatmul.bf16.gmra.mxu0 %v335
      %v407 = vpop.f32.mrf.mxu0
      %v408 = vadd.f32 0.0, %v407
      %v409 = vpop.f32.mrf.mxu0
      %v410 = vadd.f32 0.0, %v409
      %411 = vmatmul.bf16.gmra.mxu0 %v338
      %v412 = vpop.f32.mrf.mxu0
      %v413 = vadd.f32 0.0, %v412
      %v414 = vpop.f32.mrf.mxu0
      %v415 = vadd.f32 0.0, %v414
      %416 = vmatmul.bf16.gmra.mxu0 %v341
      %v417 = vpop.f32.mrf.mxu0
      %v418 = vadd.f32 0.0, %v417
      %v419 = vpop.f32.mrf.mxu0
      %v420 = vadd.f32 0.0, %v419
      %421 = vmatmul.bf16.gmra.mxu0 %v344
      %v422 = vpop.f32.mrf.mxu0
      %v423 = vadd.f32 0.0, %v422
      %v424 = vpop.f32.mrf.mxu0
      %v425 = vadd.f32 0.0, %v424
      %426 = vmatmul.bf16.gmra.mxu0 %v347
      %v427 = vpop.f32.mrf.mxu0
      %v428 = vadd.f32 0.0, %v427
      %v429 = vpop.f32.mrf.mxu0
      %v430 = vadd.f32 0.0, %v429
      %431 = vmatmul.bf16.gmra.mxu0 %v350
      %v432 = vpop.f32.mrf.mxu0
      %v433 = vadd.f32 0.0, %v432
      %v434 = vpop.f32.mrf.mxu0
      %v435 = vadd.f32 0.0, %v434
      %436 = vmatmul.bf16.gmra.mxu0 %v353
      %v437 = vpop.f32.mrf.mxu0
      %v438 = vadd.f32 0.0, %v437
      %v439 = vpop.f32.mrf.mxu0
      %v440 = vadd.f32 0.0, %v439
      %441 = vmatmul.bf16.gmra.mxu0 %v356
      %v442 = vpop.f32.mrf.mxu0
      %v443 = vadd.f32 0.0, %v442
      %v444 = vpop.f32.mrf.mxu0
      %v445 = vadd.f32 0.0, %v444
      %446 = vmatmul.bf16.gmra.mxu0 %v359
      %v447 = vpop.f32.mrf.mxu0
      %v448 = vadd.f32 0.0, %v447
      %v449 = vpop.f32.mrf.mxu0
      %v450 = vadd.f32 0.0, %v449
      %451 = vmatmul.bf16.gmra.mxu0 %v362
      %v452 = vpop.f32.mrf.mxu0
      %v453 = vadd.f32 0.0, %v452
      %v454 = vpop.f32.mrf.mxu0
      %v455 = vadd.f32 0.0, %v454
      %456 = vdwg.mxu0
      %v457 = vld [vmem:[%s2] sm:$0x1]
      %v459 = vperm.slane %v457, 0
      %v461 = vmul.f32 %v378, %v459
      %v462 = vmul.f32 %v380, %v459
      %v463 = vmul.f32 %v383, %v459
      %v464 = vmul.f32 %v385, %v459
      %v465 = vmul.f32 %v388, %v459
      %v466 = vmul.f32 %v390, %v459
      %v467 = vmul.f32 %v393, %v459
      %v468 = vmul.f32 %v395, %v459
      %v469 = vmul.f32 %v398, %v459
      %v470 = vmul.f32 %v400, %v459
      %v471 = vmul.f32 %v403, %v459
      %v472 = vmul.f32 %v405, %v459
      %v473 = vmul.f32 %v408, %v459
      %v474 = vmul.f32 %v410, %v459
      %v475 = vmul.f32 %v413, %v459
      %v476 = vmul.f32 %v415, %v459
      %v477 = vmul.f32 %v418, %v459
      %v478 = vmul.f32 %v420, %v459
      %v479 = vmul.f32 %v423, %v459
      %v480 = vmul.f32 %v425, %v459
      %v481 = vmul.f32 %v428, %v459
      %v482 = vmul.f32 %v430, %v459
      %v483 = vmul.f32 %v433, %v459
      %v484 = vmul.f32 %v435, %v459
      %v485 = vmul.f32 %v438, %v459
      %v486 = vmul.f32 %v440, %v459
      %v487 = vmul.f32 %v443, %v459
      %v488 = vmul.f32 %v445, %v459
      %v489 = vmul.f32 %v448, %v459
      %v490 = vmul.f32 %v450, %v459
      %v491 = vmul.f32 %v453, %v459
      %v492 = vmul.f32 %v455, %v459
      %v493 = vld [vmem:[%s3] sm:$0x1]
      %v495 = vperm.slane %v493, 0
      %v497 = vadd.f32 %v461, %v495
      %v498 = vadd.f32 %v462, %v495
      %v499 = vadd.f32 %v463, %v495
      %v500 = vadd.f32 %v464, %v495
      %v501 = vadd.f32 %v465, %v495
      %v502 = vadd.f32 %v466, %v495
      %v503 = vadd.f32 %v467, %v495
      %v504 = vadd.f32 %v468, %v495
      %v505 = vadd.f32 %v469, %v495
      %v506 = vadd.f32 %v470, %v495
      %v507 = vadd.f32 %v471, %v495
      %v508 = vadd.f32 %v472, %v495
      %v509 = vadd.f32 %v473, %v495
      %v510 = vadd.f32 %v474, %v495
      %v511 = vadd.f32 %v475, %v495
      %v512 = vadd.f32 %v476, %v495
      %v513 = vadd.f32 %v477, %v495
      %v514 = vadd.f32 %v478, %v495
      %v515 = vadd.f32 %v479, %v495
      %v516 = vadd.f32 %v480, %v495
      %v517 = vadd.f32 %v481, %v495
      %v518 = vadd.f32 %v482, %v495
      %v519 = vadd.f32 %v483, %v495
      %v520 = vadd.f32 %v484, %v495
      %v521 = vadd.f32 %v485, %v495
      %v522 = vadd.f32 %v486, %v495
      %v523 = vadd.f32 %v487, %v495
      %v524 = vadd.f32 %v488, %v495
      %v525 = vadd.f32 %v489, %v495
      %v526 = vadd.f32 %v490, %v495
      %v527 = vadd.f32 %v491, %v495
      %v528 = vadd.f32 %v492, %v495
      %529 = vst [vmem:[%s199] sm:$0xff] %v497
      %530 = vst [vmem:[%s199 + $0x8] sm:$0xff] %v498
      %531 = vst [vmem:[%s199 + $0x10] sm:$0xff] %v499
      %532 = vst [vmem:[%s199 + $0x18] sm:$0xff] %v500
      %533 = vst [vmem:[%s199 + $0x20] sm:$0xff] %v501
      %534 = vst [vmem:[%s199 + $0x28] sm:$0xff] %v502
      %535 = vst [vmem:[%s199 + $0x30] sm:$0xff] %v503
      %536 = vst [vmem:[%s199 + $0x38] sm:$0xff] %v504
      %537 = vst [vmem:[%s199 + $0x40] sm:$0xff] %v505
      %538 = vst [vmem:[%s199 + $0x48] sm:$0xff] %v506
      %539 = vst [vmem:[%s199 + $0x50] sm:$0xff] %v507
      %540 = vst [vmem:[%s199 + $0x58] sm:$0xff] %v508
      %541 = vst [vmem:[%s199 + $0x60] sm:$0xff] %v509
      %542 = vst [vmem:[%s199 + $0x68] sm:$0xff] %v510
      %543 = vst [vmem:[%s199 + $0x70] sm:$0xff] %v511
      %544 = vst [vmem:[%s199 + $0x78] sm:$0xff] %v512
      %545 = vst [vmem:[%s199 + $0x80] sm:$0xff] %v513
      %546 = vst [vmem:[%s199 + $0x88] sm:$0xff] %v514
      %547 = vst [vmem:[%s199 + $0x90] sm:$0xff] %v515
      %548 = vst [vmem:[%s199 + $0x98] sm:$0xff] %v516
      %549 = vst [vmem:[%s199 + $0xa0] sm:$0xff] %v517
      %550 = vst [vmem:[%s199 + $0xa8] sm:$0xff] %v518
      %551 = vst [vmem:[%s199 + $0xb0] sm:$0xff] %v519
      %552 = vst [vmem:[%s199 + $0xb8] sm:$0xff] %v520
      %553 = vst [vmem:[%s199 + $0xc0] sm:$0xff] %v521
      %554 = vst [vmem:[%s199 + $0xc8] sm:$0xff] %v522
      %555 = vst [vmem:[%s199 + $0xd0] sm:$0xff] %v523
      %556 = vst [vmem:[%s199 + $0xd8] sm:$0xff] %v524
      %557 = vst [vmem:[%s199 + $0xe0] sm:$0xff] %v525
      %558 = vst [vmem:[%s199 + $0xe8] sm:$0xff] %v526
      %559 = vst [vmem:[%s199 + $0xf0] sm:$0xff] %v527
      %560 = vst [vmem:[%s199 + $0xf8] sm:$0xff] %v528
      %s561 = smul.u32 32, %s15
      %p562 = scmp.lt.s32.totalorder %s561, 63
      %s563 = scalar_select %p562, %s561, 63
      %s564 = smul.addr %s563, 8
      %s565 = scalar_lea.vmem %s4, %s564
      // Predicated region
      $region37: #{edge_enhance_forward.5} parent=35 // pred_check
        %p566 = pneg %p122
      $region38: #{edge_enhance_forward.5} parent=35 // pred_check_branch
        %568 = sbr.rel (%p566) target = $region40
      $region39: #{edge_enhance_forward.5} parent=35 // pred_region
        %s569 = smul.u32 32, %s15
      $region40: #{edge_enhance_forward.5} parent=35 // pred_fallthru
        _
    $region36: #{edge_enhance_forward.5} parent=5 // pred_fallthru
      _
    %p570 = scmp.le.s32.totalorder 2, %s10
    // Predicated region
    $region41: #{edge_enhance_forward.5} parent=5 // pred_check
      %p571 = pneg %p570
    $region42: #{edge_enhance_forward.5} parent=5 // pred_check_branch
      %573 = sbr.rel (%p571) target = $region44
    $region43: #{edge_enhance_forward.5} parent=5 // pred_region
      %s574 = ssub.s32 %s10, 2
      // Predicated region
      $region45: #{edge_enhance_forward.5} parent=43 // pred_check
        %p575 = pneg %p128
      $region46: #{edge_enhance_forward.5} parent=43 // pred_check_branch
        %577 = sbr.rel (%p575) target = $region48
      $region47: #{edge_enhance_forward.5} parent=43 // pred_region
        %s578 = smul.u32 32, %s16
        %p579 = scmp.lt.s32.totalorder %s578, 63
        %s580 = scalar_select %p579, %s578, 63
        %s581 = smul.addr %s580, 8
        %s582 = scalar_lea.vmem %s4, %s581
      $region48: #{edge_enhance_forward.5} parent=43 // pred_fallthru
        _
    $region44: #{edge_enhance_forward.5} parent=5 // pred_fallthru
      _
  $region6: #{edge_enhance_forward.5} parent=0 // loop_footer
    %s14 = sadd.s32 1, %s10
  $region7: #{edge_enhance_forward.5} parent=0 // loop_footer_branch
    %9 = sbr.rel target = $region3
  $region8: #{edge_enhance_forward.5} parent=0 // loop_exit
    _

// kernel: edge_enhance_forward.9
$region0: #{edge_enhance_forward.9}
  #allocation0 [shape = 'u32[]', space=smem, size = 0x4, offset = 0x4, fixed_abs, tag = 'smem constant byte address 0x4 - core index']
  #allocation1 [shape = 'u32[72,128]{1,0:T(1,128)}', space=vmem, size = 0x9000, scoped, tag = 'internal scratch']
  %s0 = inlined_call_operand.vmem [shape: bf16[512,72], index: 0, kind: input, shape index: {}]
  %s1 = inlined_call_operand.vmem [shape: bf16[72,128], index: 1, kind: input, shape index: {}]
  %s2 = inlined_call_operand.vmem [shape: f32[1,128], index: 2, kind: input, shape index: {}]
  %s3 = inlined_call_operand.vmem [shape: f32[1,128], index: 3, kind: input, shape index: {}]
  %s4 = inlined_call_operand.vmem [shape: f32[512,128], index: 4, kind: output, shape index: {}]
  %s5 = sld [smem:[#allocation0]]
  $region49: #{edge_enhance_forward.9} parent=0
    _
  %s7 = ssub.s32 1, %s5
  %s8 = scalar_select 0, %s7, %s5
  loop: start=0, step=1, limit=4
  $region2: #{edge_enhance_forward.9} parent=0 // loop_pre_header
    _
  $region3: #{edge_enhance_forward.9} parent=0 // loop_header
    %s10 = sphi 0, %s14
    %p11 = scmp.ge.s32.totalorder %s10, 4
    %s20 = sphi 0, %s22
    %s23 = sphi 0, %s20
    %s24 = sphi 0, %s23
    %s40 = sphi 0, %s24
    %s44 = sphi 0, %s44
    %s46 = sphi 0, %s44
    %s47 = sphi 0, %s46
    %s61 = sphi 0, %s47
    %s65 = sphi 0, %s65
    %s67 = sphi 0, %s65
    %s68 = sphi 0, %s67
    %s82 = sphi 0, %s68
    %s86 = sphi 0, %s86
    %s88 = sphi 0, %s86
    %s89 = sphi 0, %s88
    %s103 = sphi 0, %s89
    %s109 = sphi 0, %s111
    %s112 = sphi 0, %s109
    %s113 = sphi 0, %s112
    %s129 = sphi 0, %s113
  $region4: #{edge_enhance_forward.9} parent=0 // loop_header_branch
    %13 = sbr.rel (%p11) target = $region8
  $region5: #{edge_enhance_forward.9} parent=0 // loop_body
    %s15 = ssub.s32 %s10, 1
    %s16 = ssub.s32 %s10, 2
    %s17 = sadd.s32 %s10, 1
    %s18 = ssub.s32 %s10, %s17
    %p19 = scmp.eq.s32.totalorder %s18, 0
    %s21 = sadd.s32 %s20, 1
    %s22 = scalar_select %p19, %s20, %s21
    %p25 = pneg %p19
    %p26 = scmp.eq.s32.totalorder %s10, 1
    %p27 = por %p25, %p26
    %p28 = scmp.ne.s32.totalorder %s20, %s23
    %p29 = scmp.eq.s32.totalorder %s10, 0
    %p30 = por %p28, %p29
    %p31 = scmp.ne.s32.totalorder %s20, %s23
    %p32 = scmp.eq.s32.totalorder %s15, 1
    %p33 = por %p31, %p32
    %p34 = scmp.ne.s32.totalorder %s23, %s24
    %p35 = scmp.eq.s32.totalorder %s15, 0
    %p36 = por %p34, %p35
    %p37 = scmp.ne.s32.totalorder %s23, %s24
    %p38 = scmp.eq.s32.totalorder %s16, 1
    %p39 = por %p37, %p38
    %p41 = scmp.ne.s32.totalorder %s24, %s40
    %p42 = scmp.eq.s32.totalorder %s16, 0
    %p43 = por %p41, %p42
    %s45 = sadd.s32 %s44, 1
    %p48 = scmp.eq.s32.totalorder %s10, 1
    %p49 = scmp.ne.s32.totalorder %s44, %s46
    %p50 = scmp.eq.s32.totalorder %s10, 0
    %p51 = por %p49, %p50
    %p52 = scmp.ne.s32.totalorder %s44, %s46
    %p53 = scmp.eq.s32.totalorder %s15, 1
    %p54 = por %p52, %p53
    %p55 = scmp.ne.s32.totalorder %s46, %s47
    %p56 = scmp.eq.s32.totalorder %s15, 0
    %p57 = por %p55, %p56
    %p58 = scmp.ne.s32.totalorder %s46, %s47
    %p59 = scmp.eq.s32.totalorder %s16, 1
    %p60 = por %p58, %p59
    %p62 = scmp.ne.s32.totalorder %s47, %s61
    %p63 = scmp.eq.s32.totalorder %s16, 0
    %p64 = por %p62, %p63
    %s66 = sadd.s32 %s65, 1
    %p69 = scmp.eq.s32.totalorder %s10, 1
    %p70 = scmp.ne.s32.totalorder %s65, %s67
    %p71 = scmp.eq.s32.totalorder %s10, 0
    %p72 = por %p70, %p71
    %p73 = scmp.ne.s32.totalorder %s65, %s67
    %p74 = scmp.eq.s32.totalorder %s15, 1
    %p75 = por %p73, %p74
    %p76 = scmp.ne.s32.totalorder %s67, %s68
    %p77 = scmp.eq.s32.totalorder %s15, 0
    %p78 = por %p76, %p77
    %p79 = scmp.ne.s32.totalorder %s67, %s68
    %p80 = scmp.eq.s32.totalorder %s16, 1
    %p81 = por %p79, %p80
    %p83 = scmp.ne.s32.totalorder %s68, %s82
    %p84 = scmp.eq.s32.totalorder %s16, 0
    %p85 = por %p83, %p84
    %s87 = sadd.s32 %s86, 1
    %p90 = scmp.eq.s32.totalorder %s10, 1
    %p91 = scmp.ne.s32.totalorder %s86, %s88
    %p92 = scmp.eq.s32.totalorder %s10, 0
    %p93 = por %p91, %p92
    %p94 = scmp.ne.s32.totalorder %s86, %s88
    %p95 = scmp.eq.s32.totalorder %s15, 1
    %p96 = por %p94, %p95
    %p97 = scmp.ne.s32.totalorder %s88, %s89
    %p98 = scmp.eq.s32.totalorder %s15, 0
    %p99 = por %p97, %p98
    %p100 = scmp.ne.s32.totalorder %s88, %s89
    %p101 = scmp.eq.s32.totalorder %s16, 1
    %p102 = por %p100, %p101
    %p104 = scmp.ne.s32.totalorder %s89, %s103
    %p105 = scmp.eq.s32.totalorder %s16, 0
    %p106 = por %p104, %p105
    %s107 = ssub.s32 %s10, %s17
    %p108 = scmp.eq.s32.totalorder %s107, 0
    %s110 = sadd.s32 %s109, 1
    %s111 = scalar_select %p108, %s109, %s110
    %p114 = pneg %p108
    %p115 = scmp.eq.s32.totalorder %s10, 1
    %p116 = por %p114, %p115
    %p117 = scmp.ne.s32.totalorder %s109, %s112
    %p118 = scmp.eq.s32.totalorder %s10, 0
    %p119 = por %p117, %p118
    %p120 = scmp.ne.s32.totalorder %s109, %s112
    %p121 = scmp.eq.s32.totalorder %s15, 1
    %p122 = por %p120, %p121
    %p123 = scmp.ne.s32.totalorder %s112, %s113
    %p124 = scmp.eq.s32.totalorder %s15, 0
    %p125 = por %p123, %p124
    %p126 = scmp.ne.s32.totalorder %s112, %s113
    %p127 = scmp.eq.s32.totalorder %s16, 1
    %p128 = por %p126, %p127
    %p130 = scmp.ne.s32.totalorder %s113, %s129
    %p131 = scmp.eq.s32.totalorder %s16, 0
    %p132 = por %p130, %p131
    %p133 = scmp.le.s32.totalorder 1, %s10
    %p134 = scmp.lt.s32.totalorder %s10, 3
    %p135 = pnand %p133, %p134
    %p136 = pneg %p135
    // Predicated region
    $region9: #{edge_enhance_forward.9} parent=5 // pred_check
      _
    $region10: #{edge_enhance_forward.9} parent=5 // pred_check_branch
      %138 = sbr.rel (%p135) target = $region12
    $region11: #{edge_enhance_forward.9} parent=5 // pred_region
      %s139 = ssub.s32 %s10, 1
      // Predicated region
      $region13: #{edge_enhance_forward.9} parent=11 // pred_check
        %p140 = pneg %p57
      $region14: #{edge_enhance_forward.9} parent=11 // pred_check_branch
        %142 = sbr.rel (%p140) target = $region16
      $region15: #{edge_enhance_forward.9} parent=11 // pred_region
        _
      $region16: #{edge_enhance_forward.9} parent=11 // pred_fallthru
        _
      // Predicated region
      $region17: #{edge_enhance_forward.9} parent=11 // pred_check
        %p143 = pneg %p78
      $region18: #{edge_enhance_forward.9} parent=11 // pred_check_branch
        %145 = sbr.rel (%p143) target = $region20
      $region19: #{edge_enhance_forward.9} parent=11 // pred_region
        _
      $region20: #{edge_enhance_forward.9} parent=11 // pred_fallthru
        _
      // Predicated region
      $region21: #{edge_enhance_forward.9} parent=11 // pred_check
        %p146 = pneg %p99
      $region22: #{edge_enhance_forward.9} parent=11 // pred_check_branch
        %148 = sbr.rel (%p146) target = $region24
      $region23: #{edge_enhance_forward.9} parent=11 // pred_region
        _
      $region24: #{edge_enhance_forward.9} parent=11 // pred_fallthru
        _
    $region12: #{edge_enhance_forward.9} parent=5 // pred_fallthru
      _
    %p149 = scmp.lt.s32.totalorder %s10, 2
    // Predicated region
    $region25: #{edge_enhance_forward.9} parent=5 // pred_check
      %p150 = pneg %p149
    $region26: #{edge_enhance_forward.9} parent=5 // pred_check_branch
      %152 = sbr.rel (%p150) target = $region28
    $region27: #{edge_enhance_forward.9} parent=5 // pred_region
      // Predicated region
      $region29: #{edge_enhance_forward.9} parent=27 // pred_check
        %p153 = pneg %p30
      $region30: #{edge_enhance_forward.9} parent=27 // pred_check_branch
        %155 = sbr.rel (%p153) target = $region32
      $region31: #{edge_enhance_forward.9} parent=27 // pred_region
        %s156 = smul.u32 32, %s10
        %p157 = scmp.lt.s32.totalorder %s156, 63
        %s158 = scalar_select %p157, %s156, 63
        %s159 = smul.addr %s158, 4
        %s160 = scalar_lea.vmem %s0, %s159
        %s161 = smul.u32 32, %s10
      $region32: #{edge_enhance_forward.9} parent=27 // pred_fallthru
        _
    $region28: #{edge_enhance_forward.9} parent=5 // pred_fallthru
      _
    %p162 = scmp.le.s32.totalorder 1, %s10
    %p163 = scmp.lt.s32.totalorder %s10, 3
    %p164 = pnand %p162, %p163
    %p165 = pneg %p164
    // Predicated region
    $region33: #{edge_enhance_forward.9} parent=5 // pred_check
      _
    $region34: #{edge_enhance_forward.9} parent=5 // pred_check_branch
      %167 = sbr.rel (%p164) target = $region36
    $region35: #{edge_enhance_forward.9} parent=5 // pred_region
      %s168 = ssub.s32 %s10, 1
      %s169 = smul.u32 32, %s15
      %p170 = scmp.lt.s32.totalorder %s169, 63
      %s171 = scalar_select %p170, %s169, 63
      %s172 = smul.addr %s171, 4
      %s173 = scalar_lea.vmem %s0, %s172
      %p174 = pneg %p36
      %p175 = pneg %p33
      %p176 = pneg %p57
      %p177 = pneg %p54
      %p178 = pneg %p78
      %p179 = pneg %p75
      %p180 = pneg %p99
      %p181 = pneg %p96
      %p182 = pneg %p125
      %p183 = pneg %p122
      %s184 = smul.u32 32, %s15
      %p185 = scmp.lt.s32.totalorder %s184, 63
      %s186 = scalar_select %p185, %s184, 63
      %s187 = smul.addr %s186, 8
      %s188 = scalar_lea.vmem %s4, %s187
      %s189 = smul.u32 32, %s15
      %p190 = scmp.lt.s32.totalorder %s189, 63
      %s191 = scalar_select %p190, %s189, 63
      %s192 = smul.addr %s191, 4
      %s193 = scalar_lea.vmem %s0, %s192
      %s194 = smul.u32 32, %s15
      %s195 = smul.u32 32, %s15
      %p196 = scmp.lt.s32.totalorder %s195, 63
      %s197 = scalar_select %p196, %s195, 63
      %s198 = smul.addr %s197, 8
      %s199 = scalar_lea.vmem %s4, %s198
      %s200 = smul.u32 32, %s15
      %v202 = vld [vmem:[%s193] sm:$0xf]
      %v203 = vld [vmem:[%s193 + $0x4] sm:$0xf]
      %v204 = vld [vmem:[%s193 + $0x8] sm:$0xf]
      %v205 = vld [vmem:[%s193 + $0xc] sm:$0xf]
      %v206 = vld [vmem:[%s193 + $0x10] sm:$0xf]
      %v207 = vld [vmem:[%s193 + $0x14] sm:$0xf]
      %v208 = vld [vmem:[%s193 + $0x18] sm:$0xf]
      %v209 = vld [vmem:[%s193 + $0x1c] sm:$0xf]
      %v210 = vld [vmem:[%s193 + $0x20] sm:$0xf]
      %v211 = vld [vmem:[%s193 + $0x24] sm:$0xf]
      %v212 = vld [vmem:[%s193 + $0x28] sm:$0xf]
      %v213 = vld [vmem:[%s193 + $0x2c] sm:$0xf]
      %v214 = vld [vmem:[%s193 + $0x30] sm:$0xf]
      %v215 = vld [vmem:[%s193 + $0x34] sm:$0xf]
      %v216 = vld [vmem:[%s193 + $0x38] sm:$0xf]
      %v217 = vld [vmem:[%s193 + $0x3c] sm:$0xf]
      %v218 = vld [vmem:[%s193 + $0x40] sm:$0xf]
      %v219 = vld [vmem:[%s193 + $0x44] sm:$0xf]
      %v220 = vld [vmem:[%s193 + $0x48] sm:$0xf]
      %v221 = vld [vmem:[%s193 + $0x4c] sm:$0xf]
      %v222 = vld [vmem:[%s193 + $0x50] sm:$0xf]
      %v223 = vld [vmem:[%s193 + $0x54] sm:$0xf]
      %v224 = vld [vmem:[%s193 + $0x58] sm:$0xf]
      %v225 = vld [vmem:[%s193 + $0x5c] sm:$0xf]
      %v226 = vld [vmem:[%s193 + $0x60] sm:$0xf]
      %v227 = vld [vmem:[%s193 + $0x64] sm:$0xf]
      %v228 = vld [vmem:[%s193 + $0x68] sm:$0xf]
      %v229 = vld [vmem:[%s193 + $0x6c] sm:$0xf]
      %v230 = vld [vmem:[%s193 + $0x70] sm:$0xf]
      %v231 = vld [vmem:[%s193 + $0x74] sm:$0xf]
      %v232 = vld [vmem:[%s193 + $0x78] sm:$0xf]
      %v233 = vld [vmem:[%s193 + $0x7c] sm:$0xf]
      %v234 = vld [vmem:[%s1] sm:$0xf]
      %v235 = vld [vmem:[%s1 + $0x4] sm:$0xf]
      %v236 = vld [vmem:[%s1 + $0x8] sm:$0xf]
      %v237 = vld [vmem:[%s1 + $0xc] sm:$0xf]
      %v238 = vld [vmem:[%s1 + $0x10] sm:$0xf]
      %v239 = vld [vmem:[%s1 + $0x14] sm:$0xf]
      %v240 = vld [vmem:[%s1 + $0x18] sm:$0xf]
      %v241 = vld [vmem:[%s1 + $0x1c] sm:$0xf]
      %v242 = vld [vmem:[%s1 + $0x20] sm:$0xf]
      %v275 = vunpack.c.l.b16 %v202
      %v276 = vunpack.c.l.b16 %v203
      %v277 = vunpack.c.l.b16 %v204
      %v278 = vunpack.c.l.b16 %v205
      %v279 = vunpack.c.l.b16 %v206
      %v280 = vunpack.c.l.b16 %v207
      %v281 = vunpack.c.l.b16 %v208
      %v282 = vunpack.c.l.b16 %v209
      %v283 = vunpack.c.l.b16 %v210
      %v284 = vunpack.c.l.b16 %v211
      %v285 = vunpack.c.l.b16 %v212
      %v286 = vunpack.c.l.b16 %v213
      %v287 = vunpack.c.l.b16 %v214
      %v288 = vunpack.c.l.b16 %v215
      %v289 = vunpack.c.l.b16 %v216
      %v290 = vunpack.c.l.b16 %v217
      %v291 = vunpack.c.l.b16 %v218
      %v292 = vunpack.c.l.b16 %v219
      %v293 = vunpack.c.l.b16 %v220
      %v294 = vunpack.c.l.b16 %v221
      %v295 = vunpack.c.l.b16 %v222
      %v296 = vunpack.c.l.b16 %v223
      %v297 = vunpack.c.l.b16 %v224
      %v298 = vunpack.c.l.b16 %v225
      %v299 = vunpack.c.l.b16 %v226
      %v300 = vunpack.c.l.b16 %v227
      %v301 = vunpack.c.l.b16 %v228
      %v302 = vunpack.c.l.b16 %v229
      %v303 = vunpack.c.l.b16 %v230
      %v304 = vunpack.c.l.b16 %v231
      %v305 = vunpack.c.l.b16 %v232
      %v306 = vunpack.c.l.b16 %v233
      %v307 = vpack.c.b16 %v276, %v275
      %v308 = vpack.c.b16 %v278, %v277
      %v309 = vpack.c.b16 %v280, %v279
      %v310 = vpack.c.b16 %v282, %v281
      %v311 = vpack.c.b16 %v284, %v283
      %v312 = vpack.c.b16 %v286, %v285
      %v313 = vpack.c.b16 %v288, %v287
      %v314 = vpack.c.b16 %v290, %v289
      %v315 = vpack.c.b16 %v292, %v291
      %v316 = vpack.c.b16 %v294, %v293
      %v317 = vpack.c.b16 %v296, %v295
      %v318 = vpack.c.b16 %v298, %v297
      %v319 = vpack.c.b16 %v300, %v299
      %v320 = vpack.c.b16 %v302, %v301
      %v321 = vpack.c.b16 %v304, %v303
      %v322 = vpack.c.b16 %v306, %v305
      %v332 = vunpack.c.l.b16 %v234
      %v333 = vunpack.c.l.b16 %v235
      %v334 = vunpack.c.l.b16 %v236
      %v335 = vunpack.c.l.b16 %v237
      %v336 = vunpack.c.l.b16 %v238
      %v337 = vunpack.c.l.b16 %v239
      %v338 = vunpack.c.l.b16 %v240
      %v339 = vunpack.c.l.b16 %v241
      %v340 = vunpack.c.l.b16 %v242
      %v341 = vpack.c.b16 %v333, %v332
      %v342 = vpack.c.b16 %v335, %v334
      %v343 = vpack.c.b16 %v337, %v336
      %v344 = vpack.c.b16 %v339, %v338
      %v345 = vpack.c.b16 %v340, %v340
      %vm350 = vcmask 588800
      %v352 = vsel %vm350, %v307, 0
      %v355 = vsel %vm350, %v308, 0
      %v358 = vsel %vm350, %v309, 0
      %v361 = vsel %vm350, %v310, 0
      %v364 = vsel %vm350, %v311, 0
      %v367 = vsel %vm350, %v312, 0
      %v370 = vsel %vm350, %v313, 0
      %v373 = vsel %vm350, %v314, 0
      %v376 = vsel %vm350, %v315, 0
      %v379 = vsel %vm350, %v316, 0
      %v382 = vsel %vm350, %v317, 0
      %v385 = vsel %vm350, %v318, 0
      %v388 = vsel %vm350, %v319, 0
      %v391 = vsel %vm350, %v320, 0
      %v394 = vsel %vm350, %v321, 0
      %v397 = vsel %vm350, %v322, 0
      %vm399 = vcmask 1043456
      %v401 = vsel %vm399, %v345, 0
      %403 = vmatpush.bf16.msra.mxu0 0
      %404 = vmatpush.bf16.msra.mxu0 0
      %405 = vmatpush.bf16.msra.mxu0 0
      %406 = vmatpush.bf16.msra.mxu0 %v401
      %407 = vmatpush.bf16.msra.mxu0 %v344
      %408 = vmatpush.bf16.msra.mxu0 %v343
      %409 = vmatpush.bf16.msra.mxu0 %v342
      %410 = vmatpush.bf16.msra.mxu0 %v341
      %411 = vmatmul.bf16.gmra.mxu0 %v352
      %v412 = vpop.f32.mrf.mxu0
      %v413 = vadd.f32 0.0, %v412
      %v414 = vpop.f32.mrf.mxu0
      %v415 = vadd.f32 0.0, %v414
      %416 = vmatmul.bf16.gmra.mxu0 %v355
      %v417 = vpop.f32.mrf.mxu0
      %v418 = vadd.f32 0.0, %v417
      %v419 = vpop.f32.mrf.mxu0
      %v420 = vadd.f32 0.0, %v419
      %421 = vmatmul.bf16.gmra.mxu0 %v358
      %v422 = vpop.f32.mrf.mxu0
      %v423 = vadd.f32 0.0, %v422
      %v424 = vpop.f32.mrf.mxu0
      %v425 = vadd.f32 0.0, %v424
      %426 = vmatmul.bf16.gmra.mxu0 %v361
      %v427 = vpop.f32.mrf.mxu0
      %v428 = vadd.f32 0.0, %v427
      %v429 = vpop.f32.mrf.mxu0
      %v430 = vadd.f32 0.0, %v429
      %431 = vmatmul.bf16.gmra.mxu0 %v364
      %v432 = vpop.f32.mrf.mxu0
      %v433 = vadd.f32 0.0, %v432
      %v434 = vpop.f32.mrf.mxu0
      %v435 = vadd.f32 0.0, %v434
      %436 = vmatmul.bf16.gmra.mxu0 %v367
      %v437 = vpop.f32.mrf.mxu0
      %v438 = vadd.f32 0.0, %v437
      %v439 = vpop.f32.mrf.mxu0
      %v440 = vadd.f32 0.0, %v439
      %441 = vmatmul.bf16.gmra.mxu0 %v370
      %v442 = vpop.f32.mrf.mxu0
      %v443 = vadd.f32 0.0, %v442
      %v444 = vpop.f32.mrf.mxu0
      %v445 = vadd.f32 0.0, %v444
      %446 = vmatmul.bf16.gmra.mxu0 %v373
      %v447 = vpop.f32.mrf.mxu0
      %v448 = vadd.f32 0.0, %v447
      %v449 = vpop.f32.mrf.mxu0
      %v450 = vadd.f32 0.0, %v449
      %451 = vmatmul.bf16.gmra.mxu0 %v376
      %v452 = vpop.f32.mrf.mxu0
      %v453 = vadd.f32 0.0, %v452
      %v454 = vpop.f32.mrf.mxu0
      %v455 = vadd.f32 0.0, %v454
      %456 = vmatmul.bf16.gmra.mxu0 %v379
      %v457 = vpop.f32.mrf.mxu0
      %v458 = vadd.f32 0.0, %v457
      %v459 = vpop.f32.mrf.mxu0
      %v460 = vadd.f32 0.0, %v459
      %461 = vmatmul.bf16.gmra.mxu0 %v382
      %v462 = vpop.f32.mrf.mxu0
      %v463 = vadd.f32 0.0, %v462
      %v464 = vpop.f32.mrf.mxu0
      %v465 = vadd.f32 0.0, %v464
      %466 = vmatmul.bf16.gmra.mxu0 %v385
      %v467 = vpop.f32.mrf.mxu0
      %v468 = vadd.f32 0.0, %v467
      %v469 = vpop.f32.mrf.mxu0
      %v470 = vadd.f32 0.0, %v469
      %471 = vmatmul.bf16.gmra.mxu0 %v388
      %v472 = vpop.f32.mrf.mxu0
      %v473 = vadd.f32 0.0, %v472
      %v474 = vpop.f32.mrf.mxu0
      %v475 = vadd.f32 0.0, %v474
      %476 = vmatmul.bf16.gmra.mxu0 %v391
      %v477 = vpop.f32.mrf.mxu0
      %v478 = vadd.f32 0.0, %v477
      %v479 = vpop.f32.mrf.mxu0
      %v480 = vadd.f32 0.0, %v479
      %481 = vmatmul.bf16.gmra.mxu0 %v394
      %v482 = vpop.f32.mrf.mxu0
      %v483 = vadd.f32 0.0, %v482
      %v484 = vpop.f32.mrf.mxu0
      %v485 = vadd.f32 0.0, %v484
      %486 = vmatmul.bf16.gmra.mxu0 %v397
      %v487 = vpop.f32.mrf.mxu0
      %v488 = vadd.f32 0.0, %v487
      %v489 = vpop.f32.mrf.mxu0
      %v490 = vadd.f32 0.0, %v489
      %491 = vdwg.mxu0
      %v492 = vld [vmem:[%s2] sm:$0x1]
      %v494 = vperm.slane %v492, 0
      %v496 = vmul.f32 %v413, %v494
      %v497 = vmul.f32 %v415, %v494
      %v498 = vmul.f32 %v418, %v494
      %v499 = vmul.f32 %v420, %v494
      %v500 = vmul.f32 %v423, %v494
      %v501 = vmul.f32 %v425, %v494
      %v502 = vmul.f32 %v428, %v494
      %v503 = vmul.f32 %v430, %v494
      %v504 = vmul.f32 %v433, %v494
      %v505 = vmul.f32 %v435, %v494
      %v506 = vmul.f32 %v438, %v494
      %v507 = vmul.f32 %v440, %v494
      %v508 = vmul.f32 %v443, %v494
      %v509 = vmul.f32 %v445, %v494
      %v510 = vmul.f32 %v448, %v494
      %v511 = vmul.f32 %v450, %v494
      %v512 = vmul.f32 %v453, %v494
      %v513 = vmul.f32 %v455, %v494
      %v514 = vmul.f32 %v458, %v494
      %v515 = vmul.f32 %v460, %v494
      %v516 = vmul.f32 %v463, %v494
      %v517 = vmul.f32 %v465, %v494
      %v518 = vmul.f32 %v468, %v494
      %v519 = vmul.f32 %v470, %v494
      %v520 = vmul.f32 %v473, %v494
      %v521 = vmul.f32 %v475, %v494
      %v522 = vmul.f32 %v478, %v494
      %v523 = vmul.f32 %v480, %v494
      %v524 = vmul.f32 %v483, %v494
      %v525 = vmul.f32 %v485, %v494
      %v526 = vmul.f32 %v488, %v494
      %v527 = vmul.f32 %v490, %v494
      %v528 = vld [vmem:[%s3] sm:$0x1]
      %v530 = vperm.slane %v528, 0
      %v532 = vadd.f32 %v496, %v530
      %v533 = vadd.f32 %v497, %v530
      %v534 = vadd.f32 %v498, %v530
      %v535 = vadd.f32 %v499, %v530
      %v536 = vadd.f32 %v500, %v530
      %v537 = vadd.f32 %v501, %v530
      %v538 = vadd.f32 %v502, %v530
      %v539 = vadd.f32 %v503, %v530
      %v540 = vadd.f32 %v504, %v530
      %v541 = vadd.f32 %v505, %v530
      %v542 = vadd.f32 %v506, %v530
      %v543 = vadd.f32 %v507, %v530
      %v544 = vadd.f32 %v508, %v530
      %v545 = vadd.f32 %v509, %v530
      %v546 = vadd.f32 %v510, %v530
      %v547 = vadd.f32 %v511, %v530
      %v548 = vadd.f32 %v512, %v530
      %v549 = vadd.f32 %v513, %v530
      %v550 = vadd.f32 %v514, %v530
      %v551 = vadd.f32 %v515, %v530
      %v552 = vadd.f32 %v516, %v530
      %v553 = vadd.f32 %v517, %v530
      %v554 = vadd.f32 %v518, %v530
      %v555 = vadd.f32 %v519, %v530
      %v556 = vadd.f32 %v520, %v530
      %v557 = vadd.f32 %v521, %v530
      %v558 = vadd.f32 %v522, %v530
      %v559 = vadd.f32 %v523, %v530
      %v560 = vadd.f32 %v524, %v530
      %v561 = vadd.f32 %v525, %v530
      %v562 = vadd.f32 %v526, %v530
      %v563 = vadd.f32 %v527, %v530
      %v564 = vmax.f32 %v532, 0.0
      %v565 = vmax.f32 %v533, 0.0
      %v566 = vmax.f32 %v534, 0.0
      %v567 = vmax.f32 %v535, 0.0
      %v568 = vmax.f32 %v536, 0.0
      %v569 = vmax.f32 %v537, 0.0
      %v570 = vmax.f32 %v538, 0.0
      %v571 = vmax.f32 %v539, 0.0
      %v572 = vmax.f32 %v540, 0.0
      %v573 = vmax.f32 %v541, 0.0
      %v574 = vmax.f32 %v542, 0.0
      %v575 = vmax.f32 %v543, 0.0
      %v576 = vmax.f32 %v544, 0.0
      %v577 = vmax.f32 %v545, 0.0
      %v578 = vmax.f32 %v546, 0.0
      %v579 = vmax.f32 %v547, 0.0
      %v580 = vmax.f32 %v548, 0.0
      %v581 = vmax.f32 %v549, 0.0
      %v582 = vmax.f32 %v550, 0.0
      %v583 = vmax.f32 %v551, 0.0
      %v584 = vmax.f32 %v552, 0.0
      %v585 = vmax.f32 %v553, 0.0
      %v586 = vmax.f32 %v554, 0.0
      %v587 = vmax.f32 %v555, 0.0
      %v588 = vmax.f32 %v556, 0.0
      %v589 = vmax.f32 %v557, 0.0
      %v590 = vmax.f32 %v558, 0.0
      %v591 = vmax.f32 %v559, 0.0
      %v592 = vmax.f32 %v560, 0.0
      %v593 = vmax.f32 %v561, 0.0
      %v594 = vmax.f32 %v562, 0.0
      %v595 = vmax.f32 %v563, 0.0
      %596 = vst [vmem:[%s199] sm:$0xff] %v564
      %597 = vst [vmem:[%s199 + $0x8] sm:$0xff] %v565
      %598 = vst [vmem:[%s199 + $0x10] sm:$0xff] %v566
      %599 = vst [vmem:[%s199 + $0x18] sm:$0xff] %v567
      %600 = vst [vmem:[%s199 + $0x20] sm:$0xff] %v568
      %601 = vst [vmem:[%s199 + $0x28] sm:$0xff] %v569
      %602 = vst [vmem:[%s199 + $0x30] sm:$0xff] %v570
      %603 = vst [vmem:[%s199 + $0x38] sm:$0xff] %v571
      %604 = vst [vmem:[%s199 + $0x40] sm:$0xff] %v572
      %605 = vst [vmem:[%s199 + $0x48] sm:$0xff] %v573
      %606 = vst [vmem:[%s199 + $0x50] sm:$0xff] %v574
      %607 = vst [vmem:[%s199 + $0x58] sm:$0xff] %v575
      %608 = vst [vmem:[%s199 + $0x60] sm:$0xff] %v576
      %609 = vst [vmem:[%s199 + $0x68] sm:$0xff] %v577
      %610 = vst [vmem:[%s199 + $0x70] sm:$0xff] %v578
      %611 = vst [vmem:[%s199 + $0x78] sm:$0xff] %v579
      %612 = vst [vmem:[%s199 + $0x80] sm:$0xff] %v580
      %613 = vst [vmem:[%s199 + $0x88] sm:$0xff] %v581
      %614 = vst [vmem:[%s199 + $0x90] sm:$0xff] %v582
      %615 = vst [vmem:[%s199 + $0x98] sm:$0xff] %v583
      %616 = vst [vmem:[%s199 + $0xa0] sm:$0xff] %v584
      %617 = vst [vmem:[%s199 + $0xa8] sm:$0xff] %v585
      %618 = vst [vmem:[%s199 + $0xb0] sm:$0xff] %v586
      %619 = vst [vmem:[%s199 + $0xb8] sm:$0xff] %v587
      %620 = vst [vmem:[%s199 + $0xc0] sm:$0xff] %v588
      %621 = vst [vmem:[%s199 + $0xc8] sm:$0xff] %v589
      %622 = vst [vmem:[%s199 + $0xd0] sm:$0xff] %v590
      %623 = vst [vmem:[%s199 + $0xd8] sm:$0xff] %v591
      %624 = vst [vmem:[%s199 + $0xe0] sm:$0xff] %v592
      %625 = vst [vmem:[%s199 + $0xe8] sm:$0xff] %v593
      %626 = vst [vmem:[%s199 + $0xf0] sm:$0xff] %v594
      %627 = vst [vmem:[%s199 + $0xf8] sm:$0xff] %v595
      %s628 = smul.u32 32, %s15
      %p629 = scmp.lt.s32.totalorder %s628, 63
      %s630 = scalar_select %p629, %s628, 63
      %s631 = smul.addr %s630, 8
      %s632 = scalar_lea.vmem %s4, %s631
      // Predicated region
      $region37: #{edge_enhance_forward.9} parent=35 // pred_check
        %p633 = pneg %p122
      $region38: #{edge_enhance_forward.9} parent=35 // pred_check_branch
        %635 = sbr.rel (%p633) target = $region40
      $region39: #{edge_enhance_forward.9} parent=35 // pred_region
        %s636 = smul.u32 32, %s15
      $region40: #{edge_enhance_forward.9} parent=35 // pred_fallthru
        _
    $region36: #{edge_enhance_forward.9} parent=5 // pred_fallthru
      _
    %p637 = scmp.le.s32.totalorder 2, %s10
    // Predicated region
    $region41: #{edge_enhance_forward.9} parent=5 // pred_check
      %p638 = pneg %p637
    $region42: #{edge_enhance_forward.9} parent=5 // pred_check_branch
      %640 = sbr.rel (%p638) target = $region44
    $region43: #{edge_enhance_forward.9} parent=5 // pred_region
      %s641 = ssub.s32 %s10, 2
      // Predicated region
      $region45: #{edge_enhance_forward.9} parent=43 // pred_check
        %p642 = pneg %p128
      $region46: #{edge_enhance_forward.9} parent=43 // pred_check_branch
        %644 = sbr.rel (%p642) target = $region48
      $region47: #{edge_enhance_forward.9} parent=43 // pred_region
        %s645 = smul.u32 32, %s16
        %p646 = scmp.lt.s32.totalorder %s645, 63
        %s647 = scalar_select %p646, %s645, 63
        %s648 = smul.addr %s647, 8
        %s649 = scalar_lea.vmem %s4, %s648
      $region48: #{edge_enhance_forward.9} parent=43 // pred_fallthru
        _
    $region44: #{edge_enhance_forward.9} parent=5 // pred_fallthru
      _
  $region6: #{edge_enhance_forward.9} parent=0 // loop_footer
    %s14 = sadd.s32 1, %s10
  $region7: #{edge_enhance_forward.9} parent=0 // loop_footer_branch
    %9 = sbr.rel target = $region3
  $region8: #{edge_enhance_forward.9} parent=0 // loop_exit
    _

// kernel: edge_enhance_forward.8
$region0: #{edge_enhance_forward.8}
  #allocation0 [shape = 'u32[]', space=smem, size = 0x4, offset = 0x4, fixed_abs, tag = 'smem constant byte address 0x4 - core index']
  #allocation1 [shape = 'u32[72,128]{1,0:T(1,128)}', space=vmem, size = 0x9000, scoped, tag = 'internal scratch']
  %s0 = inlined_call_operand.vmem [shape: bf16[2,256,72], index: 0, kind: input, shape index: {}]
  %s1 = inlined_call_operand.vmem [shape: f32[2,16,16,8], index: 1, kind: input, shape index: {}]
  %s2 = inlined_call_operand.vmem [shape: bf16[72,8], index: 2, kind: input, shape index: {}]
  %s3 = inlined_call_operand.vmem [shape: f32[1,8], index: 3, kind: input, shape index: {}]
  %s4 = inlined_call_operand.vmem [shape: f32[8,8], index: 4, kind: input, shape index: {}]
  %s5 = inlined_call_operand.vmem [shape: f32[1,8], index: 5, kind: input, shape index: {}]
  %s6 = inlined_call_operand.vmem [shape: f32[1,8], index: 6, kind: input, shape index: {}]
  %s7 = inlined_call_operand.vmem [shape: f32[8,8], index: 7, kind: input, shape index: {}]
  %s8 = inlined_call_operand.vmem [shape: f32[1,8], index: 8, kind: input, shape index: {}]
  %s9 = inlined_call_operand.vmem [shape: f32[8,8], index: 9, kind: input, shape index: {}]
  %s10 = inlined_call_operand.vmem [shape: f32[1,8], index: 10, kind: input, shape index: {}]
  %s11 = inlined_call_operand.vmem [shape: f32[2,16,16,8], index: 11, kind: output, shape index: {}]
  %s12 = sld [smem:[#allocation0]]
  $region77: #{edge_enhance_forward.8} parent=0
    _
  %s14 = ssub.s32 1, %s12
  %s15 = scalar_select 0, %s14, %s12
  loop: start=0, step=1, limit=4
  $region2: #{edge_enhance_forward.8} parent=0 // loop_pre_header
    _
  $region3: #{edge_enhance_forward.8} parent=0 // loop_header
    %s17 = sphi 0, %s21
    %p18 = scmp.ge.s32.totalorder %s17, 4
    %s27 = sphi 0, %s29
    %s30 = sphi 0, %s27
    %s31 = sphi 0, %s30
    %s47 = sphi 0, %s31
    %s53 = sphi 0, %s55
    %s56 = sphi 0, %s53
    %s57 = sphi 0, %s56
    %s73 = sphi 0, %s57
    %s77 = sphi 0, %s77
    %s79 = sphi 0, %s77
    %s80 = sphi 0, %s79
    %s94 = sphi 0, %s80
    %s98 = sphi 0, %s98
    %s100 = sphi 0, %s98
    %s101 = sphi 0, %s100
    %s115 = sphi 0, %s101
    %s119 = sphi 0, %s119
    %s121 = sphi 0, %s119
    %s122 = sphi 0, %s121
    %s136 = sphi 0, %s122
    %s140 = sphi 0, %s140
    %s142 = sphi 0, %s140
    %s143 = sphi 0, %s142
    %s157 = sphi 0, %s143
    %s161 = sphi 0, %s161
    %s163 = sphi 0, %s161
    %s164 = sphi 0, %s163
    %s178 = sphi 0, %s164
    %s182 = sphi 0, %s182
    %s184 = sphi 0, %s182
    %s185 = sphi 0, %s184
    %s199 = sphi 0, %s185
    %s203 = sphi 0, %s203
    %s205 = sphi 0, %s203
    %s206 = sphi 0, %s205
    %s220 = sphi 0, %s206
    %s224 = sphi 0, %s224
    %s226 = sphi 0, %s224
    %s227 = sphi 0, %s226
    %s241 = sphi 0, %s227
    %s245 = sphi 0, %s245
    %s247 = sphi 0, %s245
    %s248 = sphi 0, %s247
    %s262 = sphi 0, %s248
    %s268 = sphi 0, %s270
    %s271 = sphi 0, %s268
    %s272 = sphi 0, %s271
    %s288 = sphi 0, %s272
  $region4: #{edge_enhance_forward.8} parent=0 // loop_header_branch
    %20 = sbr.rel (%p18) target = $region8
  $region5: #{edge_enhance_forward.8} parent=0 // loop_body
    %s22 = ssub.s32 %s17, 1
    %s23 = ssub.s32 %s17, 2
    %s24 = sadd.s32 %s17, 1
    %s25 = ssub.s32 %s17, %s24
    %p26 = scmp.eq.s32.totalorder %s25, 0
    %s28 = sadd.s32 %s27, 1
    %s29 = scalar_select %p26, %s27, %s28
    %p32 = pneg %p26
    %p33 = scmp.eq.s32.totalorder %s17, 1
    %p34 = por %p32, %p33
    %p35 = scmp.ne.s32.totalorder %s27, %s30
    %p36 = scmp.eq.s32.totalorder %s17, 0
    %p37 = por %p35, %p36
    %p38 = scmp.ne.s32.totalorder %s27, %s30
    %p39 = scmp.eq.s32.totalorder %s22, 1
    %p40 = por %p38, %p39
    %p41 = scmp.ne.s32.totalorder %s30, %s31
    %p42 = scmp.eq.s32.totalorder %s22, 0
    %p43 = por %p41, %p42
    %p44 = scmp.ne.s32.totalorder %s30, %s31
    %p45 = scmp.eq.s32.totalorder %s23, 1
    %p46 = por %p44, %p45
    %p48 = scmp.ne.s32.totalorder %s31, %s47
    %p49 = scmp.eq.s32.totalorder %s23, 0
    %p50 = por %p48, %p49
    %s51 = ssub.s32 %s17, %s24
    %p52 = scmp.eq.s32.totalorder %s51, 0
    %s54 = sadd.s32 %s53, 1
    %s55 = scalar_select %p52, %s53, %s54
    %p58 = pneg %p52
    %p59 = scmp.eq.s32.totalorder %s17, 1
    %p60 = por %p58, %p59
    %p61 = scmp.ne.s32.totalorder %s53, %s56
    %p62 = scmp.eq.s32.totalorder %s17, 0
    %p63 = por %p61, %p62
    %p64 = scmp.ne.s32.totalorder %s53, %s56
    %p65 = scmp.eq.s32.totalorder %s22, 1
    %p66 = por %p64, %p65
    %p67 = scmp.ne.s32.totalorder %s56, %s57
    %p68 = scmp.eq.s32.totalorder %s22, 0
    %p69 = por %p67, %p68
    %p70 = scmp.ne.s32.totalorder %s56, %s57
    %p71 = scmp.eq.s32.totalorder %s23, 1
    %p72 = por %p70, %p71
    %p74 = scmp.ne.s32.totalorder %s57, %s73
    %p75 = scmp.eq.s32.totalorder %s23, 0
    %p76 = por %p74, %p75
    %s78 = sadd.s32 %s77, 1
    %p81 = scmp.eq.s32.totalorder %s17, 1
    %p82 = scmp.ne.s32.totalorder %s77, %s79
    %p83 = scmp.eq.s32.totalorder %s17, 0
    %p84 = por %p82, %p83
    %p85 = scmp.ne.s32.totalorder %s77, %s79
    %p86 = scmp.eq.s32.totalorder %s22, 1
    %p87 = por %p85, %p86
    %p88 = scmp.ne.s32.totalorder %s79, %s80
    %p89 = scmp.eq.s32.totalorder %s22, 0
    %p90 = por %p88, %p89
    %p91 = scmp.ne.s32.totalorder %s79, %s80
    %p92 = scmp.eq.s32.totalorder %s23, 1
    %p93 = por %p91, %p92
    %p95 = scmp.ne.s32.totalorder %s80, %s94
    %p96 = scmp.eq.s32.totalorder %s23, 0
    %p97 = por %p95, %p96
    %s99 = sadd.s32 %s98, 1
    %p102 = scmp.eq.s32.totalorder %s17, 1
    %p103 = scmp.ne.s32.totalorder %s98, %s100
    %p104 = scmp.eq.s32.totalorder %s17, 0
    %p105 = por %p103, %p104
    %p106 = scmp.ne.s32.totalorder %s98, %s100
    %p107 = scmp.eq.s32.totalorder %s22, 1
    %p108 = por %p106, %p107
    %p109 = scmp.ne.s32.totalorder %s100, %s101
    %p110 = scmp.eq.s32.totalorder %s22, 0
    %p111 = por %p109, %p110
    %p112 = scmp.ne.s32.totalorder %s100, %s101
    %p113 = scmp.eq.s32.totalorder %s23, 1
    %p114 = por %p112, %p113
    %p116 = scmp.ne.s32.totalorder %s101, %s115
    %p117 = scmp.eq.s32.totalorder %s23, 0
    %p118 = por %p116, %p117
    %s120 = sadd.s32 %s119, 1
    %p123 = scmp.eq.s32.totalorder %s17, 1
    %p124 = scmp.ne.s32.totalorder %s119, %s121
    %p125 = scmp.eq.s32.totalorder %s17, 0
    %p126 = por %p124, %p125
    %p127 = scmp.ne.s32.totalorder %s119, %s121
    %p128 = scmp.eq.s32.totalorder %s22, 1
    %p129 = por %p127, %p128
    %p130 = scmp.ne.s32.totalorder %s121, %s122
    %p131 = scmp.eq.s32.totalorder %s22, 0
    %p132 = por %p130, %p131
    %p133 = scmp.ne.s32.totalorder %s121, %s122
    %p134 = scmp.eq.s32.totalorder %s23, 1
    %p135 = por %p133, %p134
    %p137 = scmp.ne.s32.totalorder %s122, %s136
    %p138 = scmp.eq.s32.totalorder %s23, 0
    %p139 = por %p137, %p138
    %s141 = sadd.s32 %s140, 1
    %p144 = scmp.eq.s32.totalorder %s17, 1
    %p145 = scmp.ne.s32.totalorder %s140, %s142
    %p146 = scmp.eq.s32.totalorder %s17, 0
    %p147 = por %p145, %p146
    %p148 = scmp.ne.s32.totalorder %s140, %s142
    %p149 = scmp.eq.s32.totalorder %s22, 1
    %p150 = por %p148, %p149
    %p151 = scmp.ne.s32.totalorder %s142, %s143
    %p152 = scmp.eq.s32.totalorder %s22, 0
    %p153 = por %p151, %p152
    %p154 = scmp.ne.s32.totalorder %s142, %s143
    %p155 = scmp.eq.s32.totalorder %s23, 1
    %p156 = por %p154, %p155
    %p158 = scmp.ne.s32.totalorder %s143, %s157
    %p159 = scmp.eq.s32.totalorder %s23, 0
    %p160 = por %p158, %p159
    %s162 = sadd.s32 %s161, 1
    %p165 = scmp.eq.s32.totalorder %s17, 1
    %p166 = scmp.ne.s32.totalorder %s161, %s163
    %p167 = scmp.eq.s32.totalorder %s17, 0
    %p168 = por %p166, %p167
    %p169 = scmp.ne.s32.totalorder %s161, %s163
    %p170 = scmp.eq.s32.totalorder %s22, 1
    %p171 = por %p169, %p170
    %p172 = scmp.ne.s32.totalorder %s163, %s164
    %p173 = scmp.eq.s32.totalorder %s22, 0
    %p174 = por %p172, %p173
    %p175 = scmp.ne.s32.totalorder %s163, %s164
    %p176 = scmp.eq.s32.totalorder %s23, 1
    %p177 = por %p175, %p176
    %p179 = scmp.ne.s32.totalorder %s164, %s178
    %p180 = scmp.eq.s32.totalorder %s23, 0
    %p181 = por %p179, %p180
    %s183 = sadd.s32 %s182, 1
    %p186 = scmp.eq.s32.totalorder %s17, 1
    %p187 = scmp.ne.s32.totalorder %s182, %s184
    %p188 = scmp.eq.s32.totalorder %s17, 0
    %p189 = por %p187, %p188
    %p190 = scmp.ne.s32.totalorder %s182, %s184
    %p191 = scmp.eq.s32.totalorder %s22, 1
    %p192 = por %p190, %p191
    %p193 = scmp.ne.s32.totalorder %s184, %s185
    %p194 = scmp.eq.s32.totalorder %s22, 0
    %p195 = por %p193, %p194
    %p196 = scmp.ne.s32.totalorder %s184, %s185
    %p197 = scmp.eq.s32.totalorder %s23, 1
    %p198 = por %p196, %p197
    %p200 = scmp.ne.s32.totalorder %s185, %s199
    %p201 = scmp.eq.s32.totalorder %s23, 0
    %p202 = por %p200, %p201
    %s204 = sadd.s32 %s203, 1
    %p207 = scmp.eq.s32.totalorder %s17, 1
    %p208 = scmp.ne.s32.totalorder %s203, %s205
    %p209 = scmp.eq.s32.totalorder %s17, 0
    %p210 = por %p208, %p209
    %p211 = scmp.ne.s32.totalorder %s203, %s205
    %p212 = scmp.eq.s32.totalorder %s22, 1
    %p213 = por %p211, %p212
    %p214 = scmp.ne.s32.totalorder %s205, %s206
    %p215 = scmp.eq.s32.totalorder %s22, 0
    %p216 = por %p214, %p215
    %p217 = scmp.ne.s32.totalorder %s205, %s206
    %p218 = scmp.eq.s32.totalorder %s23, 1
    %p219 = por %p217, %p218
    %p221 = scmp.ne.s32.totalorder %s206, %s220
    %p222 = scmp.eq.s32.totalorder %s23, 0
    %p223 = por %p221, %p222
    %s225 = sadd.s32 %s224, 1
    %p228 = scmp.eq.s32.totalorder %s17, 1
    %p229 = scmp.ne.s32.totalorder %s224, %s226
    %p230 = scmp.eq.s32.totalorder %s17, 0
    %p231 = por %p229, %p230
    %p232 = scmp.ne.s32.totalorder %s224, %s226
    %p233 = scmp.eq.s32.totalorder %s22, 1
    %p234 = por %p232, %p233
    %p235 = scmp.ne.s32.totalorder %s226, %s227
    %p236 = scmp.eq.s32.totalorder %s22, 0
    %p237 = por %p235, %p236
    %p238 = scmp.ne.s32.totalorder %s226, %s227
    %p239 = scmp.eq.s32.totalorder %s23, 1
    %p240 = por %p238, %p239
    %p242 = scmp.ne.s32.totalorder %s227, %s241
    %p243 = scmp.eq.s32.totalorder %s23, 0
    %p244 = por %p242, %p243
    %s246 = sadd.s32 %s245, 1
    %p249 = scmp.eq.s32.totalorder %s17, 1
    %p250 = scmp.ne.s32.totalorder %s245, %s247
    %p251 = scmp.eq.s32.totalorder %s17, 0
    %p252 = por %p250, %p251
    %p253 = scmp.ne.s32.totalorder %s245, %s247
    %p254 = scmp.eq.s32.totalorder %s22, 1
    %p255 = por %p253, %p254
    %p256 = scmp.ne.s32.totalorder %s247, %s248
    %p257 = scmp.eq.s32.totalorder %s22, 0
    %p258 = por %p256, %p257
    %p259 = scmp.ne.s32.totalorder %s247, %s248
    %p260 = scmp.eq.s32.totalorder %s23, 1
    %p261 = por %p259, %p260
    %p263 = scmp.ne.s32.totalorder %s248, %s262
    %p264 = scmp.eq.s32.totalorder %s23, 0
    %p265 = por %p263, %p264
    %s266 = ssub.s32 %s17, %s24
    %p267 = scmp.eq.s32.totalorder %s266, 0
    %s269 = sadd.s32 %s268, 1
    %s270 = scalar_select %p267, %s268, %s269
    %p273 = pneg %p267
    %p274 = scmp.eq.s32.totalorder %s17, 1
    %p275 = por %p273, %p274
    %p276 = scmp.ne.s32.totalorder %s268, %s271
    %p277 = scmp.eq.s32.totalorder %s17, 0
    %p278 = por %p276, %p277
    %p279 = scmp.ne.s32.totalorder %s268, %s271
    %p280 = scmp.eq.s32.totalorder %s22, 1
    %p281 = por %p279, %p280
    %p282 = scmp.ne.s32.totalorder %s271, %s272
    %p283 = scmp.eq.s32.totalorder %s22, 0
    %p284 = por %p282, %p283
    %p285 = scmp.ne.s32.totalorder %s271, %s272
    %p286 = scmp.eq.s32.totalorder %s23, 1
    %p287 = por %p285, %p286
    %p289 = scmp.ne.s32.totalorder %s272, %s288
    %p290 = scmp.eq.s32.totalorder %s23, 0
    %p291 = por %p289, %p290
    %p292 = scmp.le.s32.totalorder 1, %s17
    %p293 = scmp.lt.s32.totalorder %s17, 3
    %p294 = pnand %p292, %p293
    %p295 = pneg %p294
    // Predicated region
    $region9: #{edge_enhance_forward.8} parent=5 // pred_check
      _
    $region10: #{edge_enhance_forward.8} parent=5 // pred_check_branch
      %297 = sbr.rel (%p294) target = $region12
    $region11: #{edge_enhance_forward.8} parent=5 // pred_region
      %s298 = ssub.s32 %s17, 1
      // Predicated region
      $region13: #{edge_enhance_forward.8} parent=11 // pred_check
        %p299 = pneg %p90
      $region14: #{edge_enhance_forward.8} parent=11 // pred_check_branch
        %301 = sbr.rel (%p299) target = $region16
      $region15: #{edge_enhance_forward.8} parent=11 // pred_region
        _
      $region16: #{edge_enhance_forward.8} parent=11 // pred_fallthru
        _
      // Predicated region
      $region17: #{edge_enhance_forward.8} parent=11 // pred_check
        %p302 = pneg %p111
      $region18: #{edge_enhance_forward.8} parent=11 // pred_check_branch
        %304 = sbr.rel (%p302) target = $region20
      $region19: #{edge_enhance_forward.8} parent=11 // pred_region
        _
      $region20: #{edge_enhance_forward.8} parent=11 // pred_fallthru
        _
      // Predicated region
      $region21: #{edge_enhance_forward.8} parent=11 // pred_check
        %p305 = pneg %p132
      $region22: #{edge_enhance_forward.8} parent=11 // pred_check_branch
        %307 = sbr.rel (%p305) target = $region24
      $region23: #{edge_enhance_forward.8} parent=11 // pred_region
        _
      $region24: #{edge_enhance_forward.8} parent=11 // pred_fallthru
        _
      // Predicated region
      $region25: #{edge_enhance_forward.8} parent=11 // pred_check
        %p308 = pneg %p153
      $region26: #{edge_enhance_forward.8} parent=11 // pred_check_branch
        %310 = sbr.rel (%p308) target = $region28
      $region27: #{edge_enhance_forward.8} parent=11 // pred_region
        _
      $region28: #{edge_enhance_forward.8} parent=11 // pred_fallthru
        _
      // Predicated region
      $region29: #{edge_enhance_forward.8} parent=11 // pred_check
        %p311 = pneg %p174
      $region30: #{edge_enhance_forward.8} parent=11 // pred_check_branch
        %313 = sbr.rel (%p311) target = $region32
      $region31: #{edge_enhance_forward.8} parent=11 // pred_region
        _
      $region32: #{edge_enhance_forward.8} parent=11 // pred_fallthru
        _
      // Predicated region
      $region33: #{edge_enhance_forward.8} parent=11 // pred_check
        %p314 = pneg %p195
      $region34: #{edge_enhance_forward.8} parent=11 // pred_check_branch
        %316 = sbr.rel (%p314) target = $region36
      $region35: #{edge_enhance_forward.8} parent=11 // pred_region
        _
      $region36: #{edge_enhance_forward.8} parent=11 // pred_fallthru
        _
      // Predicated region
      $region37: #{edge_enhance_forward.8} parent=11 // pred_check
        %p317 = pneg %p216
      $region38: #{edge_enhance_forward.8} parent=11 // pred_check_branch
        %319 = sbr.rel (%p317) target = $region40
      $region39: #{edge_enhance_forward.8} parent=11 // pred_region
        _
      $region40: #{edge_enhance_forward.8} parent=11 // pred_fallthru
        _
      // Predicated region
      $region41: #{edge_enhance_forward.8} parent=11 // pred_check
        %p320 = pneg %p237
      $region42: #{edge_enhance_forward.8} parent=11 // pred_check_branch
        %322 = sbr.rel (%p320) target = $region44
      $region43: #{edge_enhance_forward.8} parent=11 // pred_region
        _
      $region44: #{edge_enhance_forward.8} parent=11 // pred_fallthru
        _
      // Predicated region
      $region45: #{edge_enhance_forward.8} parent=11 // pred_check
        %p323 = pneg %p258
      $region46: #{edge_enhance_forward.8} parent=11 // pred_check_branch
        %325 = sbr.rel (%p323) target = $region48
      $region47: #{edge_enhance_forward.8} parent=11 // pred_region
        _
      $region48: #{edge_enhance_forward.8} parent=11 // pred_fallthru
        _
    $region12: #{edge_enhance_forward.8} parent=5 // pred_fallthru
      _
    %p326 = scmp.lt.s32.totalorder %s17, 2
    // Predicated region
    $region49: #{edge_enhance_forward.8} parent=5 // pred_check
      %p327 = pneg %p326
    $region50: #{edge_enhance_forward.8} parent=5 // pred_check_branch
      %329 = sbr.rel (%p327) target = $region52
    $region51: #{edge_enhance_forward.8} parent=5 // pred_region
      // Predicated region
      $region53: #{edge_enhance_forward.8} parent=51 // pred_check
        %p330 = pneg %p37
      $region54: #{edge_enhance_forward.8} parent=51 // pred_check_branch
        %332 = sbr.rel (%p330) target = $region56
      $region55: #{edge_enhance_forward.8} parent=51 // pred_region
        %p333 = scmp.lt.s32.totalorder %s17, 1
        %s334 = scalar_select %p333, %s17, 1
        %s335 = smul.addr %s334, 32
        %s336 = smul.addr %s335, 4
        %s337 = scalar_lea.vmem %s0, %s336
      $region56: #{edge_enhance_forward.8} parent=51 // pred_fallthru
        _
      // Predicated region
      $region57: #{edge_enhance_forward.8} parent=51 // pred_check
        %p338 = pneg %p63
      $region58: #{edge_enhance_forward.8} parent=51 // pred_check_branch
        %340 = sbr.rel (%p338) target = $region60
      $region59: #{edge_enhance_forward.8} parent=51 // pred_region
        %p341 = scmp.lt.s32.totalorder %s17, 1
        %s342 = scalar_select %p341, %s17, 1
        %s343 = smul.addr %s342, 32
        %s344 = smul.addr %s343, 8
        %s345 = scalar_lea.vmem %s1, %s344
      $region60: #{edge_enhance_forward.8} parent=51 // pred_fallthru
        _
    $region52: #{edge_enhance_forward.8} parent=5 // pred_fallthru
      _
    %p346 = scmp.le.s32.totalorder 1, %s17
    %p347 = scmp.lt.s32.totalorder %s17, 3
    %p348 = pnand %p346, %p347
    %p349 = pneg %p348
    // Predicated region
    $region61: #{edge_enhance_forward.8} parent=5 // pred_check
      _
    $region62: #{edge_enhance_forward.8} parent=5 // pred_check_branch
      %351 = sbr.rel (%p348) target = $region64
    $region63: #{edge_enhance_forward.8} parent=5 // pred_region
      %s352 = ssub.s32 %s17, 1
      %p353 = scmp.lt.s32.totalorder %s22, 1
      %s354 = scalar_select %p353, %s22, 1
      %s355 = smul.addr %s354, 32
      %s356 = smul.addr %s355, 4
      %s357 = scalar_lea.vmem %s0, %s356
      %p358 = pneg %p43
      %p359 = pneg %p40
      %p360 = scmp.lt.s32.totalorder %s22, 1
      %s361 = scalar_select %p360, %s22, 1
      %s362 = smul.addr %s361, 32
      %s363 = smul.addr %s362, 8
      %s364 = scalar_lea.vmem %s1, %s363
      %p365 = pneg %p69
      %p366 = pneg %p66
      %p367 = pneg %p90
      %p368 = pneg %p87
      %p369 = pneg %p111
      %p370 = pneg %p108
      %p371 = pneg %p132
      %p372 = pneg %p129
      %p373 = pneg %p153
      %p374 = pneg %p150
      %p375 = pneg %p174
      %p376 = pneg %p171
      %p377 = pneg %p195
      %p378 = pneg %p192
      %p379 = pneg %p216
      %p380 = pneg %p213
      %p381 = pneg %p237
      %p382 = pneg %p234
      %p383 = pneg %p258
      %p384 = pneg %p255
      %p385 = pneg %p284
      %p386 = pneg %p281
      %p387 = scmp.lt.s32.totalorder %s22, 1
      %s388 = scalar_select %p387, %s22, 1
      %s389 = smul.addr %s388, 32
      %s390 = smul.addr %s389, 8
      %s391 = scalar_lea.vmem %s11, %s390
      %p392 = scmp.lt.s32.totalorder %s22, 1
      %s393 = scalar_select %p392, %s22, 1
      %s394 = smul.addr %s393, 32
      %s395 = smul.addr %s394, 4
      %s396 = scalar_lea.vmem %s0, %s395
      %p397 = scmp.lt.s32.totalorder %s22, 1
      %s398 = scalar_select %p397, %s22, 1
      %s399 = smul.addr %s398, 32
      %s400 = smul.addr %s399, 8
      %s401 = scalar_lea.vmem %s1, %s400
      %p402 = scmp.lt.s32.totalorder %s22, 1
      %s403 = scalar_select %p402, %s22, 1
      %s404 = smul.addr %s403, 32
      %s405 = smul.addr %s404, 8
      %s406 = scalar_lea.vmem %s11, %s405
      %v408 = vld [vmem:[%s396] sm:$0xf]
      %v409 = vld [vmem:[%s396 + $0x4] sm:$0xf]
      %v410 = vld [vmem:[%s396 + $0x8] sm:$0xf]
      %v411 = vld [vmem:[%s396 + $0xc] sm:$0xf]
      %v412 = vld [vmem:[%s396 + $0x10] sm:$0xf]
      %v413 = vld [vmem:[%s396 + $0x14] sm:$0xf]
      %v414 = vld [vmem:[%s396 + $0x18] sm:$0xf]
      %v415 = vld [vmem:[%s396 + $0x1c] sm:$0xf]
      %v416 = vld [vmem:[%s396 + $0x20] sm:$0xf]
      %v417 = vld [vmem:[%s396 + $0x24] sm:$0xf]
      %v418 = vld [vmem:[%s396 + $0x28] sm:$0xf]
      %v419 = vld [vmem:[%s396 + $0x2c] sm:$0xf]
      %v420 = vld [vmem:[%s396 + $0x30] sm:$0xf]
      %v421 = vld [vmem:[%s396 + $0x34] sm:$0xf]
      %v422 = vld [vmem:[%s396 + $0x38] sm:$0xf]
      %v423 = vld [vmem:[%s396 + $0x3c] sm:$0xf]
      %v424 = vld [vmem:[%s396 + $0x40] sm:$0xf]
      %v425 = vld [vmem:[%s396 + $0x44] sm:$0xf]
      %v426 = vld [vmem:[%s396 + $0x48] sm:$0xf]
      %v427 = vld [vmem:[%s396 + $0x4c] sm:$0xf]
      %v428 = vld [vmem:[%s396 + $0x50] sm:$0xf]
      %v429 = vld [vmem:[%s396 + $0x54] sm:$0xf]
      %v430 = vld [vmem:[%s396 + $0x58] sm:$0xf]
      %v431 = vld [vmem:[%s396 + $0x5c] sm:$0xf]
      %v432 = vld [vmem:[%s396 + $0x60] sm:$0xf]
      %v433 = vld [vmem:[%s396 + $0x64] sm:$0xf]
      %v434 = vld [vmem:[%s396 + $0x68] sm:$0xf]
      %v435 = vld [vmem:[%s396 + $0x6c] sm:$0xf]
      %v436 = vld [vmem:[%s396 + $0x70] sm:$0xf]
      %v437 = vld [vmem:[%s396 + $0x74] sm:$0xf]
      %v438 = vld [vmem:[%s396 + $0x78] sm:$0xf]
      %v439 = vld [vmem:[%s396 + $0x7c] sm:$0xf]
      %v440 = vld [vmem:[%s2] sm:$0xf]
      %v441 = vld [vmem:[%s2 + $0x4] sm:$0xf]
      %v442 = vld [vmem:[%s2 + $0x8] sm:$0xf]
      %v443 = vld [vmem:[%s2 + $0xc] sm:$0xf]
      %v444 = vld [vmem:[%s2 + $0x10] sm:$0xf]
      %v445 = vld [vmem:[%s2 + $0x14] sm:$0xf]
      %v446 = vld [vmem:[%s2 + $0x18] sm:$0xf]
      %v447 = vld [vmem:[%s2 + $0x1c] sm:$0xf]
      %v448 = vld [vmem:[%s2 + $0x20] sm:$0xf]
      %v449 = vld [vmem:[%s3] sm:$0x1]
      %v451 = vperm.slane %v449, 0
      %v485 = vunpack.c.l.b16 %v408
      %v486 = vunpack.c.l.b16 %v409
      %v487 = vunpack.c.l.b16 %v410
      %v488 = vunpack.c.l.b16 %v411
      %v489 = vunpack.c.l.b16 %v412
      %v490 = vunpack.c.l.b16 %v413
      %v491 = vunpack.c.l.b16 %v414
      %v492 = vunpack.c.l.b16 %v415
      %v493 = vunpack.c.l.b16 %v416
      %v494 = vunpack.c.l.b16 %v417
      %v495 = vunpack.c.l.b16 %v418
      %v496 = vunpack.c.l.b16 %v419
      %v497 = vunpack.c.l.b16 %v420
      %v498 = vunpack.c.l.b16 %v421
      %v499 = vunpack.c.l.b16 %v422
      %v500 = vunpack.c.l.b16 %v423
      %v501 = vunpack.c.l.b16 %v424
      %v502 = vunpack.c.l.b16 %v425
      %v503 = vunpack.c.l.b16 %v426
      %v504 = vunpack.c.l.b16 %v427
      %v505 = vunpack.c.l.b16 %v428
      %v506 = vunpack.c.l.b16 %v429
      %v507 = vunpack.c.l.b16 %v430
      %v508 = vunpack.c.l.b16 %v431
      %v509 = vunpack.c.l.b16 %v432
      %v510 = vunpack.c.l.b16 %v433
      %v511 = vunpack.c.l.b16 %v434
      %v512 = vunpack.c.l.b16 %v435
      %v513 = vunpack.c.l.b16 %v436
      %v514 = vunpack.c.l.b16 %v437
      %v515 = vunpack.c.l.b16 %v438
      %v516 = vunpack.c.l.b16 %v439
      %v517 = vpack.c.b16 %v486, %v485
      %v518 = vpack.c.b16 %v488, %v487
      %v519 = vpack.c.b16 %v490, %v489
      %v520 = vpack.c.b16 %v492, %v491
      %v521 = vpack.c.b16 %v494, %v493
      %v522 = vpack.c.b16 %v496, %v495
      %v523 = vpack.c.b16 %v498, %v497
      %v524 = vpack.c.b16 %v500, %v499
      %v525 = vpack.c.b16 %v502, %v501
      %v526 = vpack.c.b16 %v504, %v503
      %v527 = vpack.c.b16 %v506, %v505
      %v528 = vpack.c.b16 %v508, %v507
      %v529 = vpack.c.b16 %v510, %v509
      %v530 = vpack.c.b16 %v512, %v511
      %v531 = vpack.c.b16 %v514, %v513
      %v532 = vpack.c.b16 %v516, %v515
      %v542 = vunpack.c.l.b16 %v440
      %v543 = vunpack.c.l.b16 %v441
      %v544 = vunpack.c.l.b16 %v442
      %v545 = vunpack.c.l.b16 %v443
      %v546 = vunpack.c.l.b16 %v444
      %v547 = vunpack.c.l.b16 %v445
      %v548 = vunpack.c.l.b16 %v446
      %v549 = vunpack.c.l.b16 %v447
      %v550 = vunpack.c.l.b16 %v448
      %v551 = vpack.c.b16 %v543, %v542
      %v552 = vpack.c.b16 %v545, %v544
      %v553 = vpack.c.b16 %v547, %v546
      %v554 = vpack.c.b16 %v549, %v548
      %v555 = vpack.c.b16 %v550, %v550
      %vm560 = vcmask 588800
      %v562 = vsel %vm560, %v517, 0
      %v565 = vsel %vm560, %v518, 0
      %v568 = vsel %vm560, %v519, 0
      %v571 = vsel %vm560, %v520, 0
      %v574 = vsel %vm560, %v521, 0
      %v577 = vsel %vm560, %v522, 0
      %v580 = vsel %vm560, %v523, 0
      %v583 = vsel %vm560, %v524, 0
      %v586 = vsel %vm560, %v525, 0
      %v589 = vsel %vm560, %v526, 0
      %v592 = vsel %vm560, %v527, 0
      %v595 = vsel %vm560, %v528, 0
      %v598 = vsel %vm560, %v529, 0
      %v601 = vsel %vm560, %v530, 0
      %v604 = vsel %vm560, %v531, 0
      %v607 = vsel %vm560, %v532, 0
      %vm609 = vcmask 1043456
      %v611 = vsel %vm609, %v555, 0
      %613 = vmatpush.bf16.msra.mxu0 0
      %614 = vmatpush.bf16.msra.mxu0 0
      %615 = vmatpush.bf16.msra.mxu0 0
      %616 = vmatpush.bf16.msra.mxu0 %v611
      %617 = vmatpush.bf16.msra.mxu0 %v554
      %618 = vmatpush.bf16.msra.mxu0 %v553
      %619 = vmatpush.bf16.msra.mxu0 %v552
      %620 = vmatpush.bf16.msra.mxu0 %v551
      %621 = vmatmul.bf16.gmra.mxu0 %v562
      %v622 = vpop.f32.mrf.mxu0
      %v623 = vadd.f32 %v451, %v622
      %v624 = vpop.f32.mrf.mxu0
      %v625 = vadd.f32 %v451, %v624
      %626 = vmatmul.bf16.gmra.mxu0 %v565
      %v627 = vpop.f32.mrf.mxu0
      %v628 = vadd.f32 %v451, %v627
      %v629 = vpop.f32.mrf.mxu0
      %v630 = vadd.f32 %v451, %v629
      %631 = vmatmul.bf16.gmra.mxu0 %v568
      %v632 = vpop.f32.mrf.mxu0
      %v633 = vadd.f32 %v451, %v632
      %v634 = vpop.f32.mrf.mxu0
      %v635 = vadd.f32 %v451, %v634
      %636 = vmatmul.bf16.gmra.mxu0 %v571
      %v637 = vpop.f32.mrf.mxu0
      %v638 = vadd.f32 %v451, %v637
      %v639 = vpop.f32.mrf.mxu0
      %v640 = vadd.f32 %v451, %v639
      %641 = vmatmul.bf16.gmra.mxu0 %v574
      %v642 = vpop.f32.mrf.mxu0
      %v643 = vadd.f32 %v451, %v642
      %v644 = vpop.f32.mrf.mxu0
      %v645 = vadd.f32 %v451, %v644
      %646 = vmatmul.bf16.gmra.mxu0 %v577
      %v647 = vpop.f32.mrf.mxu0
      %v648 = vadd.f32 %v451, %v647
      %v649 = vpop.f32.mrf.mxu0
      %v650 = vadd.f32 %v451, %v649
      %651 = vmatmul.bf16.gmra.mxu0 %v580
      %v652 = vpop.f32.mrf.mxu0
      %v653 = vadd.f32 %v451, %v652
      %v654 = vpop.f32.mrf.mxu0
      %v655 = vadd.f32 %v451, %v654
      %656 = vmatmul.bf16.gmra.mxu0 %v583
      %v657 = vpop.f32.mrf.mxu0
      %v658 = vadd.f32 %v451, %v657
      %v659 = vpop.f32.mrf.mxu0
      %v660 = vadd.f32 %v451, %v659
      %661 = vmatmul.bf16.gmra.mxu0 %v586
      %v662 = vpop.f32.mrf.mxu0
      %v663 = vadd.f32 %v451, %v662
      %v664 = vpop.f32.mrf.mxu0
      %v665 = vadd.f32 %v451, %v664
      %666 = vmatmul.bf16.gmra.mxu0 %v589
      %v667 = vpop.f32.mrf.mxu0
      %v668 = vadd.f32 %v451, %v667
      %v669 = vpop.f32.mrf.mxu0
      %v670 = vadd.f32 %v451, %v669
      %671 = vmatmul.bf16.gmra.mxu0 %v592
      %v672 = vpop.f32.mrf.mxu0
      %v673 = vadd.f32 %v451, %v672
      %v674 = vpop.f32.mrf.mxu0
      %v675 = vadd.f32 %v451, %v674
      %676 = vmatmul.bf16.gmra.mxu0 %v595
      %v677 = vpop.f32.mrf.mxu0
      %v678 = vadd.f32 %v451, %v677
      %v679 = vpop.f32.mrf.mxu0
      %v680 = vadd.f32 %v451, %v679
      %681 = vmatmul.bf16.gmra.mxu0 %v598
      %v682 = vpop.f32.mrf.mxu0
      %v683 = vadd.f32 %v451, %v682
      %v684 = vpop.f32.mrf.mxu0
      %v685 = vadd.f32 %v451, %v684
      %686 = vmatmul.bf16.gmra.mxu0 %v601
      %v687 = vpop.f32.mrf.mxu0
      %v688 = vadd.f32 %v451, %v687
      %v689 = vpop.f32.mrf.mxu0
      %v690 = vadd.f32 %v451, %v689
      %691 = vmatmul.bf16.gmra.mxu0 %v604
      %v692 = vpop.f32.mrf.mxu0
      %v693 = vadd.f32 %v451, %v692
      %v694 = vpop.f32.mrf.mxu0
      %v695 = vadd.f32 %v451, %v694
      %696 = vmatmul.bf16.gmra.mxu0 %v607
      %v697 = vpop.f32.mrf.mxu0
      %v698 = vadd.f32 %v451, %v697
      %v699 = vpop.f32.mrf.mxu0
      %v700 = vadd.f32 %v451, %v699
      %701 = vdwg.mxu0
      %vm702 = vcmask 64512
      %v703 = vsel %vm702, %v623, 0.0
      %v704 = vsel %vm702, %v625, 0.0
      %v705 = vadd.f32 %v703, %v704
      %v706 = vrot.slane %v705, 4
      %v707 = vadd.f32 %v705, %v706
      %v708 = vrot.slane %v707, 2
      %v709 = vadd.f32 %v707, %v708
      %v710 = vrot.slane %v709, 1
      %v711 = vadd.f32 %v709, %v710
      %v712 = vsel %vm702, %v628, 0.0
      %v713 = vsel %vm702, %v630, 0.0
      %v714 = vadd.f32 %v712, %v713
      %v715 = vrot.slane %v714, 4
      %v716 = vadd.f32 %v714, %v715
      %v717 = vrot.slane %v716, 2
      %v718 = vadd.f32 %v716, %v717
      %v719 = vrot.slane %v718, 1
      %v720 = vadd.f32 %v718, %v719
      %v721 = vsel %vm702, %v633, 0.0
      %v722 = vsel %vm702, %v635, 0.0
      %v723 = vadd.f32 %v721, %v722
      %v724 = vrot.slane %v723, 4
      %v725 = vadd.f32 %v723, %v724
      %v726 = vrot.slane %v725, 2
      %v727 = vadd.f32 %v725, %v726
      %v728 = vrot.slane %v727, 1
      %v729 = vadd.f32 %v727, %v728
      %v730 = vsel %vm702, %v638, 0.0
      %v731 = vsel %vm702, %v640, 0.0
      %v732 = vadd.f32 %v730, %v731
      %v733 = vrot.slane %v732, 4
      %v734 = vadd.f32 %v732, %v733
      %v735 = vrot.slane %v734, 2
      %v736 = vadd.f32 %v734, %v735
      %v737 = vrot.slane %v736, 1
      %v738 = vadd.f32 %v736, %v737
      %v739 = vsel %vm702, %v643, 0.0
      %v740 = vsel %vm702, %v645, 0.0
      %v741 = vadd.f32 %v739, %v740
      %v742 = vrot.slane %v741, 4
      %v743 = vadd.f32 %v741, %v742
      %v744 = vrot.slane %v743, 2
      %v745 = vadd.f32 %v743, %v744
      %v746 = vrot.slane %v745, 1
      %v747 = vadd.f32 %v745, %v746
      %v748 = vsel %vm702, %v648, 0.0
      %v749 = vsel %vm702, %v650, 0.0
      %v750 = vadd.f32 %v748, %v749
      %v751 = vrot.slane %v750, 4
      %v752 = vadd.f32 %v750, %v751
      %v753 = vrot.slane %v752, 2
      %v754 = vadd.f32 %v752, %v753
      %v755 = vrot.slane %v754, 1
      %v756 = vadd.f32 %v754, %v755
      %v757 = vsel %vm702, %v653, 0.0
      %v758 = vsel %vm702, %v655, 0.0
      %v759 = vadd.f32 %v757, %v758
      %v760 = vrot.slane %v759, 4
      %v761 = vadd.f32 %v759, %v760
      %v762 = vrot.slane %v761, 2
      %v763 = vadd.f32 %v761, %v762
      %v764 = vrot.slane %v763, 1
      %v765 = vadd.f32 %v763, %v764
      %v766 = vsel %vm702, %v658, 0.0
      %v767 = vsel %vm702, %v660, 0.0
      %v768 = vadd.f32 %v766, %v767
      %v769 = vrot.slane %v768, 4
      %v770 = vadd.f32 %v768, %v769
      %v771 = vrot.slane %v770, 2
      %v772 = vadd.f32 %v770, %v771
      %v773 = vrot.slane %v772, 1
      %v774 = vadd.f32 %v772, %v773
      %v775 = vsel %vm702, %v663, 0.0
      %v776 = vsel %vm702, %v665, 0.0
      %v777 = vadd.f32 %v775, %v776
      %v778 = vrot.slane %v777, 4
      %v779 = vadd.f32 %v777, %v778
      %v780 = vrot.slane %v779, 2
      %v781 = vadd.f32 %v779, %v780
      %v782 = vrot.slane %v781, 1
      %v783 = vadd.f32 %v781, %v782
      %v784 = vsel %vm702, %v668, 0.0
      %v785 = vsel %vm702, %v670, 0.0
      %v786 = vadd.f32 %v784, %v785
      %v787 = vrot.slane %v786, 4
      %v788 = vadd.f32 %v786, %v787
      %v789 = vrot.slane %v788, 2
      %v790 = vadd.f32 %v788, %v789
      %v791 = vrot.slane %v790, 1
      %v792 = vadd.f32 %v790, %v791
      %v793 = vsel %vm702, %v673, 0.0
      %v794 = vsel %vm702, %v675, 0.0
      %v795 = vadd.f32 %v793, %v794
      %v796 = vrot.slane %v795, 4
      %v797 = vadd.f32 %v795, %v796
      %v798 = vrot.slane %v797, 2
      %v799 = vadd.f32 %v797, %v798
      %v800 = vrot.slane %v799, 1
      %v801 = vadd.f32 %v799, %v800
      %v802 = vsel %vm702, %v678, 0.0
      %v803 = vsel %vm702, %v680, 0.0
      %v804 = vadd.f32 %v802, %v803
      %v805 = vrot.slane %v804, 4
      %v806 = vadd.f32 %v804, %v805
      %v807 = vrot.slane %v806, 2
      %v808 = vadd.f32 %v806, %v807
      %v809 = vrot.slane %v808, 1
      %v810 = vadd.f32 %v808, %v809
      %v811 = vsel %vm702, %v683, 0.0
      %v812 = vsel %vm702, %v685, 0.0
      %v813 = vadd.f32 %v811, %v812
      %v814 = vrot.slane %v813, 4
      %v815 = vadd.f32 %v813, %v814
      %v816 = vrot.slane %v815, 2
      %v817 = vadd.f32 %v815, %v816
      %v818 = vrot.slane %v817, 1
      %v819 = vadd.f32 %v817, %v818
      %v820 = vsel %vm702, %v688, 0.0
      %v821 = vsel %vm702, %v690, 0.0
      %v822 = vadd.f32 %v820, %v821
      %v823 = vrot.slane %v822, 4
      %v824 = vadd.f32 %v822, %v823
      %v825 = vrot.slane %v824, 2
      %v826 = vadd.f32 %v824, %v825
      %v827 = vrot.slane %v826, 1
      %v828 = vadd.f32 %v826, %v827
      %v829 = vsel %vm702, %v693, 0.0
      %v830 = vsel %vm702, %v695, 0.0
      %v831 = vadd.f32 %v829, %v830
      %v832 = vrot.slane %v831, 4
      %v833 = vadd.f32 %v831, %v832
      %v834 = vrot.slane %v833, 2
      %v835 = vadd.f32 %v833, %v834
      %v836 = vrot.slane %v835, 1
      %v837 = vadd.f32 %v835, %v836
      %v838 = vsel %vm702, %v698, 0.0
      %v839 = vsel %vm702, %v700, 0.0
      %v840 = vadd.f32 %v838, %v839
      %v841 = vrot.slane %v840, 4
      %v842 = vadd.f32 %v840, %v841
      %v843 = vrot.slane %v842, 2
      %v844 = vadd.f32 %v842, %v843
      %v845 = vrot.slane %v844, 1
      %v846 = vadd.f32 %v844, %v845
      %v847 = vrcp.pop 16.0
      %v848 = vmul.f32 16.0, %v847
      %v849 = vsub.f32 1.0, %v848
      %v850 = vmul.f32 %v847, %v849
      %v851 = vadd.f32 %v847, %v850
      %vm852 = vweird.f32 %v847
      %v853 = vsel %vm852, %v847, %v851
      %v854 = vmul.f32 %v711, %v853
      %v855 = vmul.f32 %v720, %v853
      %v856 = vmul.f32 %v729, %v853
      %v857 = vmul.f32 %v738, %v853
      %v858 = vmul.f32 %v747, %v853
      %v859 = vmul.f32 %v756, %v853
      %v860 = vmul.f32 %v765, %v853
      %v861 = vmul.f32 %v774, %v853
      %v862 = vmul.f32 %v783, %v853
      %v863 = vmul.f32 %v792, %v853
      %v864 = vmul.f32 %v801, %v853
      %v865 = vmul.f32 %v810, %v853
      %v866 = vmul.f32 %v819, %v853
      %v867 = vmul.f32 %v828, %v853
      %v868 = vmul.f32 %v837, %v853
      %v869 = vmul.f32 %v846, %v853
      %v870 = vadd.f32 %v703, %v712
      %v871 = vadd.f32 %v870, %v721
      %v872 = vadd.f32 %v871, %v730
      %v873 = vadd.f32 %v872, %v739
      %v874 = vadd.f32 %v873, %v748
      %v875 = vadd.f32 %v874, %v757
      %v876 = vadd.f32 %v875, %v766
      %v877 = vadd.f32 %v876, %v775
      %v878 = vadd.f32 %v877, %v784
      %v879 = vadd.f32 %v878, %v793
      %v880 = vadd.f32 %v879, %v802
      %v881 = vadd.f32 %v880, %v811
      %v882 = vadd.f32 %v881, %v820
      %v883 = vadd.f32 %v882, %v829
      %v884 = vadd.f32 %v883, %v838
      %v885 = vadd.f32 %v704, %v713
      %v886 = vadd.f32 %v885, %v722
      %v887 = vadd.f32 %v886, %v731
      %v888 = vadd.f32 %v887, %v740
      %v889 = vadd.f32 %v888, %v749
      %v890 = vadd.f32 %v889, %v758
      %v891 = vadd.f32 %v890, %v767
      %v892 = vadd.f32 %v891, %v776
      %v893 = vadd.f32 %v892, %v785
      %v894 = vadd.f32 %v893, %v794
      %v895 = vadd.f32 %v894, %v803
      %v896 = vadd.f32 %v895, %v812
      %v897 = vadd.f32 %v896, %v821
      %v898 = vadd.f32 %v897, %v830
      %v899 = vadd.f32 %v898, %v839
      %v900 = vmul.f32 %v884, %v853
      %v901 = vmul.f32 %v899, %v853
      %v902 = vld [vmem:[%s4] sm:$0xff]
      %vm919 = vcmask 1041409
      %v920 = vsel %vm919, %v855, %v854
      %vm921 = vcmask 1042434
      %v922 = vsel %vm921, %v856, %v920
      %vm923 = vcmask 1043459
      %v924 = vsel %vm923, %v857, %v922
      %vm925 = vcmask 1044484
      %v926 = vsel %vm925, %v858, %v924
      %vm927 = vcmask 1045509
      %v928 = vsel %vm927, %v859, %v926
      %vm929 = vcmask 1046534
      %v930 = vsel %vm929, %v860, %v928
      %vm931 = vcmask 1047559
      %v932 = vsel %vm931, %v861, %v930
      %v933 = vsel %vm919, %v863, %v862
      %v934 = vsel %vm921, %v864, %v933
      %v935 = vsel %vm923, %v865, %v934
      %v936 = vsel %vm925, %v866, %v935
      %v937 = vsel %vm927, %v867, %v936
      %v938 = vsel %vm929, %v868, %v937
      %v939 = vsel %vm931, %v869, %v938
      %v940 = vsel %vm702, %v932, 0
      %v942 = vsel %vm702, %v939, 0
      %944 = vmatpush.msra.mxu0 0.0
      %945 = vmatpush.msra.mxu0 0.0
      %946 = vmatpush.msra.mxu0 0.0
      %947 = vmatpush.msra.mxu0 0.0
      %948 = vmatpush.msra.mxu0 0.0
      %949 = vmatpush.msra.mxu0 0.0
      %950 = vmatpush.msra.mxu0 0.0
      %951 = vmatpush.msra.mxu0 0.0
      %952 = vmatpush.msra.mxu0 0.0
      %953 = vmatpush.msra.mxu0 0.0
      %954 = vmatpush.msra.mxu0 0.0
      %955 = vmatpush.msra.mxu0 0.0
      %956 = vmatpush.msra.mxu0 0.0
      %957 = vmatpush.msra.mxu0 0.0
      %958 = vmatpush.msra.mxu0 0.0
      %959 = vmatpush.msra.mxu0 %v902
      %960 = vmatmul.f32.gmra.mxu0 %v940
      %v961 = vpop.f32.mrf.mxu0
      %v962 = vadd.f32 0.0, %v961
      %963 = vmatmul.f32.gmra.mxu0 %v942
      %v964 = vpop.f32.mrf.mxu0
      %v965 = vadd.f32 0.0, %v964
      %966 = vdwg.mxu0
      %v967 = vld [vmem:[%s5] sm:$0x1]
      %v969 = vperm.slane %v967, 0
      %v971 = vmul.f32 %v962, %v969
      %v972 = vmul.f32 %v965, %v969
      %v973 = vld [vmem:[%s6] sm:$0x1]
      %v975 = vperm.slane %v973, 0
      %v977 = vadd.f32 %v971, %v975
      %v978 = vadd.f32 %v972, %v975
      %v979 = vmax.f32 %v977, 0.0
      %v980 = vmax.f32 %v978, 0.0
      %v982 = vsel %vm702, %v900, 0
      %v985 = vsel %vm702, %v901, 0
      %987 = vmatpush.msra.mxu0 0.0
      %988 = vmatpush.msra.mxu0 0.0
      %989 = vmatpush.msra.mxu0 0.0
      %990 = vmatpush.msra.mxu0 0.0
      %991 = vmatpush.msra.mxu0 0.0
      %992 = vmatpush.msra.mxu0 0.0
      %993 = vmatpush.msra.mxu0 0.0
      %994 = vmatpush.msra.mxu0 0.0
      %995 = vmatpush.msra.mxu0 0.0
      %996 = vmatpush.msra.mxu0 0.0
      %997 = vmatpush.msra.mxu0 0.0
      %998 = vmatpush.msra.mxu0 0.0
      %999 = vmatpush.msra.mxu0 0.0
      %1000 = vmatpush.msra.mxu0 0.0
      %1001 = vmatpush.msra.mxu0 0.0
      %1002 = vmatpush.msra.mxu0 %v902
      %1003 = vmatmul.f32.gmra.mxu0 %v982
      %v1004 = vpop.f32.mrf.mxu0
      %v1005 = vadd.f32 0.0, %v1004
      %1006 = vmatmul.f32.gmra.mxu0 %v985
      %v1007 = vpop.f32.mrf.mxu0
      %v1008 = vadd.f32 0.0, %v1007
      %1009 = vdwg.mxu0
      %v1010 = vmul.f32 %v1005, %v969
      %v1011 = vmul.f32 %v1008, %v969
      %v1012 = vadd.f32 %v1010, %v975
      %v1013 = vadd.f32 %v1011, %v975
      %v1014 = vmax.f32 %v1012, 0.0
      %v1015 = vmax.f32 %v1013, 0.0
      %v1016 = vld [vmem:[%s7] sm:$0xff]
      %v1017 = vld [vmem:[%s8] sm:$0x1]
      %v1019 = vperm.slane %v1017, 0
      %v1022 = vsel %vm702, %v979, 0
      %v1025 = vsel %vm702, %v980, 0
      %1027 = vmatpush.msra.mxu0 0.0
      %1028 = vmatpush.msra.mxu0 0.0
      %1029 = vmatpush.msra.mxu0 0.0
      %1030 = vmatpush.msra.mxu0 0.0
      %1031 = vmatpush.msra.mxu0 0.0
      %1032 = vmatpush.msra.mxu0 0.0
      %1033 = vmatpush.msra.mxu0 0.0
      %1034 = vmatpush.msra.mxu0 0.0
      %1035 = vmatpush.msra.mxu0 0.0
      %1036 = vmatpush.msra.mxu0 0.0
      %1037 = vmatpush.msra.mxu0 0.0
      %1038 = vmatpush.msra.mxu0 0.0
      %1039 = vmatpush.msra.mxu0 0.0
      %1040 = vmatpush.msra.mxu0 0.0
      %1041 = vmatpush.msra.mxu0 0.0
      %1042 = vmatpush.msra.mxu0 %v1016
      %1043 = vmatmul.f32.gmra.mxu0 %v1022
      %v1044 = vpop.f32.mrf.mxu0
      %v1045 = vadd.f32 %v1019, %v1044
      %1046 = vmatmul.f32.gmra.mxu0 %v1025
      %v1047 = vpop.f32.mrf.mxu0
      %v1048 = vadd.f32 %v1019, %v1047
      %1049 = vdwg.mxu0
      %v1050 = vxor.u32 %v1045, 2147483648
      %v1051 = vxor.u32 %v1048, 2147483648
      %v1052 = vmul.f32 %v1050, 1.442695
      %v1053 = vpow.pop %v1052
      %v1054 = vmul.f32 %v1051, 1.442695
      %v1055 = vpow.pop %v1054
      %v1056 = vadd.f32 %v1053, 1.0
      %v1057 = vadd.f32 %v1055, 1.0
      %v1058 = vrcp.pop %v1056
      %v1059 = vmul.f32 %v1056, %v1058
      %v1060 = vsub.f32 1.0, %v1059
      %v1061 = vmul.f32 %v1058, %v1060
      %v1062 = vadd.f32 %v1058, %v1061
      %vm1063 = vweird.f32 %v1056
      %vm1064 = vweird.f32 %v1058
      %vm1065 = vmor %vm1063, %vm1064
      %v1066 = vsel %vm1065, %v1058, %v1062
      %v1067 = vand.u32 2147483647, %v1056
      %vm1068 = vcmp.eq.f32.partialorder %v1067, 8.507059e+37
      %v1069 = vand.u32 %v1056, 2147483648
      %v1070 = vor.u32 1.1754944e-38, %v1069
      %v1071 = vsel %vm1068, %v1070, %v1066
      %v1072 = vmul.f32 1.0, %v1071
      %v1073 = vrcp.pop %v1057
      %v1074 = vmul.f32 %v1057, %v1073
      %v1075 = vsub.f32 1.0, %v1074
      %v1076 = vmul.f32 %v1073, %v1075
      %v1077 = vadd.f32 %v1073, %v1076
      %vm1078 = vweird.f32 %v1057
      %vm1079 = vweird.f32 %v1073
      %vm1080 = vmor %vm1078, %vm1079
      %v1081 = vsel %vm1080, %v1073, %v1077
      %v1082 = vand.u32 2147483647, %v1057
      %vm1083 = vcmp.eq.f32.partialorder %v1082, 8.507059e+37
      %v1084 = vand.u32 %v1057, 2147483648
      %v1085 = vor.u32 1.1754944e-38, %v1084
      %v1086 = vsel %vm1083, %v1085, %v1081
      %v1087 = vmul.f32 1.0, %v1086
      %v1088 = vld [vmem:[%s9] sm:$0xff]
      %v1089 = vld [vmem:[%s10] sm:$0x1]
      %v1091 = vperm.slane %v1089, 0
      %v1094 = vsel %vm702, %v1014, 0
      %v1097 = vsel %vm702, %v1015, 0
      %1099 = vmatpush.msra.mxu0 0.0
      %1100 = vmatpush.msra.mxu0 0.0
      %1101 = vmatpush.msra.mxu0 0.0
      %1102 = vmatpush.msra.mxu0 0.0
      %1103 = vmatpush.msra.mxu0 0.0
      %1104 = vmatpush.msra.mxu0 0.0
      %1105 = vmatpush.msra.mxu0 0.0
      %1106 = vmatpush.msra.mxu0 0.0
      %1107 = vmatpush.msra.mxu0 0.0
      %1108 = vmatpush.msra.mxu0 0.0
      %1109 = vmatpush.msra.mxu0 0.0
      %1110 = vmatpush.msra.mxu0 0.0
      %1111 = vmatpush.msra.mxu0 0.0
      %1112 = vmatpush.msra.mxu0 0.0
      %1113 = vmatpush.msra.mxu0 0.0
      %1114 = vmatpush.msra.mxu0 %v1088
      %1115 = vmatmul.f32.gmra.mxu0 %v1094
      %v1116 = vpop.f32.mrf.mxu0
      %v1117 = vadd.f32 %v1091, %v1116
      %1118 = vmatmul.f32.gmra.mxu0 %v1097
      %v1119 = vpop.f32.mrf.mxu0
      %v1120 = vadd.f32 %v1091, %v1119
      %1121 = vdwg.mxu0
      %v1122 = vxor.u32 %v1117, 2147483648
      %v1123 = vxor.u32 %v1120, 2147483648
      %v1124 = vmul.f32 %v1122, 1.442695
      %v1125 = vpow.pop %v1124
      %v1126 = vmul.f32 %v1123, 1.442695
      %v1127 = vpow.pop %v1126
      %v1128 = vadd.f32 %v1125, 1.0
      %v1129 = vadd.f32 %v1127, 1.0
      %v1130 = vrcp.pop %v1128
      %v1131 = vmul.f32 %v1128, %v1130
      %v1132 = vsub.f32 1.0, %v1131
      %v1133 = vmul.f32 %v1130, %v1132
      %v1134 = vadd.f32 %v1130, %v1133
      %vm1135 = vweird.f32 %v1128
      %vm1136 = vweird.f32 %v1130
      %vm1137 = vmor %vm1135, %vm1136
      %v1138 = vsel %vm1137, %v1130, %v1134
      %v1139 = vand.u32 2147483647, %v1128
      %vm1140 = vcmp.eq.f32.partialorder %v1139, 8.507059e+37
      %v1141 = vand.u32 %v1128, 2147483648
      %v1142 = vor.u32 1.1754944e-38, %v1141
      %v1143 = vsel %vm1140, %v1142, %v1138
      %v1144 = vmul.f32 1.0, %v1143
      %v1145 = vrcp.pop %v1129
      %v1146 = vmul.f32 %v1129, %v1145
      %v1147 = vsub.f32 1.0, %v1146
      %v1148 = vmul.f32 %v1145, %v1147
      %v1149 = vadd.f32 %v1145, %v1148
      %vm1150 = vweird.f32 %v1129
      %vm1151 = vweird.f32 %v1145
      %vm1152 = vmor %vm1150, %vm1151
      %v1153 = vsel %vm1152, %v1145, %v1149
      %v1154 = vand.u32 2147483647, %v1129
      %vm1155 = vcmp.eq.f32.partialorder %v1154, 8.507059e+37
      %v1156 = vand.u32 %v1129, 2147483648
      %v1157 = vor.u32 1.1754944e-38, %v1156
      %v1158 = vsel %vm1155, %v1157, %v1153
      %v1159 = vmul.f32 1.0, %v1158
      %v1162 = vrot.slane %v1072, 1
      %v1163 = vrot.slane %v1072, 2
      %v1164 = vrot.slane %v1072, 3
      %v1165 = vrot.slane %v1072, 4
      %v1166 = vrot.slane %v1072, 5
      %v1167 = vrot.slane %v1072, 6
      %v1168 = vrot.slane %v1072, 7
      %v1169 = vrot.slane %v1087, 1
      %v1170 = vrot.slane %v1087, 2
      %v1171 = vrot.slane %v1087, 3
      %v1172 = vrot.slane %v1087, 4
      %v1173 = vrot.slane %v1087, 5
      %v1174 = vrot.slane %v1087, 6
      %v1175 = vrot.slane %v1087, 7
      %v1176 = vperm.slane %v1072, 0
      %v1177 = vperm.slane %v1162, 0
      %v1178 = vperm.slane %v1163, 0
      %v1179 = vperm.slane %v1164, 0
      %v1180 = vperm.slane %v1165, 0
      %v1181 = vperm.slane %v1166, 0
      %v1182 = vperm.slane %v1167, 0
      %v1183 = vperm.slane %v1168, 0
      %v1184 = vperm.slane %v1087, 0
      %v1185 = vperm.slane %v1169, 0
      %v1186 = vperm.slane %v1170, 0
      %v1187 = vperm.slane %v1171, 0
      %v1188 = vperm.slane %v1172, 0
      %v1189 = vperm.slane %v1173, 0
      %v1190 = vperm.slane %v1174, 0
      %v1191 = vperm.slane %v1175, 0
      %v1208 = vmul.f32 %v623, %v1176
      %v1209 = vmul.f32 %v625, %v1176
      %v1210 = vmul.f32 %v628, %v1177
      %v1211 = vmul.f32 %v630, %v1177
      %v1212 = vmul.f32 %v633, %v1178
      %v1213 = vmul.f32 %v635, %v1178
      %v1214 = vmul.f32 %v638, %v1179
      %v1215 = vmul.f32 %v640, %v1179
      %v1216 = vmul.f32 %v643, %v1180
      %v1217 = vmul.f32 %v645, %v1180
      %v1218 = vmul.f32 %v648, %v1181
      %v1219 = vmul.f32 %v650, %v1181
      %v1220 = vmul.f32 %v653, %v1182
      %v1221 = vmul.f32 %v655, %v1182
      %v1222 = vmul.f32 %v658, %v1183
      %v1223 = vmul.f32 %v660, %v1183
      %v1224 = vmul.f32 %v663, %v1184
      %v1225 = vmul.f32 %v665, %v1184
      %v1226 = vmul.f32 %v668, %v1185
      %v1227 = vmul.f32 %v670, %v1185
      %v1228 = vmul.f32 %v673, %v1186
      %v1229 = vmul.f32 %v675, %v1186
      %v1230 = vmul.f32 %v678, %v1187
      %v1231 = vmul.f32 %v680, %v1187
      %v1232 = vmul.f32 %v683, %v1188
      %v1233 = vmul.f32 %v685, %v1188
      %v1234 = vmul.f32 %v688, %v1189
      %v1235 = vmul.f32 %v690, %v1189
      %v1236 = vmul.f32 %v693, %v1190
      %v1237 = vmul.f32 %v695, %v1190
      %v1238 = vmul.f32 %v698, %v1191
      %v1239 = vmul.f32 %v700, %v1191
      %v1240 = vmul.f32 %v1208, %v1144
      %v1241 = vmul.f32 %v1209, %v1159
      %v1242 = vmul.f32 %v1210, %v1144
      %v1243 = vmul.f32 %v1211, %v1159
      %v1244 = vmul.f32 %v1212, %v1144
      %v1245 = vmul.f32 %v1213, %v1159
      %v1246 = vmul.f32 %v1214, %v1144
      %v1247 = vmul.f32 %v1215, %v1159
      %v1248 = vmul.f32 %v1216, %v1144
      %v1249 = vmul.f32 %v1217, %v1159
      %v1250 = vmul.f32 %v1218, %v1144
      %v1251 = vmul.f32 %v1219, %v1159
      %v1252 = vmul.f32 %v1220, %v1144
      %v1253 = vmul.f32 %v1221, %v1159
      %v1254 = vmul.f32 %v1222, %v1144
      %v1255 = vmul.f32 %v1223, %v1159
      %v1256 = vmul.f32 %v1224, %v1144
      %v1257 = vmul.f32 %v1225, %v1159
      %v1258 = vmul.f32 %v1226, %v1144
      %v1259 = vmul.f32 %v1227, %v1159
      %v1260 = vmul.f32 %v1228, %v1144
      %v1261 = vmul.f32 %v1229, %v1159
      %v1262 = vmul.f32 %v1230, %v1144
      %v1263 = vmul.f32 %v1231, %v1159
      %v1264 = vmul.f32 %v1232, %v1144
      %v1265 = vmul.f32 %v1233, %v1159
      %v1266 = vmul.f32 %v1234, %v1144
      %v1267 = vmul.f32 %v1235, %v1159
      %v1268 = vmul.f32 %v1236, %v1144
      %v1269 = vmul.f32 %v1237, %v1159
      %v1270 = vmul.f32 %v1238, %v1144
      %v1271 = vmul.f32 %v1239, %v1159
      %v1272 = vld [vmem:[%s401] sm:$0xff]
      %v1273 = vld [vmem:[%s401 + $0x8] sm:$0xff]
      %v1274 = vld [vmem:[%s401 + $0x10] sm:$0xff]
      %v1275 = vld [vmem:[%s401 + $0x18] sm:$0xff]
      %v1276 = vld [vmem:[%s401 + $0x20] sm:$0xff]
      %v1277 = vld [vmem:[%s401 + $0x28] sm:$0xff]
      %v1278 = vld [vmem:[%s401 + $0x30] sm:$0xff]
      %v1279 = vld [vmem:[%s401 + $0x38] sm:$0xff]
      %v1280 = vld [vmem:[%s401 + $0x40] sm:$0xff]
      %v1281 = vld [vmem:[%s401 + $0x48] sm:$0xff]
      %v1282 = vld [vmem:[%s401 + $0x50] sm:$0xff]
      %v1283 = vld [vmem:[%s401 + $0x58] sm:$0xff]
      %v1284 = vld [vmem:[%s401 + $0x60] sm:$0xff]
      %v1285 = vld [vmem:[%s401 + $0x68] sm:$0xff]
      %v1286 = vld [vmem:[%s401 + $0x70] sm:$0xff]
      %v1287 = vld [vmem:[%s401 + $0x78] sm:$0xff]
      %v1288 = vld [vmem:[%s401 + $0x80] sm:$0xff]
      %v1289 = vld [vmem:[%s401 + $0x88] sm:$0xff]
      %v1290 = vld [vmem:[%s401 + $0x90] sm:$0xff]
      %v1291 = vld [vmem:[%s401 + $0x98] sm:$0xff]
      %v1292 = vld [vmem:[%s401 + $0xa0] sm:$0xff]
      %v1293 = vld [vmem:[%s401 + $0xa8] sm:$0xff]
      %v1294 = vld [vmem:[%s401 + $0xb0] sm:$0xff]
      %v1295 = vld [vmem:[%s401 + $0xb8] sm:$0xff]
      %v1296 = vld [vmem:[%s401 + $0xc0] sm:$0xff]
      %v1297 = vld [vmem:[%s401 + $0xc8] sm:$0xff]
      %v1298 = vld [vmem:[%s401 + $0xd0] sm:$0xff]
      %v1299 = vld [vmem:[%s401 + $0xd8] sm:$0xff]
      %v1300 = vld [vmem:[%s401 + $0xe0] sm:$0xff]
      %v1301 = vld [vmem:[%s401 + $0xe8] sm:$0xff]
      %v1302 = vld [vmem:[%s401 + $0xf0] sm:$0xff]
      %v1303 = vld [vmem:[%s401 + $0xf8] sm:$0xff]
      %v1304 = vadd.f32 %v1240, %v1272
      %v1305 = vadd.f32 %v1241, %v1273
      %v1306 = vadd.f32 %v1242, %v1274
      %v1307 = vadd.f32 %v1243, %v1275
      %v1308 = vadd.f32 %v1244, %v1276
      %v1309 = vadd.f32 %v1245, %v1277
      %v1310 = vadd.f32 %v1246, %v1278
      %v1311 = vadd.f32 %v1247, %v1279
      %v1312 = vadd.f32 %v1248, %v1280
      %v1313 = vadd.f32 %v1249, %v1281
      %v1314 = vadd.f32 %v1250, %v1282
      %v1315 = vadd.f32 %v1251, %v1283
      %v1316 = vadd.f32 %v1252, %v1284
      %v1317 = vadd.f32 %v1253, %v1285
      %v1318 = vadd.f32 %v1254, %v1286
      %v1319 = vadd.f32 %v1255, %v1287
      %v1320 = vadd.f32 %v1256, %v1288
      %v1321 = vadd.f32 %v1257, %v1289
      %v1322 = vadd.f32 %v1258, %v1290
      %v1323 = vadd.f32 %v1259, %v1291
      %v1324 = vadd.f32 %v1260, %v1292
      %v1325 = vadd.f32 %v1261, %v1293
      %v1326 = vadd.f32 %v1262, %v1294
      %v1327 = vadd.f32 %v1263, %v1295
      %v1328 = vadd.f32 %v1264, %v1296
      %v1329 = vadd.f32 %v1265, %v1297
      %v1330 = vadd.f32 %v1266, %v1298
      %v1331 = vadd.f32 %v1267, %v1299
      %v1332 = vadd.f32 %v1268, %v1300
      %v1333 = vadd.f32 %v1269, %v1301
      %v1334 = vadd.f32 %v1270, %v1302
      %v1335 = vadd.f32 %v1271, %v1303
      %1336 = vst.msk [vmem:[%s406] sm:$0xff] %vm702, %v1304
      %1337 = vst.msk [vmem:[%s406 + $0x8] sm:$0xff] %vm702, %v1305
      %1338 = vst.msk [vmem:[%s406 + $0x10] sm:$0xff] %vm702, %v1306
      %1339 = vst.msk [vmem:[%s406 + $0x18] sm:$0xff] %vm702, %v1307
      %1340 = vst.msk [vmem:[%s406 + $0x20] sm:$0xff] %vm702, %v1308
      %1341 = vst.msk [vmem:[%s406 + $0x28] sm:$0xff] %vm702, %v1309
      %1342 = vst.msk [vmem:[%s406 + $0x30] sm:$0xff] %vm702, %v1310
      %1343 = vst.msk [vmem:[%s406 + $0x38] sm:$0xff] %vm702, %v1311
      %1344 = vst.msk [vmem:[%s406 + $0x40] sm:$0xff] %vm702, %v1312
      %1345 = vst.msk [vmem:[%s406 + $0x48] sm:$0xff] %vm702, %v1313
      %1346 = vst.msk [vmem:[%s406 + $0x50] sm:$0xff] %vm702, %v1314
      %1347 = vst.msk [vmem:[%s406 + $0x58] sm:$0xff] %vm702, %v1315
      %1348 = vst.msk [vmem:[%s406 + $0x60] sm:$0xff] %vm702, %v1316
      %1349 = vst.msk [vmem:[%s406 + $0x68] sm:$0xff] %vm702, %v1317
      %1350 = vst.msk [vmem:[%s406 + $0x70] sm:$0xff] %vm702, %v1318
      %1351 = vst.msk [vmem:[%s406 + $0x78] sm:$0xff] %vm702, %v1319
      %1352 = vst.msk [vmem:[%s406 + $0x80] sm:$0xff] %vm702, %v1320
      %1353 = vst.msk [vmem:[%s406 + $0x88] sm:$0xff] %vm702, %v1321
      %1354 = vst.msk [vmem:[%s406 + $0x90] sm:$0xff] %vm702, %v1322
      %1355 = vst.msk [vmem:[%s406 + $0x98] sm:$0xff] %vm702, %v1323
      %1356 = vst.msk [vmem:[%s406 + $0xa0] sm:$0xff] %vm702, %v1324
      %1357 = vst.msk [vmem:[%s406 + $0xa8] sm:$0xff] %vm702, %v1325
      %1358 = vst.msk [vmem:[%s406 + $0xb0] sm:$0xff] %vm702, %v1326
      %1359 = vst.msk [vmem:[%s406 + $0xb8] sm:$0xff] %vm702, %v1327
      %1360 = vst.msk [vmem:[%s406 + $0xc0] sm:$0xff] %vm702, %v1328
      %1361 = vst.msk [vmem:[%s406 + $0xc8] sm:$0xff] %vm702, %v1329
      %1362 = vst.msk [vmem:[%s406 + $0xd0] sm:$0xff] %vm702, %v1330
      %1363 = vst.msk [vmem:[%s406 + $0xd8] sm:$0xff] %vm702, %v1331
      %1364 = vst.msk [vmem:[%s406 + $0xe0] sm:$0xff] %vm702, %v1332
      %1365 = vst.msk [vmem:[%s406 + $0xe8] sm:$0xff] %vm702, %v1333
      %1366 = vst.msk [vmem:[%s406 + $0xf0] sm:$0xff] %vm702, %v1334
      %1367 = vst.msk [vmem:[%s406 + $0xf8] sm:$0xff] %vm702, %v1335
      %p1368 = scmp.lt.s32.totalorder %s22, 1
      %s1369 = scalar_select %p1368, %s22, 1
      %s1370 = smul.addr %s1369, 32
      %s1371 = smul.addr %s1370, 8
      %s1372 = scalar_lea.vmem %s11, %s1371
      // Predicated region
      $region65: #{edge_enhance_forward.8} parent=63 // pred_check
        %p1373 = pneg %p281
      $region66: #{edge_enhance_forward.8} parent=63 // pred_check_branch
        %1375 = sbr.rel (%p1373) target = $region68
      $region67: #{edge_enhance_forward.8} parent=63 // pred_region
        _
      $region68: #{edge_enhance_forward.8} parent=63 // pred_fallthru
        _
    $region64: #{edge_enhance_forward.8} parent=5 // pred_fallthru
      _
    %p1376 = scmp.le.s32.totalorder 2, %s17
    // Predicated region
    $region69: #{edge_enhance_forward.8} parent=5 // pred_check
      %p1377 = pneg %p1376
    $region70: #{edge_enhance_forward.8} parent=5 // pred_check_branch
      %1379 = sbr.rel (%p1377) target = $region72
    $region71: #{edge_enhance_forward.8} parent=5 // pred_region
      %s1380 = ssub.s32 %s17, 2
      // Predicated region
      $region73: #{edge_enhance_forward.8} parent=71 // pred_check
        %p1381 = pneg %p287
      $region74: #{edge_enhance_forward.8} parent=71 // pred_check_branch
        %1383 = sbr.rel (%p1381) target = $region76
      $region75: #{edge_enhance_forward.8} parent=71 // pred_region
        %p1384 = scmp.lt.s32.totalorder %s23, 1
        %s1385 = scalar_select %p1384, %s23, 1
        %s1386 = smul.addr %s1385, 32
        %s1387 = smul.addr %s1386, 8
        %s1388 = scalar_lea.vmem %s11, %s1387
      $region76: #{edge_enhance_forward.8} parent=71 // pred_fallthru
        _
    $region72: #{edge_enhance_forward.8} parent=5 // pred_fallthru
      _
  $region6: #{edge_enhance_forward.8} parent=0 // loop_footer
    %s21 = sadd.s32 1, %s17
  $region7: #{edge_enhance_forward.8} parent=0 // loop_footer_branch
    %16 = sbr.rel target = $region3
  $region8: #{edge_enhance_forward.8} parent=0 // loop_exit
    _

</llo_original>
